<compile_context>
chip_gen: v7x
topology: tpu7x:2x2x1
jax: 0.10.0
libtpu: 0.0.40
codegen_flags: <defaults>
</compile_context>

<pallas_src>
import math
from functools import partial

import numpy as np
import jax
import jax.numpy as jnp
from jax.experimental import pallas as pl
from jax.experimental.pallas import tpu as pltpu


# ------------------------------ kernel body -------------------------------

def _layer_norm(x, gamma, beta, eps=1e-5):
    mu = jnp.mean(x, axis=-1, keepdims=True)
    var = jnp.mean((x - mu) ** 2, axis=-1, keepdims=True)
    return (x - mu) * jax.lax.rsqrt(var + eps) * gamma + beta


def fused_chef_kernel(x_ref, pe_ref,
                      wqkv_ref, bqkv_ref, wo_ref, bo_ref,
                      ln1g_ref, ln1b_ref,
                      w1_ref, b1_ref, w2_ref, b2_ref,
                      ln2g_ref, ln2b_ref,
                      wdec_ref, bdec_ref, wout_ref, bout_ref,
                      y_ref,
                      x_sc,
                      *, nhead, seq):
    S = seq
    BS, D = x_sc.shape                       # BS = batch_block * S
    BB = BS // S
    dh = D // nhead
    L = wqkv_ref.shape[0]
    bf16 = jnp.bfloat16

    # ---- TransformerModel preamble: x*sqrt(D) + positional encoding --------
    pe = jnp.tile(pe_ref[...], (BB, 1))                       # (BB*S, D)
    x = x_ref[...].astype(jnp.float32) * math.sqrt(D) + pe    # (BB*S, D) f32

    # ---- nlayers post-norm encoder layers (static unroll, resident weights) --
    for l in range(L):
        wqkv = wqkv_ref[l]                                    # (D, 3D) bf16, Q pre-scaled
        qkv = jnp.dot(x.astype(bf16), wqkv,
                      preferred_element_type=jnp.float32) + bqkv_ref[l]   # (BS, 3D)
        wo = wo_ref[l]                                        # (D, D) bf16

        attn = None
        for h in range(nhead):                                # static unroll over heads
            lo = h * dh
            qh = qkv[:, lo:lo + dh].reshape(BB, S, dh)        # scale already folded
            kh = qkv[:, D + lo:D + lo + dh].reshape(BB, S, dh)
            vh = qkv[:, 2 * D + lo:2 * D + lo + dh].reshape(BB, S, dh)
            s = jnp.einsum('bqd,bkd->bqk', qh.astype(bf16), kh.astype(bf16),
                           preferred_element_type=jnp.float32)            # (BB, S, S)
            s = s - jnp.max(s, axis=-1, keepdims=True)
            p = jnp.exp(s)
            p = p * pl.reciprocal(jnp.sum(p, axis=-1, keepdims=True), approx=True)
            oh = jnp.einsum('bqk,bkd->bqd', p.astype(bf16), vh.astype(bf16),
                            preferred_element_type=jnp.float32)           # (BB, S, dh)
            # concat(o_h) @ Wo == sum_h o_h @ Wo[h*dh:(h+1)*dh, :]
            proj = jnp.dot(oh.reshape(BS, dh).astype(bf16), wo[lo:lo + dh, :],
                           preferred_element_type=jnp.float32)
            attn = (proj + bo_ref[l]) if attn is None else (attn + proj)

        # post-norm residual + relu-FFN (PyTorch TransformerEncoderLayer default)
        x1 = _layer_norm(x + attn, ln1g_ref[l], ln1b_ref[l])
        ff = jnp.dot(x1.astype(bf16), w1_ref[l],
                     preferred_element_type=jnp.float32) + b1_ref[l]
        ff = jnp.maximum(ff, 0.0)                             # relu
        ff = jnp.dot(ff.astype(bf16), w2_ref[l],
                     preferred_element_type=jnp.float32) + b2_ref[l]
        x = _layer_norm(x1 + ff, ln2g_ref[l], ln2b_ref[l])

    # ---- classifier head on sequence position 0 of every batch element -----
    x_sc[...] = x
    x0 = x_sc[pl.ds(0, BB, stride=S), :]                      # rows {0, S, 2S, ...} -> (BB, D)

    h0 = jnp.dot(x0.astype(bf16), wdec_ref[...],
                 preferred_element_type=jnp.float32) + bdec_ref[...]      # (BB, H)
    # TODO(synk): dropout is eval-mode identity here (no RNG dropout in fwd).
    # (hidden, 1) matmul replaced by a VPU multiply + lane reduction.
    logit = jnp.sum(h0 * wout_ref[...], axis=-1, keepdims=True) + bout_ref[...]
    y_ref[...] = jax.nn.sigmoid(logit).astype(y_ref.dtype)


# ------------------------------- wrappers ----------------------------------

def positional_encoding(seq_len, d_model):
    pos = np.arange(seq_len, dtype=np.float32)[:, None]
    div = np.exp(np.arange(0, d_model, 2, dtype=np.float32)
                 * (-math.log(10000.0) / d_model))
    pe = np.zeros((seq_len, d_model), dtype=np.float32)
    pe[:, 0::2] = np.sin(pos * div)
    pe[:, 1::2] = np.cos(pos * div)
    return jnp.asarray(pe)


def pack_params(params, nhead):
    """Stack per-layer weights along a leading layer axis; matmul weights -> bf16.
    The 1/sqrt(dh) attention scale is folded into the Q projection (weights+bias)."""
    ls = params["layers"]
    d_model = params["w_dec"].shape[0]
    dh = d_model // nhead
    scale = 1.0 / math.sqrt(dh)

    def stack(key):
        return jnp.stack([lp[key] for lp in ls], axis=0)

    wqkv = jnp.concatenate([stack("wq") * scale, stack("wk"), stack("wv")], axis=-1)
    bqkv = jnp.concatenate([stack("bq") * scale, stack("bk"), stack("bv")], axis=-1)
    return dict(
        wqkv=wqkv.astype(jnp.bfloat16),                 # (L, D, 3D)
        bqkv=bqkv.astype(jnp.float32),                  # (L, 1, 3D)
        wo=stack("wo").astype(jnp.bfloat16),            # (L, D, D)
        bo=stack("bo").astype(jnp.float32),             # (L, 1, D)
        ln1_g=stack("ln1_g"), ln1_b=stack("ln1_b"),
        w1=stack("w1").astype(jnp.bfloat16), b1=stack("b1"),
        w2=stack("w2").astype(jnp.bfloat16), b2=stack("b2"),
        ln2_g=stack("ln2_g"), ln2_b=stack("ln2_b"),
        w_dec=params["w_dec"].astype(jnp.bfloat16),     # (D, H)
        b_dec=params["b_dec"],                          # (1, H)
        w_out=params["w_out"].T.astype(jnp.float32),    # (1, H)  VPU-reduction head
        b_out=params["b_out"],                          # (1, 1)
    )


def chef_classifier_forward(claims_ebd, evidences_ebd, params, z=None, nhead=2,
                            batch_block=None):
    """claims_ebd: (B, Lc, D); evidences_ebd: (B, Le, D); z: optional (B, Le)."""
    if z is not None:
        evidences_ebd = evidences_ebd * z[..., None]
    x = jnp.concatenate([claims_ebd, evidences_ebd], axis=1)        # (B, S, D)
    B, S, D = x.shape
    assert D % nhead == 0

    p = pack_params(params, nhead)

    # 'parallel' batch-block grid axis: size 1 at small B, shards across the
    # two v7x TensorCores when B is large (batch_block must then be a multiple
    # of 8 so the (batch_block, 1) output block satisfies the (8, 128) rule).
    if batch_block is None:
        batch_block = B
    assert B % batch_block == 0
    assert batch_block == B or batch_block % 8 == 0
    nb = B // batch_block

    x2d = x.reshape(B * S, D).astype(jnp.float32)                   # (B*S, D)
    pe = positional_encoding(S, D)                                  # (S, D), tiled in-kernel

    def resident(a):   # same full block every grid step (stays VMEM-resident)
        nd = a.ndim
        return pl.BlockSpec(a.shape, lambda b, nd=nd: (0,) * nd)

    weights = [p["wqkv"], p["bqkv"], p["wo"], p["bo"],
               p["ln1_g"], p["ln1_b"],
               p["w1"], p["b1"], p["w2"], p["b2"],
               p["ln2_g"], p["ln2_b"],
               p["w_dec"], p["b_dec"], p["w_out"], p["b_out"]]

    in_specs = ([pl.BlockSpec((batch_block * S, D), lambda b: (b, 0)),
                 resident(pe)]
                + [resident(a) for a in weights])
    out_spec = pl.BlockSpec((batch_block, 1), lambda b: (b, 0))

    return pl.pallas_call(
        partial(fused_chef_kernel, nhead=nhead, seq=S),
        grid=(nb,),
        in_specs=in_specs,
        out_specs=out_spec,
        out_shape=jax.ShapeDtypeStruct((B, 1), jnp.float32),
        scratch_shapes=[pltpu.VMEM((batch_block * S, D), jnp.float32)],
        compiler_params=pltpu.CompilerParams(
            dimension_semantics=("parallel",),
            vmem_limit_bytes=32 * 1024 * 1024),
    )(x2d, pe, *weights)


# --------------------------- parameter creation ----------------------------

def init_params(key, d_model, ff_dim, hidden, nlayers, out_dim=1):
    keys = jax.random.split(key, nlayers * 6 + 2)
    ki = iter(keys)

    def lin(k, fan_in, fan_out):
        bound = 1.0 / math.sqrt(fan_in)
        kw, kb = jax.random.split(k)
        w = jax.random.uniform(kw, (fan_in, fan_out), jnp.float32, -bound, bound)
        b = jax.random.uniform(kb, (1, fan_out), jnp.float32, -bound, bound)
        return w, b

    layers = []
    for _ in range(nlayers):
        wq, bq = lin(next(ki), d_model, d_model)
        wk, bk = lin(next(ki), d_model, d_model)
        wv, bv = lin(next(ki), d_model, d_model)
        wo, bo = lin(next(ki), d_model, d_model)
        w1, b1 = lin(next(ki), d_model, ff_dim)
        w2, b2 = lin(next(ki), ff_dim, d_model)
        layers.append(dict(
            wq=wq, bq=bq, wk=wk, bk=bk, wv=wv, bv=bv, wo=wo, bo=bo,
            ln1_g=jnp.ones((1, d_model), jnp.float32),
            ln1_b=jnp.zeros((1, d_model), jnp.float32),
            w1=w1, b1=b1, w2=w2, b2=b2,
            ln2_g=jnp.ones((1, d_model), jnp.float32),
            ln2_b=jnp.zeros((1, d_model), jnp.float32),
        ))
    w_dec, b_dec = lin(next(ki), d_model, hidden)
    w_out, b_out = lin(next(ki), hidden, out_dim)
    return dict(layers=layers, w_dec=w_dec, b_dec=b_dec, w_out=w_out, b_out=b_out)


# ---------------------------------- main -----------------------------------

if __name__ == "__main__":
    # Small, lane-friendly shapes consistent with the module (d_model multiple of 128).
    B, Lc, Le = 2, 4, 4
    D, nhead, ff_dim, hidden, nlayers = 128, 2, 256, 128, 2

    key = jax.random.PRNGKey(0)
    kc, ke = jax.random.split(key)
    claims_ebd = jax.random.normal(kc, (B, Lc, D), jnp.float32)
    evidences_ebd = jax.random.normal(ke, (B, Le, D), jnp.float32)

    params = init_params(jax.random.PRNGKey(1), D, ff_dim, hidden, nlayers)

    y = chef_classifier_forward(claims_ebd, evidences_ebd, params, z=None, nhead=nhead)
    y = jax.block_until_ready(y)
    assert y.shape == (B, 1)
    assert bool(jnp.all(jnp.isfinite(y)))
    assert bool(jnp.all((y >= 0.0) & (y <= 1.0)))
    print("KERNEL_OK")
</pallas_src>

<mosaic_0001>
module attributes {stable_mosaic.version = 11 : i64} {
  func.func @fused_chef_kernel(%arg0: i32, %arg1: memref<16x128xf32, #tpu.memory_space<vmem>>, %arg2: memref<8x128xf32, #tpu.memory_space<vmem>>, %arg3: memref<2x128x384xbf16, #tpu.memory_space<vmem>>, %arg4: memref<2x1x384xf32, #tpu.memory_space<vmem>>, %arg5: memref<2x128x128xbf16, #tpu.memory_space<vmem>>, %arg6: memref<2x1x128xf32, #tpu.memory_space<vmem>>, %arg7: memref<2x1x128xf32, #tpu.memory_space<vmem>>, %arg8: memref<2x1x128xf32, #tpu.memory_space<vmem>>, %arg9: memref<2x128x256xbf16, #tpu.memory_space<vmem>>, %arg10: memref<2x1x256xf32, #tpu.memory_space<vmem>>, %arg11: memref<2x256x128xbf16, #tpu.memory_space<vmem>>, %arg12: memref<2x1x128xf32, #tpu.memory_space<vmem>>, %arg13: memref<2x1x128xf32, #tpu.memory_space<vmem>>, %arg14: memref<2x1x128xf32, #tpu.memory_space<vmem>>, %arg15: memref<128x128xbf16, #tpu.memory_space<vmem>>, %arg16: memref<1x128xf32, #tpu.memory_space<vmem>>, %arg17: memref<1x128xf32, #tpu.memory_space<vmem>>, %arg18: memref<1x1xf32, #tpu.memory_space<vmem>>, %arg19: memref<2x1xf32, #tpu.memory_space<vmem>>, %arg20: memref<16x128xf32, #tpu.memory_space<vmem>>) attributes {dimension_semantics = [#tpu.dimension_semantics<parallel>], iteration_bounds = array<i64: 1>, scalar_prefetch = 0 : i64, scratch_operands = 1 : i64, tpu.core_type = #tpu.core_type<tc>, window_params = [{transform_indices = @transform_0, window_bounds = array<i64: 16, 128>}, {pipeline_mode = #tpu.pipeline_mode<synchronous>, transform_indices = @transform_1, window_bounds = array<i64: 8, 128>}, {pipeline_mode = #tpu.pipeline_mode<synchronous>, transform_indices = @transform_2, window_bounds = array<i64: 2, 128, 384>}, {pipeline_mode = #tpu.pipeline_mode<synchronous>, transform_indices = @transform_3, window_bounds = array<i64: 2, 1, 384>}, {pipeline_mode = #tpu.pipeline_mode<synchronous>, transform_indices = @transform_4, window_bounds = array<i64: 2, 128, 128>}, {pipeline_mode = #tpu.pipeline_mode<synchronous>, transform_indices = @transform_5, window_bounds = array<i64: 2, 1, 128>}, {pipeline_mode = #tpu.pipeline_mode<synchronous>, transform_indices = @transform_6, window_bounds = array<i64: 2, 1, 128>}, {pipeline_mode = #tpu.pipeline_mode<synchronous>, transform_indices = @transform_7, window_bounds = array<i64: 2, 1, 128>}, {pipeline_mode = #tpu.pipeline_mode<synchronous>, transform_indices = @transform_8, window_bounds = array<i64: 2, 128, 256>}, {pipeline_mode = #tpu.pipeline_mode<synchronous>, transform_indices = @transform_9, window_bounds = array<i64: 2, 1, 256>}, {pipeline_mode = #tpu.pipeline_mode<synchronous>, transform_indices = @transform_10, window_bounds = array<i64: 2, 256, 128>}, {pipeline_mode = #tpu.pipeline_mode<synchronous>, transform_indices = @transform_11, window_bounds = array<i64: 2, 1, 128>}, {pipeline_mode = #tpu.pipeline_mode<synchronous>, transform_indices = @transform_12, window_bounds = array<i64: 2, 1, 128>}, {pipeline_mode = #tpu.pipeline_mode<synchronous>, transform_indices = @transform_13, window_bounds = array<i64: 2, 1, 128>}, {pipeline_mode = #tpu.pipeline_mode<synchronous>, transform_indices = @transform_14, window_bounds = array<i64: 128, 128>}, {pipeline_mode = #tpu.pipeline_mode<synchronous>, transform_indices = @transform_15, window_bounds = array<i64: 1, 128>}, {pipeline_mode = #tpu.pipeline_mode<synchronous>, transform_indices = @transform_16, window_bounds = array<i64: 1, 128>}, {pipeline_mode = #tpu.pipeline_mode<synchronous>, transform_indices = @transform_17, window_bounds = array<i64: 1, 1>}, {transform_indices = @transform_18, window_bounds = array<i64: 2, 1>}]} {
    %c0 = arith.constant 0 : index
    %c0_0 = arith.constant 0 : index
    %0 = vector.load %arg2[%c0, %c0_0] : memref<8x128xf32, #tpu.memory_space<vmem>>, vector<8x128xf32>
    %1 = tpu.concatenate %0, %0 in 0 : vector<8x128xf32>, vector<8x128xf32> -> vector<16x128xf32>
    %c0_1 = arith.constant 0 : index
    %c0_2 = arith.constant 0 : index
    %2 = vector.load %arg1[%c0_1, %c0_2] : memref<16x128xf32, #tpu.memory_space<vmem>>, vector<16x128xf32>
    %cst = arith.constant 11.3137083 : f32
    %3 = vector.broadcast %cst : f32 to vector<16x128xf32>
    %4 = arith.mulf %2, %3 : vector<16x128xf32>
    %5 = arith.addf %4, %1 : vector<16x128xf32>
    %c0_3 = arith.constant 0 : index
    %c0_4 = arith.constant 0 : index
    %c0_5 = arith.constant 0 : index
    %6 = vector.load %arg3[%c0_3, %c0_4, %c0_5] : memref<2x128x384xbf16, #tpu.memory_space<vmem>>, vector<1x128x384xbf16>
    %7 = vector.shape_cast %6 : vector<1x128x384xbf16> to vector<128x384xbf16>
    %8 = arith.truncf %5 : vector<16x128xf32> to vector<16x128xbf16>
    %cst_6 = arith.constant dense<0.000000e+00> : vector<16x384xf32>
    %9 = tpu.matmul %8, %7, %cst_6 {dimension_numbers = #tpu.dot_dimension_numbers<[1], [0], [0], [1], [0, 0, 1, 1], [], []>} : vector<16x128xbf16>, vector<128x384xbf16>, vector<16x384xf32> -> vector<16x384xf32>
    %c0_7 = arith.constant 0 : index
    %c0_8 = arith.constant 0 : index
    %c0_9 = arith.constant 0 : index
    %10 = vector.load %arg4[%c0_7, %c0_8, %c0_9] : memref<2x1x384xf32, #tpu.memory_space<vmem>>, vector<1x1x384xf32>
    %11 = vector.shape_cast %10 : vector<1x1x384xf32> to vector<1x384xf32>
    %12 = vector.broadcast %11 : vector<1x384xf32> to vector<16x384xf32>
    %13 = arith.addf %9, %12 : vector<16x384xf32>
    %c0_10 = arith.constant 0 : index
    %c0_11 = arith.constant 0 : index
    %c0_12 = arith.constant 0 : index
    %14 = vector.load %arg5[%c0_10, %c0_11, %c0_12] : memref<2x128x128xbf16, #tpu.memory_space<vmem>>, vector<1x128x128xbf16>
    %15 = vector.shape_cast %14 : vector<1x128x128xbf16> to vector<128x128xbf16>
    %16 = vector.extract_strided_slice %13 {offsets = [0, 0], sizes = [16, 64], strides = [1, 1]} : vector<16x384xf32> to vector<16x64xf32>
    %17 = vector.shape_cast %16 : vector<16x64xf32> to vector<2x8x64xf32>
    %18 = vector.extract_strided_slice %13 {offsets = [0, 128], sizes = [16, 64], strides = [1, 1]} : vector<16x384xf32> to vector<16x64xf32>
    %19 = vector.shape_cast %18 : vector<16x64xf32> to vector<2x8x64xf32>
    %20 = vector.extract_strided_slice %13 {offsets = [0, 256], sizes = [16, 64], strides = [1, 1]} : vector<16x384xf32> to vector<16x64xf32>
    %21 = vector.shape_cast %20 : vector<16x64xf32> to vector<2x8x64xf32>
    %22 = arith.truncf %17 : vector<2x8x64xf32> to vector<2x8x64xbf16>
    %23 = arith.truncf %19 : vector<2x8x64xf32> to vector<2x8x64xbf16>
    "tpu.trace_start"() <{level = 10 : i32, message = "bqd,bkd->bqk"}> : () -> ()
    %cst_13 = arith.constant dense<0.000000e+00> : vector<2x8x8xf32>
    %24 = tpu.matmul %22, %23, %cst_13 {dimension_numbers = #tpu.dot_dimension_numbers<[2], [2], [1], [1], [0, 0, 0, 1, 1, 1], [0], [0]>} : vector<2x8x64xbf16>, vector<2x8x64xbf16>, vector<2x8x8xf32> -> vector<2x8x8xf32>
    "tpu.trace_stop"() : () -> ()
    %cst_14 = arith.constant dense<0xFF800000> : vector<2x8xf32>
    %25 = vector.multi_reduction <maximumf>, %24, %cst_14 [2] : vector<2x8x8xf32> to vector<2x8xf32>
    %26 = vector.shape_cast %25 : vector<2x8xf32> to vector<2x8x1xf32>
    %27 = vector.broadcast %26 : vector<2x8x1xf32> to vector<2x8x8xf32>
    %28 = arith.subf %24, %27 : vector<2x8x8xf32>
    %29 = math.exp %28 : vector<2x8x8xf32>
    %cst_15 = arith.constant dense<0.000000e+00> : vector<2x8xf32>
    %30 = vector.multi_reduction <add>, %29, %cst_15 [2] : vector<2x8x8xf32> to vector<2x8xf32>
    %31 = vector.shape_cast %30 : vector<2x8xf32> to vector<2x8x1xf32>
    %32 = tpu.reciprocal %31 {approx = true} : vector<2x8x1xf32> -> vector<2x8x1xf32>
    %33 = vector.broadcast %32 : vector<2x8x1xf32> to vector<2x8x8xf32>
    %34 = arith.mulf %29, %33 : vector<2x8x8xf32>
    %35 = arith.truncf %34 : vector<2x8x8xf32> to vector<2x8x8xbf16>
    %36 = arith.truncf %21 : vector<2x8x64xf32> to vector<2x8x64xbf16>
    "tpu.trace_start"() <{level = 10 : i32, message = "bqk,bkd->bqd"}> : () -> ()
    %cst_16 = arith.constant dense<0.000000e+00> : vector<2x8x64xf32>
    %37 = tpu.matmul %35, %36, %cst_16 {dimension_numbers = #tpu.dot_dimension_numbers<[2], [1], [1], [2], [0, 0, 0, 1, 1, 2], [0], [0]>} : vector<2x8x8xbf16>, vector<2x8x64xbf16>, vector<2x8x64xf32> -> vector<2x8x64xf32>
    "tpu.trace_stop"() : () -> ()
    %38 = vector.shape_cast %37 : vector<2x8x64xf32> to vector<16x64xf32>
    %39 = arith.truncf %38 : vector<16x64xf32> to vector<16x64xbf16>
    %40 = vector.extract_strided_slice %15 {offsets = [0, 0], sizes = [64, 128], strides = [1, 1]} : vector<128x128xbf16> to vector<64x128xbf16>
    %cst_17 = arith.constant dense<0.000000e+00> : vector<16x128xf32>
    %41 = tpu.matmul %39, %40, %cst_17 {dimension_numbers = #tpu.dot_dimension_numbers<[1], [0], [0], [1], [0, 0, 1, 1], [], []>} : vector<16x64xbf16>, vector<64x128xbf16>, vector<16x128xf32> -> vector<16x128xf32>
    %c0_18 = arith.constant 0 : index
    %c0_19 = arith.constant 0 : index
    %c0_20 = arith.constant 0 : index
    %42 = vector.load %arg6[%c0_18, %c0_19, %c0_20] : memref<2x1x128xf32, #tpu.memory_space<vmem>>, vector<1x1x128xf32>
    %43 = vector.shape_cast %42 : vector<1x1x128xf32> to vector<1x128xf32>
    %44 = vector.broadcast %43 : vector<1x128xf32> to vector<16x128xf32>
    %45 = arith.addf %41, %44 : vector<16x128xf32>
    %46 = vector.extract_strided_slice %13 {offsets = [0, 64], sizes = [16, 64], strides = [1, 1]} : vector<16x384xf32> to vector<16x64xf32>
    %47 = vector.shape_cast %46 : vector<16x64xf32> to vector<2x8x64xf32>
    %48 = vector.extract_strided_slice %13 {offsets = [0, 192], sizes = [16, 64], strides = [1, 1]} : vector<16x384xf32> to vector<16x64xf32>
    %49 = vector.shape_cast %48 : vector<16x64xf32> to vector<2x8x64xf32>
    %50 = vector.extract_strided_slice %13 {offsets = [0, 320], sizes = [16, 64], strides = [1, 1]} : vector<16x384xf32> to vector<16x64xf32>
    %51 = vector.shape_cast %50 : vector<16x64xf32> to vector<2x8x64xf32>
    %52 = arith.truncf %47 : vector<2x8x64xf32> to vector<2x8x64xbf16>
    %53 = arith.truncf %49 : vector<2x8x64xf32> to vector<2x8x64xbf16>
    "tpu.trace_start"() <{level = 10 : i32, message = "bqd,bkd->bqk"}> : () -> ()
    %cst_21 = arith.constant dense<0.000000e+00> : vector<2x8x8xf32>
    %54 = tpu.matmul %52, %53, %cst_21 {dimension_numbers = #tpu.dot_dimension_numbers<[2], [2], [1], [1], [0, 0, 0, 1, 1, 1], [0], [0]>} : vector<2x8x64xbf16>, vector<2x8x64xbf16>, vector<2x8x8xf32> -> vector<2x8x8xf32>
    "tpu.trace_stop"() : () -> ()
    %cst_22 = arith.constant dense<0xFF800000> : vector<2x8xf32>
    %55 = vector.multi_reduction <maximumf>, %54, %cst_22 [2] : vector<2x8x8xf32> to vector<2x8xf32>
    %56 = vector.shape_cast %55 : vector<2x8xf32> to vector<2x8x1xf32>
    %57 = vector.broadcast %56 : vector<2x8x1xf32> to vector<2x8x8xf32>
    %58 = arith.subf %54, %57 : vector<2x8x8xf32>
    %59 = math.exp %58 : vector<2x8x8xf32>
    %cst_23 = arith.constant dense<0.000000e+00> : vector<2x8xf32>
    %60 = vector.multi_reduction <add>, %59, %cst_23 [2] : vector<2x8x8xf32> to vector<2x8xf32>
    %61 = vector.shape_cast %60 : vector<2x8xf32> to vector<2x8x1xf32>
    %62 = tpu.reciprocal %61 {approx = true} : vector<2x8x1xf32> -> vector<2x8x1xf32>
    %63 = vector.broadcast %62 : vector<2x8x1xf32> to vector<2x8x8xf32>
    %64 = arith.mulf %59, %63 : vector<2x8x8xf32>
    %65 = arith.truncf %64 : vector<2x8x8xf32> to vector<2x8x8xbf16>
    %66 = arith.truncf %51 : vector<2x8x64xf32> to vector<2x8x64xbf16>
    "tpu.trace_start"() <{level = 10 : i32, message = "bqk,bkd->bqd"}> : () -> ()
    %cst_24 = arith.constant dense<0.000000e+00> : vector<2x8x64xf32>
    %67 = tpu.matmul %65, %66, %cst_24 {dimension_numbers = #tpu.dot_dimension_numbers<[2], [1], [1], [2], [0, 0, 0, 1, 1, 2], [0], [0]>} : vector<2x8x8xbf16>, vector<2x8x64xbf16>, vector<2x8x64xf32> -> vector<2x8x64xf32>
    "tpu.trace_stop"() : () -> ()
    %68 = vector.shape_cast %67 : vector<2x8x64xf32> to vector<16x64xf32>
    %69 = arith.truncf %68 : vector<16x64xf32> to vector<16x64xbf16>
    %70 = vector.extract_strided_slice %15 {offsets = [64, 0], sizes = [64, 128], strides = [1, 1]} : vector<128x128xbf16> to vector<64x128xbf16>
    %cst_25 = arith.constant dense<0.000000e+00> : vector<16x128xf32>
    %71 = tpu.matmul %69, %70, %cst_25 {dimension_numbers = #tpu.dot_dimension_numbers<[1], [0], [0], [1], [0, 0, 1, 1], [], []>} : vector<16x64xbf16>, vector<64x128xbf16>, vector<16x128xf32> -> vector<16x128xf32>
    %72 = arith.addf %45, %71 : vector<16x128xf32>
    %73 = arith.addf %5, %72 : vector<16x128xf32>
    %c0_26 = arith.constant 0 : index
    %c0_27 = arith.constant 0 : index
    %c0_28 = arith.constant 0 : index
    %74 = vector.load %arg7[%c0_26, %c0_27, %c0_28] : memref<2x1x128xf32, #tpu.memory_space<vmem>>, vector<1x1x128xf32>
    %75 = vector.shape_cast %74 : vector<1x1x128xf32> to vector<1x128xf32>
    %c0_29 = arith.constant 0 : index
    %c0_30 = arith.constant 0 : index
    %c0_31 = arith.constant 0 : index
    %76 = vector.load %arg8[%c0_29, %c0_30, %c0_31] : memref<2x1x128xf32, #tpu.memory_space<vmem>>, vector<1x1x128xf32>
    %77 = vector.shape_cast %76 : vector<1x1x128xf32> to vector<1x128xf32>
    %cst_32 = arith.constant dense<0.000000e+00> : vector<16xf32>
    %78 = vector.multi_reduction <add>, %73, %cst_32 [1] : vector<16x128xf32> to vector<16xf32>
    %79 = vector.shape_cast %78 : vector<16xf32> to vector<16x1xf32>
    %cst_33 = arith.constant 1.280000e+02 : f32
    %80 = vector.broadcast %cst_33 : f32 to vector<16x1xf32>
    %81 = arith.divf %79, %80 : vector<16x1xf32>
    %82 = vector.broadcast %81 : vector<16x1xf32> to vector<16x128xf32>
    %83 = arith.subf %73, %82 : vector<16x128xf32>
    %84 = arith.mulf %83, %83 : vector<16x128xf32>
    %cst_34 = arith.constant dense<0.000000e+00> : vector<16xf32>
    %85 = vector.multi_reduction <add>, %84, %cst_34 [1] : vector<16x128xf32> to vector<16xf32>
    %86 = vector.shape_cast %85 : vector<16xf32> to vector<16x1xf32>
    %cst_35 = arith.constant 1.280000e+02 : f32
    %87 = vector.broadcast %cst_35 : f32 to vector<16x1xf32>
    %88 = arith.divf %86, %87 : vector<16x1xf32>
    %89 = vector.broadcast %81 : vector<16x1xf32> to vector<16x128xf32>
    %90 = arith.subf %73, %89 : vector<16x128xf32>
    %cst_36 = arith.constant 9.99999974E-6 : f32
    %91 = vector.broadcast %cst_36 : f32 to vector<16x1xf32>
    %92 = arith.addf %88, %91 : vector<16x1xf32>
    %93 = math.rsqrt %92 : vector<16x1xf32>
    %94 = vector.broadcast %93 : vector<16x1xf32> to vector<16x128xf32>
    %95 = arith.mulf %90, %94 : vector<16x128xf32>
    %96 = vector.broadcast %75 : vector<1x128xf32> to vector<16x128xf32>
    %97 = arith.mulf %95, %96 : vector<16x128xf32>
    %98 = vector.broadcast %77 : vector<1x128xf32> to vector<16x128xf32>
    %99 = arith.addf %97, %98 : vector<16x128xf32>
    %100 = arith.truncf %99 : vector<16x128xf32> to vector<16x128xbf16>
    %c0_37 = arith.constant 0 : index
    %c0_38 = arith.constant 0 : index
    %c0_39 = arith.constant 0 : index
    %101 = vector.load %arg9[%c0_37, %c0_38, %c0_39] : memref<2x128x256xbf16, #tpu.memory_space<vmem>>, vector<1x128x256xbf16>
    %102 = vector.shape_cast %101 : vector<1x128x256xbf16> to vector<128x256xbf16>
    %cst_40 = arith.constant dense<0.000000e+00> : vector<16x256xf32>
    %103 = tpu.matmul %100, %102, %cst_40 {dimension_numbers = #tpu.dot_dimension_numbers<[1], [0], [0], [1], [0, 0, 1, 1], [], []>} : vector<16x128xbf16>, vector<128x256xbf16>, vector<16x256xf32> -> vector<16x256xf32>
    %c0_41 = arith.constant 0 : index
    %c0_42 = arith.constant 0 : index
    %c0_43 = arith.constant 0 : index
    %104 = vector.load %arg10[%c0_41, %c0_42, %c0_43] : memref<2x1x256xf32, #tpu.memory_space<vmem>>, vector<1x1x256xf32>
    %105 = vector.shape_cast %104 : vector<1x1x256xf32> to vector<1x256xf32>
    %106 = vector.broadcast %105 : vector<1x256xf32> to vector<16x256xf32>
    %107 = arith.addf %103, %106 : vector<16x256xf32>
    %cst_44 = arith.constant 0.000000e+00 : f32
    %108 = vector.broadcast %cst_44 : f32 to vector<16x256xf32>
    %109 = arith.maximumf %107, %108 : vector<16x256xf32>
    %110 = arith.truncf %109 : vector<16x256xf32> to vector<16x256xbf16>
    %c0_45 = arith.constant 0 : index
    %c0_46 = arith.constant 0 : index
    %c0_47 = arith.constant 0 : index
    %111 = vector.load %arg11[%c0_45, %c0_46, %c0_47] : memref<2x256x128xbf16, #tpu.memory_space<vmem>>, vector<1x256x128xbf16>
    %112 = vector.shape_cast %111 : vector<1x256x128xbf16> to vector<256x128xbf16>
    %cst_48 = arith.constant dense<0.000000e+00> : vector<16x128xf32>
    %113 = tpu.matmul %110, %112, %cst_48 {dimension_numbers = #tpu.dot_dimension_numbers<[1], [0], [0], [1], [0, 0, 1, 1], [], []>} : vector<16x256xbf16>, vector<256x128xbf16>, vector<16x128xf32> -> vector<16x128xf32>
    %c0_49 = arith.constant 0 : index
    %c0_50 = arith.constant 0 : index
    %c0_51 = arith.constant 0 : index
    %114 = vector.load %arg12[%c0_49, %c0_50, %c0_51] : memref<2x1x128xf32, #tpu.memory_space<vmem>>, vector<1x1x128xf32>
    %115 = vector.shape_cast %114 : vector<1x1x128xf32> to vector<1x128xf32>
    %116 = vector.broadcast %115 : vector<1x128xf32> to vector<16x128xf32>
    %117 = arith.addf %113, %116 : vector<16x128xf32>
    %118 = arith.addf %99, %117 : vector<16x128xf32>
    %c0_52 = arith.constant 0 : index
    %c0_53 = arith.constant 0 : index
    %c0_54 = arith.constant 0 : index
    %119 = vector.load %arg13[%c0_52, %c0_53, %c0_54] : memref<2x1x128xf32, #tpu.memory_space<vmem>>, vector<1x1x128xf32>
    %120 = vector.shape_cast %119 : vector<1x1x128xf32> to vector<1x128xf32>
    %c0_55 = arith.constant 0 : index
    %c0_56 = arith.constant 0 : index
    %c0_57 = arith.constant 0 : index
    %121 = vector.load %arg14[%c0_55, %c0_56, %c0_57] : memref<2x1x128xf32, #tpu.memory_space<vmem>>, vector<1x1x128xf32>
    %122 = vector.shape_cast %121 : vector<1x1x128xf32> to vector<1x128xf32>
    %cst_58 = arith.constant dense<0.000000e+00> : vector<16xf32>
    %123 = vector.multi_reduction <add>, %118, %cst_58 [1] : vector<16x128xf32> to vector<16xf32>
    %124 = vector.shape_cast %123 : vector<16xf32> to vector<16x1xf32>
    %cst_59 = arith.constant 1.280000e+02 : f32
    %125 = vector.broadcast %cst_59 : f32 to vector<16x1xf32>
    %126 = arith.divf %124, %125 : vector<16x1xf32>
    %127 = vector.broadcast %126 : vector<16x1xf32> to vector<16x128xf32>
    %128 = arith.subf %118, %127 : vector<16x128xf32>
    %129 = arith.mulf %128, %128 : vector<16x128xf32>
    %cst_60 = arith.constant dense<0.000000e+00> : vector<16xf32>
    %130 = vector.multi_reduction <add>, %129, %cst_60 [1] : vector<16x128xf32> to vector<16xf32>
    %131 = vector.shape_cast %130 : vector<16xf32> to vector<16x1xf32>
    %cst_61 = arith.constant 1.280000e+02 : f32
    %132 = vector.broadcast %cst_61 : f32 to vector<16x1xf32>
    %133 = arith.divf %131, %132 : vector<16x1xf32>
    %134 = vector.broadcast %126 : vector<16x1xf32> to vector<16x128xf32>
    %135 = arith.subf %118, %134 : vector<16x128xf32>
    %cst_62 = arith.constant 9.99999974E-6 : f32
    %136 = vector.broadcast %cst_62 : f32 to vector<16x1xf32>
    %137 = arith.addf %133, %136 : vector<16x1xf32>
    %138 = math.rsqrt %137 : vector<16x1xf32>
    %139 = vector.broadcast %138 : vector<16x1xf32> to vector<16x128xf32>
    %140 = arith.mulf %135, %139 : vector<16x128xf32>
    %141 = vector.broadcast %120 : vector<1x128xf32> to vector<16x128xf32>
    %142 = arith.mulf %140, %141 : vector<16x128xf32>
    %143 = vector.broadcast %122 : vector<1x128xf32> to vector<16x128xf32>
    %144 = arith.addf %142, %143 : vector<16x128xf32>
    %c1 = arith.constant 1 : index
    %c0_63 = arith.constant 0 : index
    %c0_64 = arith.constant 0 : index
    %145 = vector.load %arg3[%c1, %c0_63, %c0_64] : memref<2x128x384xbf16, #tpu.memory_space<vmem>>, vector<1x128x384xbf16>
    %146 = vector.shape_cast %145 : vector<1x128x384xbf16> to vector<128x384xbf16>
    %147 = arith.truncf %144 : vector<16x128xf32> to vector<16x128xbf16>
    %cst_65 = arith.constant dense<0.000000e+00> : vector<16x384xf32>
    %148 = tpu.matmul %147, %146, %cst_65 {dimension_numbers = #tpu.dot_dimension_numbers<[1], [0], [0], [1], [0, 0, 1, 1], [], []>} : vector<16x128xbf16>, vector<128x384xbf16>, vector<16x384xf32> -> vector<16x384xf32>
    %c1_66 = arith.constant 1 : index
    %c0_67 = arith.constant 0 : index
    %c0_68 = arith.constant 0 : index
    %149 = vector.load %arg4[%c1_66, %c0_67, %c0_68] : memref<2x1x384xf32, #tpu.memory_space<vmem>>, vector<1x1x384xf32>
    %150 = vector.shape_cast %149 : vector<1x1x384xf32> to vector<1x384xf32>
    %151 = vector.broadcast %150 : vector<1x384xf32> to vector<16x384xf32>
    %152 = arith.addf %148, %151 : vector<16x384xf32>
    %c1_69 = arith.constant 1 : index
    %c0_70 = arith.constant 0 : index
    %c0_71 = arith.constant 0 : index
    %153 = vector.load %arg5[%c1_69, %c0_70, %c0_71] : memref<2x128x128xbf16, #tpu.memory_space<vmem>>, vector<1x128x128xbf16>
    %154 = vector.shape_cast %153 : vector<1x128x128xbf16> to vector<128x128xbf16>
    %155 = vector.extract_strided_slice %152 {offsets = [0, 0], sizes = [16, 64], strides = [1, 1]} : vector<16x384xf32> to vector<16x64xf32>
    %156 = vector.shape_cast %155 : vector<16x64xf32> to vector<2x8x64xf32>
    %157 = vector.extract_strided_slice %152 {offsets = [0, 128], sizes = [16, 64], strides = [1, 1]} : vector<16x384xf32> to vector<16x64xf32>
    %158 = vector.shape_cast %157 : vector<16x64xf32> to vector<2x8x64xf32>
    %159 = vector.extract_strided_slice %152 {offsets = [0, 256], sizes = [16, 64], strides = [1, 1]} : vector<16x384xf32> to vector<16x64xf32>
    %160 = vector.shape_cast %159 : vector<16x64xf32> to vector<2x8x64xf32>
    %161 = arith.truncf %156 : vector<2x8x64xf32> to vector<2x8x64xbf16>
    %162 = arith.truncf %158 : vector<2x8x64xf32> to vector<2x8x64xbf16>
    "tpu.trace_start"() <{level = 10 : i32, message = "bqd,bkd->bqk"}> : () -> ()
    %cst_72 = arith.constant dense<0.000000e+00> : vector<2x8x8xf32>
    %163 = tpu.matmul %161, %162, %cst_72 {dimension_numbers = #tpu.dot_dimension_numbers<[2], [2], [1], [1], [0, 0, 0, 1, 1, 1], [0], [0]>} : vector<2x8x64xbf16>, vector<2x8x64xbf16>, vector<2x8x8xf32> -> vector<2x8x8xf32>
    "tpu.trace_stop"() : () -> ()
    %cst_73 = arith.constant dense<0xFF800000> : vector<2x8xf32>
    %164 = vector.multi_reduction <maximumf>, %163, %cst_73 [2] : vector<2x8x8xf32> to vector<2x8xf32>
    %165 = vector.shape_cast %164 : vector<2x8xf32> to vector<2x8x1xf32>
    %166 = vector.broadcast %165 : vector<2x8x1xf32> to vector<2x8x8xf32>
    %167 = arith.subf %163, %166 : vector<2x8x8xf32>
    %168 = math.exp %167 : vector<2x8x8xf32>
    %cst_74 = arith.constant dense<0.000000e+00> : vector<2x8xf32>
    %169 = vector.multi_reduction <add>, %168, %cst_74 [2] : vector<2x8x8xf32> to vector<2x8xf32>
    %170 = vector.shape_cast %169 : vector<2x8xf32> to vector<2x8x1xf32>
    %171 = tpu.reciprocal %170 {approx = true} : vector<2x8x1xf32> -> vector<2x8x1xf32>
    %172 = vector.broadcast %171 : vector<2x8x1xf32> to vector<2x8x8xf32>
    %173 = arith.mulf %168, %172 : vector<2x8x8xf32>
    %174 = arith.truncf %173 : vector<2x8x8xf32> to vector<2x8x8xbf16>
    %175 = arith.truncf %160 : vector<2x8x64xf32> to vector<2x8x64xbf16>
    "tpu.trace_start"() <{level = 10 : i32, message = "bqk,bkd->bqd"}> : () -> ()
    %cst_75 = arith.constant dense<0.000000e+00> : vector<2x8x64xf32>
    %176 = tpu.matmul %174, %175, %cst_75 {dimension_numbers = #tpu.dot_dimension_numbers<[2], [1], [1], [2], [0, 0, 0, 1, 1, 2], [0], [0]>} : vector<2x8x8xbf16>, vector<2x8x64xbf16>, vector<2x8x64xf32> -> vector<2x8x64xf32>
    "tpu.trace_stop"() : () -> ()
    %177 = vector.shape_cast %176 : vector<2x8x64xf32> to vector<16x64xf32>
    %178 = arith.truncf %177 : vector<16x64xf32> to vector<16x64xbf16>
    %179 = vector.extract_strided_slice %154 {offsets = [0, 0], sizes = [64, 128], strides = [1, 1]} : vector<128x128xbf16> to vector<64x128xbf16>
    %cst_76 = arith.constant dense<0.000000e+00> : vector<16x128xf32>
    %180 = tpu.matmul %178, %179, %cst_76 {dimension_numbers = #tpu.dot_dimension_numbers<[1], [0], [0], [1], [0, 0, 1, 1], [], []>} : vector<16x64xbf16>, vector<64x128xbf16>, vector<16x128xf32> -> vector<16x128xf32>
    %c1_77 = arith.constant 1 : index
    %c0_78 = arith.constant 0 : index
    %c0_79 = arith.constant 0 : index
    %181 = vector.load %arg6[%c1_77, %c0_78, %c0_79] : memref<2x1x128xf32, #tpu.memory_space<vmem>>, vector<1x1x128xf32>
    %182 = vector.shape_cast %181 : vector<1x1x128xf32> to vector<1x128xf32>
    %183 = vector.broadcast %182 : vector<1x128xf32> to vector<16x128xf32>
    %184 = arith.addf %180, %183 : vector<16x128xf32>
    %185 = vector.extract_strided_slice %152 {offsets = [0, 64], sizes = [16, 64], strides = [1, 1]} : vector<16x384xf32> to vector<16x64xf32>
    %186 = vector.shape_cast %185 : vector<16x64xf32> to vector<2x8x64xf32>
    %187 = vector.extract_strided_slice %152 {offsets = [0, 192], sizes = [16, 64], strides = [1, 1]} : vector<16x384xf32> to vector<16x64xf32>
    %188 = vector.shape_cast %187 : vector<16x64xf32> to vector<2x8x64xf32>
    %189 = vector.extract_strided_slice %152 {offsets = [0, 320], sizes = [16, 64], strides = [1, 1]} : vector<16x384xf32> to vector<16x64xf32>
    %190 = vector.shape_cast %189 : vector<16x64xf32> to vector<2x8x64xf32>
    %191 = arith.truncf %186 : vector<2x8x64xf32> to vector<2x8x64xbf16>
    %192 = arith.truncf %188 : vector<2x8x64xf32> to vector<2x8x64xbf16>
    "tpu.trace_start"() <{level = 10 : i32, message = "bqd,bkd->bqk"}> : () -> ()
    %cst_80 = arith.constant dense<0.000000e+00> : vector<2x8x8xf32>
    %193 = tpu.matmul %191, %192, %cst_80 {dimension_numbers = #tpu.dot_dimension_numbers<[2], [2], [1], [1], [0, 0, 0, 1, 1, 1], [0], [0]>} : vector<2x8x64xbf16>, vector<2x8x64xbf16>, vector<2x8x8xf32> -> vector<2x8x8xf32>
    "tpu.trace_stop"() : () -> ()
    %cst_81 = arith.constant dense<0xFF800000> : vector<2x8xf32>
    %194 = vector.multi_reduction <maximumf>, %193, %cst_81 [2] : vector<2x8x8xf32> to vector<2x8xf32>
    %195 = vector.shape_cast %194 : vector<2x8xf32> to vector<2x8x1xf32>
    %196 = vector.broadcast %195 : vector<2x8x1xf32> to vector<2x8x8xf32>
    %197 = arith.subf %193, %196 : vector<2x8x8xf32>
    %198 = math.exp %197 : vector<2x8x8xf32>
    %cst_82 = arith.constant dense<0.000000e+00> : vector<2x8xf32>
    %199 = vector.multi_reduction <add>, %198, %cst_82 [2] : vector<2x8x8xf32> to vector<2x8xf32>
    %200 = vector.shape_cast %199 : vector<2x8xf32> to vector<2x8x1xf32>
    %201 = tpu.reciprocal %200 {approx = true} : vector<2x8x1xf32> -> vector<2x8x1xf32>
    %202 = vector.broadcast %201 : vector<2x8x1xf32> to vector<2x8x8xf32>
    %203 = arith.mulf %198, %202 : vector<2x8x8xf32>
    %204 = arith.truncf %203 : vector<2x8x8xf32> to vector<2x8x8xbf16>
    %205 = arith.truncf %190 : vector<2x8x64xf32> to vector<2x8x64xbf16>
    "tpu.trace_start"() <{level = 10 : i32, message = "bqk,bkd->bqd"}> : () -> ()
    %cst_83 = arith.constant dense<0.000000e+00> : vector<2x8x64xf32>
    %206 = tpu.matmul %204, %205, %cst_83 {dimension_numbers = #tpu.dot_dimension_numbers<[2], [1], [1], [2], [0, 0, 0, 1, 1, 2], [0], [0]>} : vector<2x8x8xbf16>, vector<2x8x64xbf16>, vector<2x8x64xf32> -> vector<2x8x64xf32>
    "tpu.trace_stop"() : () -> ()
    %207 = vector.shape_cast %206 : vector<2x8x64xf32> to vector<16x64xf32>
    %208 = arith.truncf %207 : vector<16x64xf32> to vector<16x64xbf16>
    %209 = vector.extract_strided_slice %154 {offsets = [64, 0], sizes = [64, 128], strides = [1, 1]} : vector<128x128xbf16> to vector<64x128xbf16>
    %cst_84 = arith.constant dense<0.000000e+00> : vector<16x128xf32>
    %210 = tpu.matmul %208, %209, %cst_84 {dimension_numbers = #tpu.dot_dimension_numbers<[1], [0], [0], [1], [0, 0, 1, 1], [], []>} : vector<16x64xbf16>, vector<64x128xbf16>, vector<16x128xf32> -> vector<16x128xf32>
    %211 = arith.addf %184, %210 : vector<16x128xf32>
    %212 = arith.addf %144, %211 : vector<16x128xf32>
    %c1_85 = arith.constant 1 : index
    %c0_86 = arith.constant 0 : index
    %c0_87 = arith.constant 0 : index
    %213 = vector.load %arg7[%c1_85, %c0_86, %c0_87] : memref<2x1x128xf32, #tpu.memory_space<vmem>>, vector<1x1x128xf32>
    %214 = vector.shape_cast %213 : vector<1x1x128xf32> to vector<1x128xf32>
    %c1_88 = arith.constant 1 : index
    %c0_89 = arith.constant 0 : index
    %c0_90 = arith.constant 0 : index
    %215 = vector.load %arg8[%c1_88, %c0_89, %c0_90] : memref<2x1x128xf32, #tpu.memory_space<vmem>>, vector<1x1x128xf32>
    %216 = vector.shape_cast %215 : vector<1x1x128xf32> to vector<1x128xf32>
    %cst_91 = arith.constant dense<0.000000e+00> : vector<16xf32>
    %217 = vector.multi_reduction <add>, %212, %cst_91 [1] : vector<16x128xf32> to vector<16xf32>
    %218 = vector.shape_cast %217 : vector<16xf32> to vector<16x1xf32>
    %cst_92 = arith.constant 1.280000e+02 : f32
    %219 = vector.broadcast %cst_92 : f32 to vector<16x1xf32>
    %220 = arith.divf %218, %219 : vector<16x1xf32>
    %221 = vector.broadcast %220 : vector<16x1xf32> to vector<16x128xf32>
    %222 = arith.subf %212, %221 : vector<16x128xf32>
    %223 = arith.mulf %222, %222 : vector<16x128xf32>
    %cst_93 = arith.constant dense<0.000000e+00> : vector<16xf32>
    %224 = vector.multi_reduction <add>, %223, %cst_93 [1] : vector<16x128xf32> to vector<16xf32>
    %225 = vector.shape_cast %224 : vector<16xf32> to vector<16x1xf32>
    %cst_94 = arith.constant 1.280000e+02 : f32
    %226 = vector.broadcast %cst_94 : f32 to vector<16x1xf32>
    %227 = arith.divf %225, %226 : vector<16x1xf32>
    %228 = vector.broadcast %220 : vector<16x1xf32> to vector<16x128xf32>
    %229 = arith.subf %212, %228 : vector<16x128xf32>
    %cst_95 = arith.constant 9.99999974E-6 : f32
    %230 = vector.broadcast %cst_95 : f32 to vector<16x1xf32>
    %231 = arith.addf %227, %230 : vector<16x1xf32>
    %232 = math.rsqrt %231 : vector<16x1xf32>
    %233 = vector.broadcast %232 : vector<16x1xf32> to vector<16x128xf32>
    %234 = arith.mulf %229, %233 : vector<16x128xf32>
    %235 = vector.broadcast %214 : vector<1x128xf32> to vector<16x128xf32>
    %236 = arith.mulf %234, %235 : vector<16x128xf32>
    %237 = vector.broadcast %216 : vector<1x128xf32> to vector<16x128xf32>
    %238 = arith.addf %236, %237 : vector<16x128xf32>
    %239 = arith.truncf %238 : vector<16x128xf32> to vector<16x128xbf16>
    %c1_96 = arith.constant 1 : index
    %c0_97 = arith.constant 0 : index
    %c0_98 = arith.constant 0 : index
    %240 = vector.load %arg9[%c1_96, %c0_97, %c0_98] : memref<2x128x256xbf16, #tpu.memory_space<vmem>>, vector<1x128x256xbf16>
    %241 = vector.shape_cast %240 : vector<1x128x256xbf16> to vector<128x256xbf16>
    %cst_99 = arith.constant dense<0.000000e+00> : vector<16x256xf32>
    %242 = tpu.matmul %239, %241, %cst_99 {dimension_numbers = #tpu.dot_dimension_numbers<[1], [0], [0], [1], [0, 0, 1, 1], [], []>} : vector<16x128xbf16>, vector<128x256xbf16>, vector<16x256xf32> -> vector<16x256xf32>
    %c1_100 = arith.constant 1 : index
    %c0_101 = arith.constant 0 : index
    %c0_102 = arith.constant 0 : index
    %243 = vector.load %arg10[%c1_100, %c0_101, %c0_102] : memref<2x1x256xf32, #tpu.memory_space<vmem>>, vector<1x1x256xf32>
    %244 = vector.shape_cast %243 : vector<1x1x256xf32> to vector<1x256xf32>
    %245 = vector.broadcast %244 : vector<1x256xf32> to vector<16x256xf32>
    %246 = arith.addf %242, %245 : vector<16x256xf32>
    %cst_103 = arith.constant 0.000000e+00 : f32
    %247 = vector.broadcast %cst_103 : f32 to vector<16x256xf32>
    %248 = arith.maximumf %246, %247 : vector<16x256xf32>
    %249 = arith.truncf %248 : vector<16x256xf32> to vector<16x256xbf16>
    %c1_104 = arith.constant 1 : index
    %c0_105 = arith.constant 0 : index
    %c0_106 = arith.constant 0 : index
    %250 = vector.load %arg11[%c1_104, %c0_105, %c0_106] : memref<2x256x128xbf16, #tpu.memory_space<vmem>>, vector<1x256x128xbf16>
    %251 = vector.shape_cast %250 : vector<1x256x128xbf16> to vector<256x128xbf16>
    %cst_107 = arith.constant dense<0.000000e+00> : vector<16x128xf32>
    %252 = tpu.matmul %249, %251, %cst_107 {dimension_numbers = #tpu.dot_dimension_numbers<[1], [0], [0], [1], [0, 0, 1, 1], [], []>} : vector<16x256xbf16>, vector<256x128xbf16>, vector<16x128xf32> -> vector<16x128xf32>
    %c1_108 = arith.constant 1 : index
    %c0_109 = arith.constant 0 : index
    %c0_110 = arith.constant 0 : index
    %253 = vector.load %arg12[%c1_108, %c0_109, %c0_110] : memref<2x1x128xf32, #tpu.memory_space<vmem>>, vector<1x1x128xf32>
    %254 = vector.shape_cast %253 : vector<1x1x128xf32> to vector<1x128xf32>
    %255 = vector.broadcast %254 : vector<1x128xf32> to vector<16x128xf32>
    %256 = arith.addf %252, %255 : vector<16x128xf32>
    %257 = arith.addf %238, %256 : vector<16x128xf32>
    %c1_111 = arith.constant 1 : index
    %c0_112 = arith.constant 0 : index
    %c0_113 = arith.constant 0 : index
    %258 = vector.load %arg13[%c1_111, %c0_112, %c0_113] : memref<2x1x128xf32, #tpu.memory_space<vmem>>, vector<1x1x128xf32>
    %259 = vector.shape_cast %258 : vector<1x1x128xf32> to vector<1x128xf32>
    %c1_114 = arith.constant 1 : index
    %c0_115 = arith.constant 0 : index
    %c0_116 = arith.constant 0 : index
    %260 = vector.load %arg14[%c1_114, %c0_115, %c0_116] : memref<2x1x128xf32, #tpu.memory_space<vmem>>, vector<1x1x128xf32>
    %261 = vector.shape_cast %260 : vector<1x1x128xf32> to vector<1x128xf32>
    %cst_117 = arith.constant dense<0.000000e+00> : vector<16xf32>
    %262 = vector.multi_reduction <add>, %257, %cst_117 [1] : vector<16x128xf32> to vector<16xf32>
    %263 = vector.shape_cast %262 : vector<16xf32> to vector<16x1xf32>
    %cst_118 = arith.constant 1.280000e+02 : f32
    %264 = vector.broadcast %cst_118 : f32 to vector<16x1xf32>
    %265 = arith.divf %263, %264 : vector<16x1xf32>
    %266 = vector.broadcast %265 : vector<16x1xf32> to vector<16x128xf32>
    %267 = arith.subf %257, %266 : vector<16x128xf32>
    %268 = arith.mulf %267, %267 : vector<16x128xf32>
    %cst_119 = arith.constant dense<0.000000e+00> : vector<16xf32>
    %269 = vector.multi_reduction <add>, %268, %cst_119 [1] : vector<16x128xf32> to vector<16xf32>
    %270 = vector.shape_cast %269 : vector<16xf32> to vector<16x1xf32>
    %cst_120 = arith.constant 1.280000e+02 : f32
    %271 = vector.broadcast %cst_120 : f32 to vector<16x1xf32>
    %272 = arith.divf %270, %271 : vector<16x1xf32>
    %273 = vector.broadcast %265 : vector<16x1xf32> to vector<16x128xf32>
    %274 = arith.subf %257, %273 : vector<16x128xf32>
    %cst_121 = arith.constant 9.99999974E-6 : f32
    %275 = vector.broadcast %cst_121 : f32 to vector<16x1xf32>
    %276 = arith.addf %272, %275 : vector<16x1xf32>
    %277 = math.rsqrt %276 : vector<16x1xf32>
    %278 = vector.broadcast %277 : vector<16x1xf32> to vector<16x128xf32>
    %279 = arith.mulf %274, %278 : vector<16x128xf32>
    %280 = vector.broadcast %259 : vector<1x128xf32> to vector<16x128xf32>
    %281 = arith.mulf %279, %280 : vector<16x128xf32>
    %282 = vector.broadcast %261 : vector<1x128xf32> to vector<16x128xf32>
    %283 = arith.addf %281, %282 : vector<16x128xf32>
    %c0_122 = arith.constant 0 : index
    %c0_123 = arith.constant 0 : index
    %284 = vector.load %arg20[%c0_122, %c0_123] : memref<16x128xf32, #tpu.memory_space<vmem>>, vector<16x128xf32>
    tpu.vector_store %arg20[%c0_122, %c0_123], %283 {strides = array<i32>} : memref<16x128xf32, #tpu.memory_space<vmem>>, vector<16x128xf32>,
    %c0_124 = arith.constant 0 : index
    %c0_125 = arith.constant 0 : index
    %285 = tpu.strided_load %arg20[%c0_124, %c0_125] {strides = array<i32: 8, 1>} : memref<16x128xf32, #tpu.memory_space<vmem>>, vector<2x128xf32>
    %286 = arith.truncf %285 : vector<2x128xf32> to vector<2x128xbf16>
    %c0_126 = arith.constant 0 : index
    %c0_127 = arith.constant 0 : index
    %287 = vector.load %arg15[%c0_126, %c0_127] : memref<128x128xbf16, #tpu.memory_space<vmem>>, vector<128x128xbf16>
    %cst_128 = arith.constant dense<0.000000e+00> : vector<2x128xf32>
    %288 = tpu.matmul %286, %287, %cst_128 {dimension_numbers = #tpu.dot_dimension_numbers<[1], [0], [0], [1], [0, 0, 1, 1], [], []>} : vector<2x128xbf16>, vector<128x128xbf16>, vector<2x128xf32> -> vector<2x128xf32>
    %c0_129 = arith.constant 0 : index
    %c0_130 = arith.constant 0 : index
    %289 = vector.load %arg16[%c0_129, %c0_130] : memref<1x128xf32, #tpu.memory_space<vmem>>, vector<1x128xf32>
    %290 = vector.broadcast %289 : vector<1x128xf32> to vector<2x128xf32>
    %291 = arith.addf %288, %290 : vector<2x128xf32>
    %c0_131 = arith.constant 0 : index
    %c0_132 = arith.constant 0 : index
    %292 = vector.load %arg17[%c0_131, %c0_132] : memref<1x128xf32, #tpu.memory_space<vmem>>, vector<1x128xf32>
    %293 = vector.broadcast %292 : vector<1x128xf32> to vector<2x128xf32>
    %294 = arith.mulf %291, %293 : vector<2x128xf32>
    %cst_133 = arith.constant dense<0.000000e+00> : vector<2xf32>
    %295 = vector.multi_reduction <add>, %294, %cst_133 [1] : vector<2x128xf32> to vector<2xf32>
    %296 = vector.shape_cast %295 : vector<2xf32> to vector<2x1xf32>
    %c0_134 = arith.constant 0 : index
    %c0_135 = arith.constant 0 : index
    %297 = vector.load %arg18[%c0_134, %c0_135] : memref<1x1xf32, #tpu.memory_space<vmem>>, vector<1x1xf32>
    %298 = vector.broadcast %297 : vector<1x1xf32> to vector<2x1xf32>
    %299 = arith.addf %296, %298 : vector<2x1xf32>
    %300 = arith.negf %299 : vector<2x1xf32>
    %301 = math.exp %300 : vector<2x1xf32>
    %cst_136 = arith.constant 1.000000e+00 : f32
    %302 = vector.broadcast %cst_136 : f32 to vector<2x1xf32>
    %303 = arith.addf %302, %301 : vector<2x1xf32>
    %304 = arith.divf %302, %303 : vector<2x1xf32>
    %c0_137 = arith.constant 0 : index
    %c0_138 = arith.constant 0 : index
    %305 = vector.load %arg19[%c0_137, %c0_138] : memref<2x1xf32, #tpu.memory_space<vmem>>, vector<2x1xf32>
    tpu.vector_store %arg19[%c0_137, %c0_138], %304 {strides = array<i32>} : memref<2x1xf32, #tpu.memory_space<vmem>>, vector<2x1xf32>,
    return
  }
  func.func @transform_0(%arg0: i32) -> (i32, i32) {
    %c0_i32 = arith.constant 0 : i32
    %c0_i32_0 = arith.constant 0 : i32
    return %arg0, %c0_i32 : i32, i32
  }
  func.func @transform_1(%arg0: i32) -> (i32, i32) {
    %c0_i32 = arith.constant 0 : i32
    %c0_i32_0 = arith.constant 0 : i32
    %c0_i32_1 = arith.constant 0 : i32
    return %c0_i32, %c0_i32_0 : i32, i32
  }
  func.func @transform_2(%arg0: i32) -> (i32, i32, i32) {
    %c0_i32 = arith.constant 0 : i32
    %c0_i32_0 = arith.constant 0 : i32
    %c0_i32_1 = arith.constant 0 : i32
    %c0_i32_2 = arith.constant 0 : i32
    return %c0_i32, %c0_i32_0, %c0_i32_1 : i32, i32, i32
  }
  func.func @transform_3(%arg0: i32) -> (i32, i32, i32) {
    %c0_i32 = arith.constant 0 : i32
    %c0_i32_0 = arith.constant 0 : i32
    %c0_i32_1 = arith.constant 0 : i32
    %c0_i32_2 = arith.constant 0 : i32
    return %c0_i32, %c0_i32_0, %c0_i32_1 : i32, i32, i32
  }
  func.func @transform_4(%arg0: i32) -> (i32, i32, i32) {
    %c0_i32 = arith.constant 0 : i32
    %c0_i32_0 = arith.constant 0 : i32
    %c0_i32_1 = arith.constant 0 : i32
    %c0_i32_2 = arith.constant 0 : i32
    return %c0_i32, %c0_i32_0, %c0_i32_1 : i32, i32, i32
  }
  func.func @transform_5(%arg0: i32) -> (i32, i32, i32) {
    %c0_i32 = arith.constant 0 : i32
    %c0_i32_0 = arith.constant 0 : i32
    %c0_i32_1 = arith.constant 0 : i32
    %c0_i32_2 = arith.constant 0 : i32
    return %c0_i32, %c0_i32_0, %c0_i32_1 : i32, i32, i32
  }
  func.func @transform_6(%arg0: i32) -> (i32, i32, i32) {
    %c0_i32 = arith.constant 0 : i32
    %c0_i32_0 = arith.constant 0 : i32
    %c0_i32_1 = arith.constant 0 : i32
    %c0_i32_2 = arith.constant 0 : i32
    return %c0_i32, %c0_i32_0, %c0_i32_1 : i32, i32, i32
  }
  func.func @transform_7(%arg0: i32) -> (i32, i32, i32) {
    %c0_i32 = arith.constant 0 : i32
    %c0_i32_0 = arith.constant 0 : i32
    %c0_i32_1 = arith.constant 0 : i32
    %c0_i32_2 = arith.constant 0 : i32
    return %c0_i32, %c0_i32_0, %c0_i32_1 : i32, i32, i32
  }
  func.func @transform_8(%arg0: i32) -> (i32, i32, i32) {
    %c0_i32 = arith.constant 0 : i32
    %c0_i32_0 = arith.constant 0 : i32
    %c0_i32_1 = arith.constant 0 : i32
    %c0_i32_2 = arith.constant 0 : i32
    return %c0_i32, %c0_i32_0, %c0_i32_1 : i32, i32, i32
  }
  func.func @transform_9(%arg0: i32) -> (i32, i32, i32) {
    %c0_i32 = arith.constant 0 : i32
    %c0_i32_0 = arith.constant 0 : i32
    %c0_i32_1 = arith.constant 0 : i32
    %c0_i32_2 = arith.constant 0 : i32
    return %c0_i32, %c0_i32_0, %c0_i32_1 : i32, i32, i32
  }
  func.func @transform_10(%arg0: i32) -> (i32, i32, i32) {
    %c0_i32 = arith.constant 0 : i32
    %c0_i32_0 = arith.constant 0 : i32
    %c0_i32_1 = arith.constant 0 : i32
    %c0_i32_2 = arith.constant 0 : i32
    return %c0_i32, %c0_i32_0, %c0_i32_1 : i32, i32, i32
  }
  func.func @transform_11(%arg0: i32) -> (i32, i32, i32) {
    %c0_i32 = arith.constant 0 : i32
    %c0_i32_0 = arith.constant 0 : i32
    %c0_i32_1 = arith.constant 0 : i32
    %c0_i32_2 = arith.constant 0 : i32
    return %c0_i32, %c0_i32_0, %c0_i32_1 : i32, i32, i32
  }
  func.func @transform_12(%arg0: i32) -> (i32, i32, i32) {
    %c0_i32 = arith.constant 0 : i32
    %c0_i32_0 = arith.constant 0 : i32
    %c0_i32_1 = arith.constant 0 : i32
    %c0_i32_2 = arith.constant 0 : i32
    return %c0_i32, %c0_i32_0, %c0_i32_1 : i32, i32, i32
  }
  func.func @transform_13(%arg0: i32) -> (i32, i32, i32) {
    %c0_i32 = arith.constant 0 : i32
    %c0_i32_0 = arith.constant 0 : i32
    %c0_i32_1 = arith.constant 0 : i32
    %c0_i32_2 = arith.constant 0 : i32
    return %c0_i32, %c0_i32_0, %c0_i32_1 : i32, i32, i32
  }
  func.func @transform_14(%arg0: i32) -> (i32, i32) {
    %c0_i32 = arith.constant 0 : i32
    %c0_i32_0 = arith.constant 0 : i32
    %c0_i32_1 = arith.constant 0 : i32
    return %c0_i32, %c0_i32_0 : i32, i32
  }
  func.func @transform_15(%arg0: i32) -> (i32, i32) {
    %c0_i32 = arith.constant 0 : i32
    %c0_i32_0 = arith.constant 0 : i32
    %c0_i32_1 = arith.constant 0 : i32
    return %c0_i32, %c0_i32_0 : i32, i32
  }
  func.func @transform_16(%arg0: i32) -> (i32, i32) {
    %c0_i32 = arith.constant 0 : i32
    %c0_i32_0 = arith.constant 0 : i32
    %c0_i32_1 = arith.constant 0 : i32
    return %c0_i32, %c0_i32_0 : i32, i32
  }
  func.func @transform_17(%arg0: i32) -> (i32, i32) {
    %c0_i32 = arith.constant 0 : i32
    %c0_i32_0 = arith.constant 0 : i32
    %c0_i32_1 = arith.constant 0 : i32
    return %c0_i32, %c0_i32_0 : i32, i32
  }
  func.func @transform_18(%arg0: i32) -> (i32, i32) {
    %c0_i32 = arith.constant 0 : i32
    %c0_i32_0 = arith.constant 0 : i32
    return %arg0, %c0_i32 : i32, i32
  }
}

</mosaic_0001>

<llo_original>
// kernel: tpu_custom_call.1
$region0: #{tpu_custom_call.1}
  #allocation0 [shape = 'u32[]', space=smem, size = 0x4, offset = 0x4, fixed_abs, tag = 'smem constant byte address 0x4 - core index']
  #allocation1 [shape = 'u32[144,128]{1,0:T(1,128)}', space=vmem, size = 0x12000, scoped, tag = 'internal scratch']
  #allocation2 [shape = 'f32[16,128]{1,0:T(8,128)}', space=vmem, size = 0x2000, scoped, tag = 'scratch operand']
  #allocation3 [shape = 'f32[1,1]{1,0:T(1,128)S(1)}', space=vmem, size = 0x200, scoped, tag = 'scoped memory for tpu_custom_call.1']
  %s0 = inlined_call_operand.hbm [shape: f32[16,128], index: 0, kind: input, shape index: {}]
  %s1 = inlined_call_operand.hbm [shape: f32[8,128], index: 1, kind: input, shape index: {}]
  %s2 = inlined_call_operand.hbm [shape: bf16[2,128,384], index: 2, kind: input, shape index: {}]
  %s3 = inlined_call_operand.vmem [shape: f32[2,1,384], index: 3, kind: input, shape index: {}]
  %s4 = inlined_call_operand.hbm [shape: bf16[2,128,128], index: 4, kind: input, shape index: {}]
  %s5 = inlined_call_operand.vmem [shape: f32[2,1,128], index: 5, kind: input, shape index: {}]
  %s6 = inlined_call_operand.vmem [shape: f32[2,1,128], index: 6, kind: input, shape index: {}]
  %s7 = inlined_call_operand.vmem [shape: f32[2,1,128], index: 7, kind: input, shape index: {}]
  %s8 = inlined_call_operand.hbm [shape: bf16[2,128,256], index: 8, kind: input, shape index: {}]
  %s9 = inlined_call_operand.vmem [shape: f32[2,1,256], index: 9, kind: input, shape index: {}]
  %s10 = inlined_call_operand.hbm [shape: bf16[2,256,128], index: 10, kind: input, shape index: {}]
  %s11 = inlined_call_operand.vmem [shape: f32[2,1,128], index: 11, kind: input, shape index: {}]
  %s12 = inlined_call_operand.vmem [shape: f32[2,1,128], index: 12, kind: input, shape index: {}]
  %s13 = inlined_call_operand.vmem [shape: f32[2,1,128], index: 13, kind: input, shape index: {}]
  %s14 = inlined_call_operand.hbm [shape: bf16[128,128], index: 14, kind: input, shape index: {}]
  %s15 = inlined_call_operand.vmem [shape: f32[1,128], index: 15, kind: input, shape index: {}]
  %s16 = inlined_call_operand.vmem [shape: f32[1,128], index: 16, kind: input, shape index: {}]
  %s17 = inlined_call_operand.<no memory space> [shape: f32[1,1], index: 17, kind: input, shape index: {}]
  %s18 = inlined_call_operand.vmem [shape: f32[2,1], index: 18, kind: output, shape index: {}]
  %s19 = sld [smem:[#allocation0]]
  $region110: #{tpu_custom_call.1} parent=0
    _
  %s21 = ssub.s32 1, %s19
  %s22 = scalar_select 0, %s21, %s19
  %v23 = vstv %s17
  %24 = vst [vmem:[#allocation3] sm:$0x1] %v23
  $region1: #{tpu_custom_call.1} parent=0
    #allocation4 [shape = 'u8[8192]{0}', space=vmem, size = 0x2000, scoped, tag = 'input window, operand 0, single buffered']
    #allocation5 [shape = 's32[1]{0}', space=sflag, size = 0x4, scoped, tag = 'scoped memory for tpu_custom_call.1']
    #allocation6 [shape = 'u8[4096]{0}', space=vmem, size = 0x1000, scoped, tag = 'input window, operand 1, single buffered']
    #allocation7 [shape = 's32[1]{0}', space=sflag, size = 0x4, scoped, tag = 'scoped memory for tpu_custom_call.1']
    #allocation8 [shape = 'u8[196608]{0}', space=vmem, size = 0x30000, scoped, tag = 'input window, operand 2, single buffered']
    #allocation9 [shape = 'u8[65536]{0}', space=vmem, size = 0x10000, scoped, tag = 'input window, operand 4, single buffered']
    #allocation10 [shape = 's32[1]{0}', space=sflag, size = 0x4, scoped, tag = 'scoped memory for tpu_custom_call.1']
    #allocation11 [shape = 'u8[131072]{0}', space=vmem, size = 0x20000, scoped, tag = 'input window, operand 8, single buffered']
    #allocation12 [shape = 'u8[131072]{0}', space=vmem, size = 0x20000, scoped, tag = 'input window, operand 10, single buffered']
    #allocation13 [shape = 's32[1]{0}', space=sflag, size = 0x4, scoped, tag = 'scoped memory for tpu_custom_call.1']
    #allocation14 [shape = 'u8[32768]{0}', space=vmem, size = 0x8000, scoped, tag = 'input window, operand 14, single buffered']
    %25 = vsyncpa [#allocation5], 0
    %26 = vsyncpa [#allocation7], 0
    %27 = vsyncpa [#allocation10], 0
    %28 = vsyncpa [#allocation13], 0
    // Predicated region
    $region2: #{tpu_custom_call.1} parent=1 // pred_check
      _
    $region3: #{tpu_custom_call.1} parent=1 // pred_check_branch
      %30 = sbr.rel (0) target = $region5
    $region4: #{tpu_custom_call.1} parent=1 // pred_region
      %s32 = ssub.s32 256, 256
      %33 = vsyncadd [#allocation5], %s32
      %s34 = sshll.u32 [#allocation4], 4
      %s35 = int_to_ptr.vmem [resolvable:$true] %s34
      %40 = dma.hbm_to_vmem [thread:$0]  %s0, 256, %s35, [#allocation5], 128, 128, 8
    $region5: #{tpu_custom_call.1} parent=1 // pred_fallthru
      _
    // Predicated region
    $region6: #{tpu_custom_call.1} parent=1 // pred_check
      _
    $region7: #{tpu_custom_call.1} parent=1 // pred_check_branch
      %42 = sbr.rel (0) target = $region9
    $region8: #{tpu_custom_call.1} parent=1 // pred_region
      %s44 = ssub.s32 128, 128
      %45 = vsyncadd [#allocation7], %s44
      %s47 = sshll.u32 [#allocation6], 4
      %s48 = int_to_ptr.vmem [resolvable:$true] %s47
      %50 = dma.hbm_to_vmem [thread:$0]  %s1, 128, %s48, [#allocation7]
    $region9: #{tpu_custom_call.1} parent=1 // pred_fallthru
      _
    // Predicated region
    $region10: #{tpu_custom_call.1} parent=1 // pred_check
      _
    $region11: #{tpu_custom_call.1} parent=1 // pred_check_branch
      %52 = sbr.rel (0) target = $region13
    $region12: #{tpu_custom_call.1} parent=1 // pred_region
      %s54 = ssub.s32 6144, 6144
      %55 = vsyncadd [#allocation7], %s54
      %s56 = sshll.u32 [#allocation8], 4
      %s57 = int_to_ptr.vmem [resolvable:$true] %s56
      %62 = dma.hbm_to_vmem [thread:$0]  %s2, 6144, %s57, [#allocation7], 192, 192, 12
    $region13: #{tpu_custom_call.1} parent=1 // pred_fallthru
      _
    // Predicated region
    $region14: #{tpu_custom_call.1} parent=1 // pred_check
      _
    $region15: #{tpu_custom_call.1} parent=1 // pred_check_branch
      %64 = sbr.rel (0) target = $region17
    $region16: #{tpu_custom_call.1} parent=1 // pred_region
      _
    $region17: #{tpu_custom_call.1} parent=1 // pred_fallthru
      _
    // Predicated region
    $region18: #{tpu_custom_call.1} parent=1 // pred_check
      _
    $region19: #{tpu_custom_call.1} parent=1 // pred_check_branch
      %66 = sbr.rel (0) target = $region21
    $region20: #{tpu_custom_call.1} parent=1 // pred_region
      %s68 = ssub.s32 2048, 2048
      %69 = vsyncadd [#allocation10], %s68
      %s70 = sshll.u32 [#allocation9], 4
      %s71 = int_to_ptr.vmem [resolvable:$true] %s70
      %76 = dma.hbm_to_vmem [thread:$0]  %s4, 2048, %s71, [#allocation10], 64, 64, 4
    $region21: #{tpu_custom_call.1} parent=1 // pred_fallthru
      _
    // Predicated region
    $region22: #{tpu_custom_call.1} parent=1 // pred_check
      _
    $region23: #{tpu_custom_call.1} parent=1 // pred_check_branch
      %78 = sbr.rel (0) target = $region25
    $region24: #{tpu_custom_call.1} parent=1 // pred_region
      _
    $region25: #{tpu_custom_call.1} parent=1 // pred_fallthru
      _
    // Predicated region
    $region26: #{tpu_custom_call.1} parent=1 // pred_check
      _
    $region27: #{tpu_custom_call.1} parent=1 // pred_check_branch
      %80 = sbr.rel (0) target = $region29
    $region28: #{tpu_custom_call.1} parent=1 // pred_region
      _
    $region29: #{tpu_custom_call.1} parent=1 // pred_fallthru
      _
    // Predicated region
    $region30: #{tpu_custom_call.1} parent=1 // pred_check
      _
    $region31: #{tpu_custom_call.1} parent=1 // pred_check_branch
      %82 = sbr.rel (0) target = $region33
    $region32: #{tpu_custom_call.1} parent=1 // pred_region
      _
    $region33: #{tpu_custom_call.1} parent=1 // pred_fallthru
      _
    // Predicated region
    $region34: #{tpu_custom_call.1} parent=1 // pred_check
      _
    $region35: #{tpu_custom_call.1} parent=1 // pred_check_branch
      %84 = sbr.rel (0) target = $region37
    $region36: #{tpu_custom_call.1} parent=1 // pred_region
      %s86 = ssub.s32 4096, 4096
      %87 = vsyncadd [#allocation10], %s86
      %s88 = sshll.u32 [#allocation11], 4
      %s89 = int_to_ptr.vmem [resolvable:$true] %s88
      %94 = dma.hbm_to_vmem [thread:$0]  %s8, 4096, %s89, [#allocation10], 128, 128, 8
    $region37: #{tpu_custom_call.1} parent=1 // pred_fallthru
      _
    // Predicated region
    $region38: #{tpu_custom_call.1} parent=1 // pred_check
      _
    $region39: #{tpu_custom_call.1} parent=1 // pred_check_branch
      %96 = sbr.rel (0) target = $region41
    $region40: #{tpu_custom_call.1} parent=1 // pred_region
      _
    $region41: #{tpu_custom_call.1} parent=1 // pred_fallthru
      _
    // Predicated region
    $region42: #{tpu_custom_call.1} parent=1 // pred_check
      _
    $region43: #{tpu_custom_call.1} parent=1 // pred_check_branch
      %98 = sbr.rel (0) target = $region45
    $region44: #{tpu_custom_call.1} parent=1 // pred_region
      %s100 = ssub.s32 4096, 4096
      %101 = vsyncadd [#allocation13], %s100
      %s102 = sshll.u32 [#allocation12], 4
      %s103 = int_to_ptr.vmem [resolvable:$true] %s102
      %108 = dma.hbm_to_vmem [thread:$0]  %s10, 4096, %s103, [#allocation13], 64, 64, 4
    $region45: #{tpu_custom_call.1} parent=1 // pred_fallthru
      _
    // Predicated region
    $region46: #{tpu_custom_call.1} parent=1 // pred_check
      _
    $region47: #{tpu_custom_call.1} parent=1 // pred_check_branch
      %110 = sbr.rel (0) target = $region49
    $region48: #{tpu_custom_call.1} parent=1 // pred_region
      _
    $region49: #{tpu_custom_call.1} parent=1 // pred_fallthru
      _
    // Predicated region
    $region50: #{tpu_custom_call.1} parent=1 // pred_check
      _
    $region51: #{tpu_custom_call.1} parent=1 // pred_check_branch
      %112 = sbr.rel (0) target = $region53
    $region52: #{tpu_custom_call.1} parent=1 // pred_region
      _
    $region53: #{tpu_custom_call.1} parent=1 // pred_fallthru
      _
    // Predicated region
    $region54: #{tpu_custom_call.1} parent=1 // pred_check
      _
    $region55: #{tpu_custom_call.1} parent=1 // pred_check_branch
      %114 = sbr.rel (0) target = $region57
    $region56: #{tpu_custom_call.1} parent=1 // pred_region
      _
    $region57: #{tpu_custom_call.1} parent=1 // pred_fallthru
      _
    // Predicated region
    $region58: #{tpu_custom_call.1} parent=1 // pred_check
      _
    $region59: #{tpu_custom_call.1} parent=1 // pred_check_branch
      %116 = sbr.rel (0) target = $region61
    $region60: #{tpu_custom_call.1} parent=1 // pred_region
      %s118 = ssub.s32 1024, 1024
      %119 = vsyncadd [#allocation13], %s118
      %s120 = sshll.u32 [#allocation14], 4
      %s121 = int_to_ptr.vmem [resolvable:$true] %s120
      %126 = dma.hbm_to_vmem [thread:$0]  %s14, 1024, %s121, [#allocation13], 64, 64, 4
    $region61: #{tpu_custom_call.1} parent=1 // pred_fallthru
      _
    // Predicated region
    $region62: #{tpu_custom_call.1} parent=1 // pred_check
      _
    $region63: #{tpu_custom_call.1} parent=1 // pred_check_branch
      %128 = sbr.rel (0) target = $region65
    $region64: #{tpu_custom_call.1} parent=1 // pred_region
      _
    $region65: #{tpu_custom_call.1} parent=1 // pred_fallthru
      _
    // Predicated region
    $region66: #{tpu_custom_call.1} parent=1 // pred_check
      _
    $region67: #{tpu_custom_call.1} parent=1 // pred_check_branch
      %130 = sbr.rel (0) target = $region69
    $region68: #{tpu_custom_call.1} parent=1 // pred_region
      _
    $region69: #{tpu_custom_call.1} parent=1 // pred_fallthru
      _
    // Predicated region
    $region70: #{tpu_custom_call.1} parent=1 // pred_check
      _
    $region71: #{tpu_custom_call.1} parent=1 // pred_check_branch
      %132 = sbr.rel (0) target = $region73
    $region72: #{tpu_custom_call.1} parent=1 // pred_region
      _
    $region73: #{tpu_custom_call.1} parent=1 // pred_fallthru
      _
    // Predicated region
    $region74: #{tpu_custom_call.1} parent=1 // pred_check
      _
    $region75: #{tpu_custom_call.1} parent=1 // pred_check_branch
      %134 = sbr.rel (0) target = $region77
    $region76: #{tpu_custom_call.1} parent=1 // pred_region
      %135 = dma.done [#allocation5], 256
    $region77: #{tpu_custom_call.1} parent=1 // pred_fallthru
      _
    // Predicated region
    $region78: #{tpu_custom_call.1} parent=1 // pred_check
      _
    $region79: #{tpu_custom_call.1} parent=1 // pred_check_branch
      %137 = sbr.rel (0) target = $region81
    $region80: #{tpu_custom_call.1} parent=1 // pred_region
      %138 = dma.done [#allocation7], 128
    $region81: #{tpu_custom_call.1} parent=1 // pred_fallthru
      _
    // Predicated region
    $region82: #{tpu_custom_call.1} parent=1 // pred_check
      _
    $region83: #{tpu_custom_call.1} parent=1 // pred_check_branch
      %140 = sbr.rel (0) target = $region85
    $region84: #{tpu_custom_call.1} parent=1 // pred_region
      %141 = dma.done [#allocation7], 6144
    $region85: #{tpu_custom_call.1} parent=1 // pred_fallthru
      _
    // Predicated region
    $region86: #{tpu_custom_call.1} parent=1 // pred_check
      _
    $region87: #{tpu_custom_call.1} parent=1 // pred_check_branch
      %143 = sbr.rel (0) target = $region89
    $region88: #{tpu_custom_call.1} parent=1 // pred_region
      %144 = dma.done [#allocation10], 2048
    $region89: #{tpu_custom_call.1} parent=1 // pred_fallthru
      _
    // Predicated region
    $region90: #{tpu_custom_call.1} parent=1 // pred_check
      _
    $region91: #{tpu_custom_call.1} parent=1 // pred_check_branch
      %146 = sbr.rel (0) target = $region93
    $region92: #{tpu_custom_call.1} parent=1 // pred_region
      %147 = dma.done [#allocation10], 4096
    $region93: #{tpu_custom_call.1} parent=1 // pred_fallthru
      _
    // Predicated region
    $region94: #{tpu_custom_call.1} parent=1 // pred_check
      _
    $region95: #{tpu_custom_call.1} parent=1 // pred_check_branch
      %149 = sbr.rel (0) target = $region97
    $region96: #{tpu_custom_call.1} parent=1 // pred_region
      %150 = dma.done [#allocation13], 4096
    $region97: #{tpu_custom_call.1} parent=1 // pred_fallthru
      _
    // Predicated region
    $region98: #{tpu_custom_call.1} parent=1 // pred_check
      _
    $region99: #{tpu_custom_call.1} parent=1 // pred_check_branch
      %152 = sbr.rel (0) target = $region101
    $region100: #{tpu_custom_call.1} parent=1 // pred_region
      %153 = dma.done [#allocation13], 1024
    $region101: #{tpu_custom_call.1} parent=1 // pred_fallthru
      _
    %v155 = vld [vmem:[#allocation6] sm:$0xff]
    %v156 = vld [vmem:[#allocation4] sm:$0xff]
    %v157 = vld [vmem:[#allocation4 + $0x8] sm:$0xff]
    %v158 = vmul.f32 %v156, 11.313708
    %v159 = vmul.f32 %v157, 11.313708
    %v160 = vadd.f32 %v158, %v155
    %v161 = vadd.f32 %v159, %v155
    %v162 = vld [vmem:[#allocation8] sm:$0xff]
    %v163 = vld [vmem:[#allocation8 + $0x8] sm:$0xf]
    %v164 = vld [vmem:[#allocation8 + $0xc] sm:$0xff]
    %v165 = vld [vmem:[#allocation8 + $0x14] sm:$0xf]
    %v166 = vld [vmem:[#allocation8 + $0x18] sm:$0xff]
    %v167 = vld [vmem:[#allocation8 + $0x20] sm:$0xf]
    %v168 = vld [vmem:[#allocation8 + $0x24] sm:$0xff]
    %v169 = vld [vmem:[#allocation8 + $0x2c] sm:$0xf]
    %v170 = vld [vmem:[#allocation8 + $0x30] sm:$0xff]
    %v171 = vld [vmem:[#allocation8 + $0x38] sm:$0xf]
    %v172 = vld [vmem:[#allocation8 + $0x3c] sm:$0xff]
    %v173 = vld [vmem:[#allocation8 + $0x44] sm:$0xf]
    %v174 = vld [vmem:[#allocation8 + $0x48] sm:$0xff]
    %v175 = vld [vmem:[#allocation8 + $0x50] sm:$0xf]
    %v176 = vld [vmem:[#allocation8 + $0x54] sm:$0xff]
    %v177 = vld [vmem:[#allocation8 + $0x5c] sm:$0xf]
    %v178 = vld [vmem:[#allocation8 + $0x60] sm:$0xff]
    %v179 = vld [vmem:[#allocation8 + $0x68] sm:$0xf]
    %v180 = vld [vmem:[#allocation8 + $0x6c] sm:$0xff]
    %v181 = vld [vmem:[#allocation8 + $0x74] sm:$0xf]
    %v182 = vld [vmem:[#allocation8 + $0x78] sm:$0xff]
    %v183 = vld [vmem:[#allocation8 + $0x80] sm:$0xf]
    %v184 = vld [vmem:[#allocation8 + $0x84] sm:$0xff]
    %v185 = vld [vmem:[#allocation8 + $0x8c] sm:$0xf]
    %v186 = vld [vmem:[#allocation8 + $0x90] sm:$0xff]
    %v187 = vld [vmem:[#allocation8 + $0x98] sm:$0xf]
    %v188 = vld [vmem:[#allocation8 + $0x9c] sm:$0xff]
    %v189 = vld [vmem:[#allocation8 + $0xa4] sm:$0xf]
    %v190 = vld [vmem:[#allocation8 + $0xa8] sm:$0xff]
    %v191 = vld [vmem:[#allocation8 + $0xb0] sm:$0xf]
    %v192 = vld [vmem:[#allocation8 + $0xb4] sm:$0xff]
    %v193 = vld [vmem:[#allocation8 + $0xbc] sm:$0xf]
    %v194 = vpack.c.bf16 %v161, %v160
    %v195 = vld [vmem:[%s3] sm:$0x7]
    %v197 = vlaneseq
    %v198 = vshrl.u32 %v197, 7
    %v199 = vsub.s32 0, %v198
    %v200 = vrot.slane %v195, %v199
    %v201 = vlaneseq
    %v202 = vshrl.u32 %v201, 7
    %v203 = vsub.s32 1, %v202
    %v204 = vrot.slane %v195, %v203
    %v205 = vlaneseq
    %v206 = vshrl.u32 %v205, 7
    %v207 = vsub.s32 2, %v206
    %v208 = vrot.slane %v195, %v207
    %v244 = vunpack.c.l.b16 %v162
    %v245 = vunpack.c.h.b16 %v162
    %v246 = vunpack.c.l.b16 %v163
    %v247 = vunpack.c.l.b16 %v164
    %v248 = vunpack.c.h.b16 %v164
    %v249 = vunpack.c.l.b16 %v165
    %v250 = vunpack.c.l.b16 %v166
    %v251 = vunpack.c.h.b16 %v166
    %v252 = vunpack.c.l.b16 %v167
    %v253 = vunpack.c.l.b16 %v168
    %v254 = vunpack.c.h.b16 %v168
    %v255 = vunpack.c.l.b16 %v169
    %v256 = vunpack.c.l.b16 %v170
    %v257 = vunpack.c.h.b16 %v170
    %v258 = vunpack.c.l.b16 %v171
    %v259 = vunpack.c.l.b16 %v172
    %v260 = vunpack.c.h.b16 %v172
    %v261 = vunpack.c.l.b16 %v173
    %v262 = vunpack.c.l.b16 %v174
    %v263 = vunpack.c.h.b16 %v174
    %v264 = vunpack.c.l.b16 %v175
    %v265 = vunpack.c.l.b16 %v176
    %v266 = vunpack.c.h.b16 %v176
    %v267 = vunpack.c.l.b16 %v177
    %v268 = vunpack.c.l.b16 %v178
    %v269 = vunpack.c.h.b16 %v178
    %v270 = vunpack.c.l.b16 %v179
    %v271 = vunpack.c.l.b16 %v180
    %v272 = vunpack.c.h.b16 %v180
    %v273 = vunpack.c.l.b16 %v181
    %v274 = vunpack.c.l.b16 %v182
    %v275 = vunpack.c.h.b16 %v182
    %v276 = vunpack.c.l.b16 %v183
    %v277 = vunpack.c.l.b16 %v184
    %v278 = vunpack.c.h.b16 %v184
    %v279 = vunpack.c.l.b16 %v185
    %v280 = vunpack.c.l.b16 %v186
    %v281 = vunpack.c.h.b16 %v186
    %v282 = vunpack.c.l.b16 %v187
    %v283 = vunpack.c.l.b16 %v188
    %v284 = vunpack.c.h.b16 %v188
    %v285 = vunpack.c.l.b16 %v189
    %v286 = vunpack.c.l.b16 %v190
    %v287 = vunpack.c.h.b16 %v190
    %v288 = vunpack.c.l.b16 %v191
    %v289 = vunpack.c.l.b16 %v192
    %v290 = vunpack.c.h.b16 %v192
    %v291 = vunpack.c.l.b16 %v193
    %v292 = vpack.c.b16 %v247, %v244
    %v293 = vpack.c.b16 %v248, %v245
    %v294 = vpack.c.b16 %v249, %v246
    %v295 = vpack.c.b16 %v253, %v250
    %v296 = vpack.c.b16 %v254, %v251
    %v297 = vpack.c.b16 %v255, %v252
    %v298 = vpack.c.b16 %v259, %v256
    %v299 = vpack.c.b16 %v260, %v257
    %v300 = vpack.c.b16 %v261, %v258
    %v301 = vpack.c.b16 %v265, %v262
    %v302 = vpack.c.b16 %v266, %v263
    %v303 = vpack.c.b16 %v267, %v264
    %v304 = vpack.c.b16 %v271, %v268
    %v305 = vpack.c.b16 %v272, %v269
    %v306 = vpack.c.b16 %v273, %v270
    %v307 = vpack.c.b16 %v277, %v274
    %v308 = vpack.c.b16 %v278, %v275
    %v309 = vpack.c.b16 %v279, %v276
    %v310 = vpack.c.b16 %v283, %v280
    %v311 = vpack.c.b16 %v284, %v281
    %v312 = vpack.c.b16 %v285, %v282
    %v313 = vpack.c.b16 %v289, %v286
    %v314 = vpack.c.b16 %v290, %v287
    %v315 = vpack.c.b16 %v291, %v288
    %340 = vmatprep.subr.bf16.mxu0 %v293
    %341 = vmatpush1.bf16.msra.mxu0 %v292
    %342 = vmatprep.subr.bf16.mxu0 %v296
    %343 = vmatpush1.bf16.msra.mxu0 %v295
    %344 = vmatprep.subr.bf16.mxu0 %v299
    %345 = vmatpush1.bf16.msra.mxu0 %v298
    %346 = vmatprep.subr.bf16.mxu0 %v302
    %347 = vmatpush1.bf16.msra.mxu0 %v301
    %348 = vmatprep.subr.bf16.mxu0 %v305
    %349 = vmatpush1.bf16.msra.mxu0 %v304
    %350 = vmatprep.subr.bf16.mxu0 %v308
    %351 = vmatpush1.bf16.msra.mxu0 %v307
    %352 = vmatprep.subr.bf16.mxu0 %v311
    %353 = vmatpush1.bf16.msra.mxu0 %v310
    %354 = vmatprep.subr.bf16.mxu0 %v314
    %355 = vmatpush1.bf16.msra.mxu0 %v313
    %356 = vmatprep.subr.bf16.mxu0 0
    %357 = vmatpush1.bf16.msra.mxu0 0
    %358 = vmatprep.subr.bf16.mxu0 0
    %359 = vmatpush1.bf16.msra.mxu0 0
    %360 = vmatprep.subr.bf16.mxu0 0
    %361 = vmatpush1.bf16.msra.mxu0 0
    %362 = vmatprep.subr.bf16.mxu0 0
    %363 = vmatpush1.bf16.msra.mxu0 0
    %364 = vmatprep.subr.bf16.mxu0 0
    %365 = vmatpush1.bf16.msra.mxu0 0
    %366 = vmatprep.subr.bf16.mxu0 0
    %367 = vmatpush1.bf16.msra.mxu0 0
    %368 = vmatprep.subr.bf16.mxu0 0
    %369 = vmatpush1.bf16.msra.mxu0 0
    %370 = vmatprep.subr.bf16.mxu0 0
    %371 = vmatpush1.bf16.msra.mxu0 0
    %372 = vmatprep.mubr.bf16.mxu0 0
    %373 = vmatmul.mubr.bf16.gmra.mrb[0].mxu0 %v194
    %v374 = vpop.f32.mrb[0].mxu0
    %v375 = vadd.f32 %v200, %v374
    %v376 = vpop.f32.mrb[0].mxu0
    %v377 = vadd.f32 %v204, %v376
    %v378 = vpop.f32.mrb[0].mxu0
    %v379 = vadd.f32 %v200, %v378
    %v380 = vpop.f32.mrb[0].mxu0
    %v381 = vadd.f32 %v204, %v380
    %382 = vdwg.mxu0
    %383 = vmatprep.subr.bf16.mxu0 0
    %384 = vmatpush1.bf16.msra.mxu0 %v294
    %385 = vmatprep.subr.bf16.mxu0 0
    %386 = vmatpush1.bf16.msra.mxu0 %v297
    %387 = vmatprep.subr.bf16.mxu0 0
    %388 = vmatpush1.bf16.msra.mxu0 %v300
    %389 = vmatprep.subr.bf16.mxu0 0
    %390 = vmatpush1.bf16.msra.mxu0 %v303
    %391 = vmatprep.subr.bf16.mxu0 0
    %392 = vmatpush1.bf16.msra.mxu0 %v306
    %393 = vmatprep.subr.bf16.mxu0 0
    %394 = vmatpush1.bf16.msra.mxu0 %v309
    %395 = vmatprep.subr.bf16.mxu0 0
    %396 = vmatpush1.bf16.msra.mxu0 %v312
    %397 = vmatprep.subr.bf16.mxu0 0
    %398 = vmatpush1.bf16.msra.mxu0 %v315
    %399 = vmatprep.subr.bf16.mxu0 0
    %400 = vmatpush1.bf16.msra.mxu0 0
    %401 = vmatprep.subr.bf16.mxu0 0
    %402 = vmatpush1.bf16.msra.mxu0 0
    %403 = vmatprep.subr.bf16.mxu0 0
    %404 = vmatpush1.bf16.msra.mxu0 0
    %405 = vmatprep.subr.bf16.mxu0 0
    %406 = vmatpush1.bf16.msra.mxu0 0
    %407 = vmatprep.subr.bf16.mxu0 0
    %408 = vmatpush1.bf16.msra.mxu0 0
    %409 = vmatprep.subr.bf16.mxu0 0
    %410 = vmatpush1.bf16.msra.mxu0 0
    %411 = vmatprep.subr.bf16.mxu0 0
    %412 = vmatpush1.bf16.msra.mxu0 0
    %413 = vmatprep.subr.bf16.mxu0 0
    %414 = vmatpush1.bf16.msra.mxu0 0
    %415 = vmatprep.mubr.bf16.mxu0 0
    %416 = vmatmul.mubr.bf16.gmra.mrb[0].mxu0 %v194
    %v417 = vpop.f32.mrb[0].mxu0
    %v418 = vadd.f32 %v208, %v417
    %v419 = vpop.f32.mrb[0].mxu0
    %v420 = vpop.f32.mrb[0].mxu0
    %v421 = vadd.f32 %v208, %v420
    %v422 = vpop.f32.mrb[0].mxu0
    %423 = vdwg.mxu0
    %v424 = vld [vmem:[#allocation9] sm:$0xf]
    %v425 = vld [vmem:[#allocation9 + $0x4] sm:$0xf]
    %v426 = vld [vmem:[#allocation9 + $0x8] sm:$0xf]
    %v427 = vld [vmem:[#allocation9 + $0xc] sm:$0xf]
    %v428 = vld [vmem:[#allocation9 + $0x10] sm:$0xf]
    %v429 = vld [vmem:[#allocation9 + $0x14] sm:$0xf]
    %v430 = vld [vmem:[#allocation9 + $0x18] sm:$0xf]
    %v431 = vld [vmem:[#allocation9 + $0x1c] sm:$0xf]
    %v432 = vld [vmem:[#allocation9 + $0x20] sm:$0xf]
    %v433 = vld [vmem:[#allocation9 + $0x24] sm:$0xf]
    %v434 = vld [vmem:[#allocation9 + $0x28] sm:$0xf]
    %v435 = vld [vmem:[#allocation9 + $0x2c] sm:$0xf]
    %v436 = vld [vmem:[#allocation9 + $0x30] sm:$0xf]
    %v437 = vld [vmem:[#allocation9 + $0x34] sm:$0xf]
    %v438 = vld [vmem:[#allocation9 + $0x38] sm:$0xf]
    %v439 = vld [vmem:[#allocation9 + $0x3c] sm:$0xf]
    %v440 = vpack.c.bf16 %v375, %v375
    %v441 = vpack.c.bf16 %v379, %v379
    %v442 = vpack.c.bf16 %v377, %v377
    %v443 = vpack.c.bf16 %v381, %v381
    %vm444 = vcmask 523264
    %v446 = vsel %vm444, %v440, 0
    %v449 = vsel %vm444, %v442, 0
    %451 = vmatprep.subr.bf16.mxu0 0
    %452 = vmatpush1.bf16.xpose.msra.mxu0 %v449
    %453 = vmatprep.subr.bf16.mxu0 0
    %454 = vmatpush1.bf16.xpose.msra.mxu0 0
    %455 = vmatprep.subr.bf16.mxu0 0
    %456 = vmatpush1.bf16.xpose.msra.mxu0 0
    %457 = vmatprep.subr.bf16.mxu0 0
    %458 = vmatpush1.bf16.xpose.msra.mxu0 0
    %459 = vmatprep.subr.bf16.mxu0 0
    %460 = vmatpush1.bf16.xpose.msra.mxu0 0
    %461 = vmatprep.subr.bf16.mxu0 0
    %462 = vmatpush1.bf16.xpose.msra.mxu0 0
    %463 = vmatprep.subr.bf16.mxu0 0
    %464 = vmatpush1.bf16.xpose.msra.mxu0 0
    %465 = vmatprep.subr.bf16.mxu0 0
    %466 = vmatpush1.bf16.xpose.msra.mxu0 0
    %467 = vmatprep.subr.bf16.mxu0 0
    %468 = vmatpush1.bf16.xpose.msra.mxu0 0
    %469 = vmatprep.subr.bf16.mxu0 0
    %470 = vmatpush1.bf16.xpose.msra.mxu0 0
    %471 = vmatprep.subr.bf16.mxu0 0
    %472 = vmatpush1.bf16.xpose.msra.mxu0 0
    %473 = vmatprep.subr.bf16.mxu0 0
    %474 = vmatpush1.bf16.xpose.msra.mxu0 0
    %475 = vmatprep.subr.bf16.mxu0 0
    %476 = vmatpush1.bf16.xpose.msra.mxu0 0
    %477 = vmatprep.subr.bf16.mxu0 0
    %478 = vmatpush1.bf16.xpose.msra.mxu0 0
    %479 = vmatprep.subr.bf16.mxu0 0
    %480 = vmatpush1.bf16.xpose.msra.mxu0 0
    %481 = vmatprep.subr.bf16.mxu0 0
    %482 = vmatpush1.bf16.xpose.msra.mxu0 0
    %483 = vmatprep.mubr.bf16.mxu0 0
    %484 = vmatmul.mubr.bf16.gmra.mrb[0].mxu0 %v446
    %v485 = vpop.f32.mrb[0].mxu0
    %v486 = vadd.f32 0.0, %v485
    %v487 = vpop.f32.mrb[0].mxu0
    %v488 = vpop.f32.mrb[0].mxu0
    %v489 = vpop.f32.mrb[0].mxu0
    %490 = vdwg.mxu0
    %v492 = vsel %vm444, %v441, 0
    %v495 = vsel %vm444, %v443, 0
    %497 = vmatprep.subr.bf16.mxu0 0
    %498 = vmatpush1.bf16.xpose.msra.mxu0 %v495
    %499 = vmatprep.subr.bf16.mxu0 0
    %500 = vmatpush1.bf16.xpose.msra.mxu0 0
    %501 = vmatprep.subr.bf16.mxu0 0
    %502 = vmatpush1.bf16.xpose.msra.mxu0 0
    %503 = vmatprep.subr.bf16.mxu0 0
    %504 = vmatpush1.bf16.xpose.msra.mxu0 0
    %505 = vmatprep.subr.bf16.mxu0 0
    %506 = vmatpush1.bf16.xpose.msra.mxu0 0
    %507 = vmatprep.subr.bf16.mxu0 0
    %508 = vmatpush1.bf16.xpose.msra.mxu0 0
    %509 = vmatprep.subr.bf16.mxu0 0
    %510 = vmatpush1.bf16.xpose.msra.mxu0 0
    %511 = vmatprep.subr.bf16.mxu0 0
    %512 = vmatpush1.bf16.xpose.msra.mxu0 0
    %513 = vmatprep.subr.bf16.mxu0 0
    %514 = vmatpush1.bf16.xpose.msra.mxu0 0
    %515 = vmatprep.subr.bf16.mxu0 0
    %516 = vmatpush1.bf16.xpose.msra.mxu0 0
    %517 = vmatprep.subr.bf16.mxu0 0
    %518 = vmatpush1.bf16.xpose.msra.mxu0 0
    %519 = vmatprep.subr.bf16.mxu0 0
    %520 = vmatpush1.bf16.xpose.msra.mxu0 0
    %521 = vmatprep.subr.bf16.mxu0 0
    %522 = vmatpush1.bf16.xpose.msra.mxu0 0
    %523 = vmatprep.subr.bf16.mxu0 0
    %524 = vmatpush1.bf16.xpose.msra.mxu0 0
    %525 = vmatprep.subr.bf16.mxu0 0
    %526 = vmatpush1.bf16.xpose.msra.mxu0 0
    %527 = vmatprep.subr.bf16.mxu0 0
    %528 = vmatpush1.bf16.xpose.msra.mxu0 0
    %529 = vmatprep.mubr.bf16.mxu0 0
    %530 = vmatmul.mubr.bf16.gmra.mrb[0].mxu0 %v492
    %v531 = vpop.f32.mrb[0].mxu0
    %v532 = vadd.f32 0.0, %v531
    %v533 = vpop.f32.mrb[0].mxu0
    %v534 = vpop.f32.mrb[0].mxu0
    %v535 = vpop.f32.mrb[0].mxu0
    %536 = vdwg.mxu0
    %vm537 = vcmask 64512
    %v538 = vsel %vm537, %v486, -inf
    %539 = vmax.xlane.f32.xlu0 %v538
    %v540 = vpop.xlane.xlu0 %539
    %v541 = vsel %vm537, %v532, -inf
    %542 = vmax.xlane.f32.xlu0 %v541
    %v543 = vpop.xlane.xlu0 %542
    %v544 = vsub.f32 %v486, %v540
    %v545 = vsub.f32 %v532, %v543
    %v546 = vmul.f32 %v544, 1.442695
    %v547 = vpow.pop %v546
    %v548 = vmul.f32 %v545, 1.442695
    %v549 = vpow.pop %v548
    %v550 = vsel %vm537, %v547, 0.0
    %551 = vadd.xlane.f32.xlu0 %v550
    %v552 = vpop.xlane.xlu0 %551
    %v553 = vsel %vm537, %v549, 0.0
    %554 = vadd.xlane.f32.xlu0 %v553
    %v555 = vpop.xlane.xlu0 %554
    %v556 = vrcp.pop %v552
    %v557 = vrcp.pop %v555
    %v558 = vmul.f32 %v547, %v556
    %v559 = vmul.f32 %v549, %v557
    %v560 = vpack.c.bf16 %v558, %v558
    %v561 = vpack.c.bf16 %v559, %v559
    %v562 = vpack.c.bf16 %v418, %v418
    %v563 = vpack.c.bf16 %v421, %v421
    %v565 = vsel %vm537, %v560, 0
    %vm567 = vcmask 1043456
    %v569 = vsel %vm567, %v562, 0
    %571 = vmatprep.subr.bf16.mxu0 0
    %572 = vmatpush1.bf16.msra.mxu0 %v569
    %573 = vmatprep.subr.bf16.mxu0 0
    %574 = vmatpush1.bf16.msra.mxu0 0
    %575 = vmatprep.subr.bf16.mxu0 0
    %576 = vmatpush1.bf16.msra.mxu0 0
    %577 = vmatprep.subr.bf16.mxu0 0
    %578 = vmatpush1.bf16.msra.mxu0 0
    %579 = vmatprep.subr.bf16.mxu0 0
    %580 = vmatpush1.bf16.msra.mxu0 0
    %581 = vmatprep.subr.bf16.mxu0 0
    %582 = vmatpush1.bf16.msra.mxu0 0
    %583 = vmatprep.subr.bf16.mxu0 0
    %584 = vmatpush1.bf16.msra.mxu0 0
    %585 = vmatprep.subr.bf16.mxu0 0
    %586 = vmatpush1.bf16.msra.mxu0 0
    %587 = vmatprep.subr.bf16.mxu0 0
    %588 = vmatpush1.bf16.msra.mxu0 0
    %589 = vmatprep.subr.bf16.mxu0 0
    %590 = vmatpush1.bf16.msra.mxu0 0
    %591 = vmatprep.subr.bf16.mxu0 0
    %592 = vmatpush1.bf16.msra.mxu0 0
    %593 = vmatprep.subr.bf16.mxu0 0
    %594 = vmatpush1.bf16.msra.mxu0 0
    %595 = vmatprep.subr.bf16.mxu0 0
    %596 = vmatpush1.bf16.msra.mxu0 0
    %597 = vmatprep.subr.bf16.mxu0 0
    %598 = vmatpush1.bf16.msra.mxu0 0
    %599 = vmatprep.subr.bf16.mxu0 0
    %600 = vmatpush1.bf16.msra.mxu0 0
    %601 = vmatprep.subr.bf16.mxu0 0
    %602 = vmatpush1.bf16.msra.mxu0 0
    %603 = vmatprep.mubr.bf16.mxu0 0
    %604 = vmatmul.mubr.bf16.gmra.mrb[0].mxu0 %v565
    %v605 = vpop.f32.mrb[0].mxu0
    %v606 = vadd.f32 0.0, %v605
    %v607 = vpop.f32.mrb[0].mxu0
    %v608 = vpop.f32.mrb[0].mxu0
    %v609 = vpop.f32.mrb[0].mxu0
    %610 = vdwg.mxu0
    %v612 = vsel %vm537, %v561, 0
    %v615 = vsel %vm567, %v563, 0
    %617 = vmatprep.subr.bf16.mxu0 0
    %618 = vmatpush1.bf16.msra.mxu0 %v615
    %619 = vmatprep.subr.bf16.mxu0 0
    %620 = vmatpush1.bf16.msra.mxu0 0
    %621 = vmatprep.subr.bf16.mxu0 0
    %622 = vmatpush1.bf16.msra.mxu0 0
    %623 = vmatprep.subr.bf16.mxu0 0
    %624 = vmatpush1.bf16.msra.mxu0 0
    %625 = vmatprep.subr.bf16.mxu0 0
    %626 = vmatpush1.bf16.msra.mxu0 0
    %627 = vmatprep.subr.bf16.mxu0 0
    %628 = vmatpush1.bf16.msra.mxu0 0
    %629 = vmatprep.subr.bf16.mxu0 0
    %630 = vmatpush1.bf16.msra.mxu0 0
    %631 = vmatprep.subr.bf16.mxu0 0
    %632 = vmatpush1.bf16.msra.mxu0 0
    %633 = vmatprep.subr.bf16.mxu0 0
    %634 = vmatpush1.bf16.msra.mxu0 0
    %635 = vmatprep.subr.bf16.mxu0 0
    %636 = vmatpush1.bf16.msra.mxu0 0
    %637 = vmatprep.subr.bf16.mxu0 0
    %638 = vmatpush1.bf16.msra.mxu0 0
    %639 = vmatprep.subr.bf16.mxu0 0
    %640 = vmatpush1.bf16.msra.mxu0 0
    %641 = vmatprep.subr.bf16.mxu0 0
    %642 = vmatpush1.bf16.msra.mxu0 0
    %643 = vmatprep.subr.bf16.mxu0 0
    %644 = vmatpush1.bf16.msra.mxu0 0
    %645 = vmatprep.subr.bf16.mxu0 0
    %646 = vmatpush1.bf16.msra.mxu0 0
    %647 = vmatprep.subr.bf16.mxu0 0
    %648 = vmatpush1.bf16.msra.mxu0 0
    %649 = vmatprep.mubr.bf16.mxu0 0
    %650 = vmatmul.mubr.bf16.gmra.mrb[0].mxu0 %v612
    %v651 = vpop.f32.mrb[0].mxu0
    %v652 = vadd.f32 0.0, %v651
    %v653 = vpop.f32.mrb[0].mxu0
    %v654 = vpop.f32.mrb[0].mxu0
    %v655 = vpop.f32.mrb[0].mxu0
    %656 = vdwg.mxu0
    %v657 = vpack.c.bf16 %v652, %v606
    %v658 = vld [vmem:[%s5] sm:$0x1]
    %v660 = vlaneseq
    %v661 = vshrl.u32 %v660, 7
    %v662 = vsub.s32 0, %v661
    %v663 = vrot.slane %v658, %v662
    %v673 = vunpack.c.l.b16 %v424
    %v674 = vunpack.c.l.b16 %v425
    %v675 = vunpack.c.l.b16 %v426
    %v676 = vunpack.c.l.b16 %v427
    %v677 = vunpack.c.l.b16 %v428
    %v678 = vunpack.c.l.b16 %v429
    %v679 = vunpack.c.l.b16 %v430
    %v680 = vunpack.c.l.b16 %v431
    %v681 = vpack.c.b16 %v674, %v673
    %v682 = vpack.c.b16 %v676, %v675
    %v683 = vpack.c.b16 %v678, %v677
    %v684 = vpack.c.b16 %v680, %v679
    %v690 = vsel %vm444, %v657, 0
    %692 = vmatprep.subr.bf16.mxu0 0
    %693 = vmatpush1.bf16.msra.mxu0 %v681
    %694 = vmatprep.subr.bf16.mxu0 0
    %695 = vmatpush1.bf16.msra.mxu0 %v682
    %696 = vmatprep.subr.bf16.mxu0 0
    %697 = vmatpush1.bf16.msra.mxu0 %v683
    %698 = vmatprep.subr.bf16.mxu0 0
    %699 = vmatpush1.bf16.msra.mxu0 %v684
    %700 = vmatprep.subr.bf16.mxu0 0
    %701 = vmatpush1.bf16.msra.mxu0 0
    %702 = vmatprep.subr.bf16.mxu0 0
    %703 = vmatpush1.bf16.msra.mxu0 0
    %704 = vmatprep.subr.bf16.mxu0 0
    %705 = vmatpush1.bf16.msra.mxu0 0
    %706 = vmatprep.subr.bf16.mxu0 0
    %707 = vmatpush1.bf16.msra.mxu0 0
    %708 = vmatprep.subr.bf16.mxu0 0
    %709 = vmatpush1.bf16.msra.mxu0 0
    %710 = vmatprep.subr.bf16.mxu0 0
    %711 = vmatpush1.bf16.msra.mxu0 0
    %712 = vmatprep.subr.bf16.mxu0 0
    %713 = vmatpush1.bf16.msra.mxu0 0
    %714 = vmatprep.subr.bf16.mxu0 0
    %715 = vmatpush1.bf16.msra.mxu0 0
    %716 = vmatprep.subr.bf16.mxu0 0
    %717 = vmatpush1.bf16.msra.mxu0 0
    %718 = vmatprep.subr.bf16.mxu0 0
    %719 = vmatpush1.bf16.msra.mxu0 0
    %720 = vmatprep.subr.bf16.mxu0 0
    %721 = vmatpush1.bf16.msra.mxu0 0
    %722 = vmatprep.subr.bf16.mxu0 0
    %723 = vmatpush1.bf16.msra.mxu0 0
    %724 = vmatprep.mubr.bf16.mxu0 0
    %725 = vmatmul.mubr.bf16.gmra.mrb[0].mxu0 %v690
    %v726 = vpop.f32.mrb[0].mxu0
    %v727 = vadd.f32 %v663, %v726
    %v728 = vpop.f32.mrb[0].mxu0
    %v729 = vpop.f32.mrb[0].mxu0
    %v730 = vadd.f32 %v663, %v729
    %v731 = vpop.f32.mrb[0].mxu0
    %732 = vdwg.mxu0
    %734 = vrot.lane.b32.xlu0 %v440, 64
    %v735 = vpop.permute.xlu0 %734
    %737 = vrot.lane.b32.xlu0 %v442, 64
    %v738 = vpop.permute.xlu0 %737
    %v740 = vsel %vm444, %v735, 0
    %v743 = vsel %vm444, %v738, 0
    %745 = vmatprep.subr.bf16.mxu0 0
    %746 = vmatpush1.bf16.xpose.msra.mxu0 %v743
    %747 = vmatprep.subr.bf16.mxu0 0
    %748 = vmatpush1.bf16.xpose.msra.mxu0 0
    %749 = vmatprep.subr.bf16.mxu0 0
    %750 = vmatpush1.bf16.xpose.msra.mxu0 0
    %751 = vmatprep.subr.bf16.mxu0 0
    %752 = vmatpush1.bf16.xpose.msra.mxu0 0
    %753 = vmatprep.subr.bf16.mxu0 0
    %754 = vmatpush1.bf16.xpose.msra.mxu0 0
    %755 = vmatprep.subr.bf16.mxu0 0
    %756 = vmatpush1.bf16.xpose.msra.mxu0 0
    %757 = vmatprep.subr.bf16.mxu0 0
    %758 = vmatpush1.bf16.xpose.msra.mxu0 0
    %759 = vmatprep.subr.bf16.mxu0 0
    %760 = vmatpush1.bf16.xpose.msra.mxu0 0
    %761 = vmatprep.subr.bf16.mxu0 0
    %762 = vmatpush1.bf16.xpose.msra.mxu0 0
    %763 = vmatprep.subr.bf16.mxu0 0
    %764 = vmatpush1.bf16.xpose.msra.mxu0 0
    %765 = vmatprep.subr.bf16.mxu0 0
    %766 = vmatpush1.bf16.xpose.msra.mxu0 0
    %767 = vmatprep.subr.bf16.mxu0 0
    %768 = vmatpush1.bf16.xpose.msra.mxu0 0
    %769 = vmatprep.subr.bf16.mxu0 0
    %770 = vmatpush1.bf16.xpose.msra.mxu0 0
    %771 = vmatprep.subr.bf16.mxu0 0
    %772 = vmatpush1.bf16.xpose.msra.mxu0 0
    %773 = vmatprep.subr.bf16.mxu0 0
    %774 = vmatpush1.bf16.xpose.msra.mxu0 0
    %775 = vmatprep.subr.bf16.mxu0 0
    %776 = vmatpush1.bf16.xpose.msra.mxu0 0
    %777 = vmatprep.mubr.bf16.mxu0 0
    %778 = vmatmul.mubr.bf16.gmra.mrb[0].mxu0 %v740
    %v779 = vpop.f32.mrb[0].mxu0
    %v780 = vadd.f32 0.0, %v779
    %v781 = vpop.f32.mrb[0].mxu0
    %v782 = vpop.f32.mrb[0].mxu0
    %v783 = vpop.f32.mrb[0].mxu0
    %784 = vdwg.mxu0
    %786 = vrot.lane.b32.xlu0 %v441, 64
    %v787 = vpop.permute.xlu0 %786
    %789 = vrot.lane.b32.xlu0 %v443, 64
    %v790 = vpop.permute.xlu0 %789
    %v792 = vsel %vm444, %v787, 0
    %v795 = vsel %vm444, %v790, 0
    %797 = vmatprep.subr.bf16.mxu0 0
    %798 = vmatpush1.bf16.xpose.msra.mxu0 %v795
    %799 = vmatprep.subr.bf16.mxu0 0
    %800 = vmatpush1.bf16.xpose.msra.mxu0 0
    %801 = vmatprep.subr.bf16.mxu0 0
    %802 = vmatpush1.bf16.xpose.msra.mxu0 0
    %803 = vmatprep.subr.bf16.mxu0 0
    %804 = vmatpush1.bf16.xpose.msra.mxu0 0
    %805 = vmatprep.subr.bf16.mxu0 0
    %806 = vmatpush1.bf16.xpose.msra.mxu0 0
    %807 = vmatprep.subr.bf16.mxu0 0
    %808 = vmatpush1.bf16.xpose.msra.mxu0 0
    %809 = vmatprep.subr.bf16.mxu0 0
    %810 = vmatpush1.bf16.xpose.msra.mxu0 0
    %811 = vmatprep.subr.bf16.mxu0 0
    %812 = vmatpush1.bf16.xpose.msra.mxu0 0
    %813 = vmatprep.subr.bf16.mxu0 0
    %814 = vmatpush1.bf16.xpose.msra.mxu0 0
    %815 = vmatprep.subr.bf16.mxu0 0
    %816 = vmatpush1.bf16.xpose.msra.mxu0 0
    %817 = vmatprep.subr.bf16.mxu0 0
    %818 = vmatpush1.bf16.xpose.msra.mxu0 0
    %819 = vmatprep.subr.bf16.mxu0 0
    %820 = vmatpush1.bf16.xpose.msra.mxu0 0
    %821 = vmatprep.subr.bf16.mxu0 0
    %822 = vmatpush1.bf16.xpose.msra.mxu0 0
    %823 = vmatprep.subr.bf16.mxu0 0
    %824 = vmatpush1.bf16.xpose.msra.mxu0 0
    %825 = vmatprep.subr.bf16.mxu0 0
    %826 = vmatpush1.bf16.xpose.msra.mxu0 0
    %827 = vmatprep.subr.bf16.mxu0 0
    %828 = vmatpush1.bf16.xpose.msra.mxu0 0
    %829 = vmatprep.mubr.bf16.mxu0 0
    %830 = vmatmul.mubr.bf16.gmra.mrb[0].mxu0 %v792
    %v831 = vpop.f32.mrb[0].mxu0
    %v832 = vadd.f32 0.0, %v831
    %v833 = vpop.f32.mrb[0].mxu0
    %v834 = vpop.f32.mrb[0].mxu0
    %v835 = vpop.f32.mrb[0].mxu0
    %836 = vdwg.mxu0
    %v837 = vsel %vm537, %v780, -inf
    %838 = vmax.xlane.f32.xlu0 %v837
    %v839 = vpop.xlane.xlu0 %838
    %v840 = vsel %vm537, %v832, -inf
    %841 = vmax.xlane.f32.xlu0 %v840
    %v842 = vpop.xlane.xlu0 %841
    %v843 = vsub.f32 %v780, %v839
    %v844 = vsub.f32 %v832, %v842
    %v845 = vmul.f32 %v843, 1.442695
    %v846 = vpow.pop %v845
    %v847 = vmul.f32 %v844, 1.442695
    %v848 = vpow.pop %v847
    %v849 = vsel %vm537, %v846, 0.0
    %850 = vadd.xlane.f32.xlu0 %v849
    %v851 = vpop.xlane.xlu0 %850
    %v852 = vsel %vm537, %v848, 0.0
    %853 = vadd.xlane.f32.xlu0 %v852
    %v854 = vpop.xlane.xlu0 %853
    %v855 = vrcp.pop %v851
    %v856 = vrcp.pop %v854
    %v857 = vmul.f32 %v846, %v855
    %v858 = vmul.f32 %v848, %v856
    %v859 = vpack.c.bf16 %v857, %v857
    %v860 = vpack.c.bf16 %v858, %v858
    %862 = vrot.lane.b32.xlu0 %v562, 64
    %v863 = vpop.permute.xlu0 %862
    %v865 = vsel %vm537, %v859, 0
    %v868 = vsel %vm567, %v863, 0
    %870 = vmatprep.subr.bf16.mxu0 0
    %871 = vmatpush1.bf16.msra.mxu0 %v868
    %872 = vmatprep.subr.bf16.mxu0 0
    %873 = vmatpush1.bf16.msra.mxu0 0
    %874 = vmatprep.subr.bf16.mxu0 0
    %875 = vmatpush1.bf16.msra.mxu0 0
    %876 = vmatprep.subr.bf16.mxu0 0
    %877 = vmatpush1.bf16.msra.mxu0 0
    %878 = vmatprep.subr.bf16.mxu0 0
    %879 = vmatpush1.bf16.msra.mxu0 0
    %880 = vmatprep.subr.bf16.mxu0 0
    %881 = vmatpush1.bf16.msra.mxu0 0
    %882 = vmatprep.subr.bf16.mxu0 0
    %883 = vmatpush1.bf16.msra.mxu0 0
    %884 = vmatprep.subr.bf16.mxu0 0
    %885 = vmatpush1.bf16.msra.mxu0 0
    %886 = vmatprep.subr.bf16.mxu0 0
    %887 = vmatpush1.bf16.msra.mxu0 0
    %888 = vmatprep.subr.bf16.mxu0 0
    %889 = vmatpush1.bf16.msra.mxu0 0
    %890 = vmatprep.subr.bf16.mxu0 0
    %891 = vmatpush1.bf16.msra.mxu0 0
    %892 = vmatprep.subr.bf16.mxu0 0
    %893 = vmatpush1.bf16.msra.mxu0 0
    %894 = vmatprep.subr.bf16.mxu0 0
    %895 = vmatpush1.bf16.msra.mxu0 0
    %896 = vmatprep.subr.bf16.mxu0 0
    %897 = vmatpush1.bf16.msra.mxu0 0
    %898 = vmatprep.subr.bf16.mxu0 0
    %899 = vmatpush1.bf16.msra.mxu0 0
    %900 = vmatprep.subr.bf16.mxu0 0
    %901 = vmatpush1.bf16.msra.mxu0 0
    %902 = vmatprep.mubr.bf16.mxu0 0
    %903 = vmatmul.mubr.bf16.gmra.mrb[0].mxu0 %v865
    %v904 = vpop.f32.mrb[0].mxu0
    %v905 = vadd.f32 0.0, %v904
    %v906 = vpop.f32.mrb[0].mxu0
    %v907 = vpop.f32.mrb[0].mxu0
    %v908 = vpop.f32.mrb[0].mxu0
    %909 = vdwg.mxu0
    %911 = vrot.lane.b32.xlu0 %v563, 64
    %v912 = vpop.permute.xlu0 %911
    %v914 = vsel %vm537, %v860, 0
    %v917 = vsel %vm567, %v912, 0
    %919 = vmatprep.subr.bf16.mxu0 0
    %920 = vmatpush1.bf16.msra.mxu0 %v917
    %921 = vmatprep.subr.bf16.mxu0 0
    %922 = vmatpush1.bf16.msra.mxu0 0
    %923 = vmatprep.subr.bf16.mxu0 0
    %924 = vmatpush1.bf16.msra.mxu0 0
    %925 = vmatprep.subr.bf16.mxu0 0
    %926 = vmatpush1.bf16.msra.mxu0 0
    %927 = vmatprep.subr.bf16.mxu0 0
    %928 = vmatpush1.bf16.msra.mxu0 0
    %929 = vmatprep.subr.bf16.mxu0 0
    %930 = vmatpush1.bf16.msra.mxu0 0
    %931 = vmatprep.subr.bf16.mxu0 0
    %932 = vmatpush1.bf16.msra.mxu0 0
    %933 = vmatprep.subr.bf16.mxu0 0
    %934 = vmatpush1.bf16.msra.mxu0 0
    %935 = vmatprep.subr.bf16.mxu0 0
    %936 = vmatpush1.bf16.msra.mxu0 0
    %937 = vmatprep.subr.bf16.mxu0 0
    %938 = vmatpush1.bf16.msra.mxu0 0
    %939 = vmatprep.subr.bf16.mxu0 0
    %940 = vmatpush1.bf16.msra.mxu0 0
    %941 = vmatprep.subr.bf16.mxu0 0
    %942 = vmatpush1.bf16.msra.mxu0 0
    %943 = vmatprep.subr.bf16.mxu0 0
    %944 = vmatpush1.bf16.msra.mxu0 0
    %945 = vmatprep.subr.bf16.mxu0 0
    %946 = vmatpush1.bf16.msra.mxu0 0
    %947 = vmatprep.subr.bf16.mxu0 0
    %948 = vmatpush1.bf16.msra.mxu0 0
    %949 = vmatprep.subr.bf16.mxu0 0
    %950 = vmatpush1.bf16.msra.mxu0 0
    %951 = vmatprep.mubr.bf16.mxu0 0
    %952 = vmatmul.mubr.bf16.gmra.mrb[0].mxu0 %v914
    %v953 = vpop.f32.mrb[0].mxu0
    %v954 = vadd.f32 0.0, %v953
    %v955 = vpop.f32.mrb[0].mxu0
    %v956 = vpop.f32.mrb[0].mxu0
    %v957 = vpop.f32.mrb[0].mxu0
    %958 = vdwg.mxu0
    %v959 = vpack.c.bf16 %v954, %v905
    %v968 = vunpack.c.l.b16 %v432
    %v969 = vunpack.c.l.b16 %v433
    %v970 = vunpack.c.l.b16 %v434
    %v971 = vunpack.c.l.b16 %v435
    %v972 = vunpack.c.l.b16 %v436
    %v973 = vunpack.c.l.b16 %v437
    %v974 = vunpack.c.l.b16 %v438
    %v975 = vunpack.c.l.b16 %v439
    %v976 = vpack.c.b16 %v969, %v968
    %v977 = vpack.c.b16 %v971, %v970
    %v978 = vpack.c.b16 %v973, %v972
    %v979 = vpack.c.b16 %v975, %v974
    %v985 = vsel %vm444, %v959, 0
    %987 = vmatprep.subr.bf16.mxu0 0
    %988 = vmatpush1.bf16.msra.mxu0 %v976
    %989 = vmatprep.subr.bf16.mxu0 0
    %990 = vmatpush1.bf16.msra.mxu0 %v977
    %991 = vmatprep.subr.bf16.mxu0 0
    %992 = vmatpush1.bf16.msra.mxu0 %v978
    %993 = vmatprep.subr.bf16.mxu0 0
    %994 = vmatpush1.bf16.msra.mxu0 %v979
    %995 = vmatprep.subr.bf16.mxu0 0
    %996 = vmatpush1.bf16.msra.mxu0 0
    %997 = vmatprep.subr.bf16.mxu0 0
    %998 = vmatpush1.bf16.msra.mxu0 0
    %999 = vmatprep.subr.bf16.mxu0 0
    %1000 = vmatpush1.bf16.msra.mxu0 0
    %1001 = vmatprep.subr.bf16.mxu0 0
    %1002 = vmatpush1.bf16.msra.mxu0 0
    %1003 = vmatprep.subr.bf16.mxu0 0
    %1004 = vmatpush1.bf16.msra.mxu0 0
    %1005 = vmatprep.subr.bf16.mxu0 0
    %1006 = vmatpush1.bf16.msra.mxu0 0
    %1007 = vmatprep.subr.bf16.mxu0 0
    %1008 = vmatpush1.bf16.msra.mxu0 0
    %1009 = vmatprep.subr.bf16.mxu0 0
    %1010 = vmatpush1.bf16.msra.mxu0 0
    %1011 = vmatprep.subr.bf16.mxu0 0
    %1012 = vmatpush1.bf16.msra.mxu0 0
    %1013 = vmatprep.subr.bf16.mxu0 0
    %1014 = vmatpush1.bf16.msra.mxu0 0
    %1015 = vmatprep.subr.bf16.mxu0 0
    %1016 = vmatpush1.bf16.msra.mxu0 0
    %1017 = vmatprep.subr.bf16.mxu0 0
    %1018 = vmatpush1.bf16.msra.mxu0 0
    %1019 = vmatprep.mubr.bf16.mxu0 0
    %1020 = vmatmul.mubr.bf16.gmra.mrb[0].mxu0 %v985
    %v1021 = vpop.f32.mrb[0].mxu0
    %v1022 = vadd.f32 0.0, %v1021
    %v1023 = vpop.f32.mrb[0].mxu0
    %v1024 = vpop.f32.mrb[0].mxu0
    %v1025 = vadd.f32 0.0, %v1024
    %v1026 = vpop.f32.mrb[0].mxu0
    %1027 = vdwg.mxu0
    %v1028 = vadd.f32 %v727, %v1022
    %v1029 = vadd.f32 %v730, %v1025
    %v1030 = vadd.f32 %v160, %v1028
    %v1031 = vadd.f32 %v161, %v1029
    %v1032 = vld [vmem:[%s6] sm:$0x1]
    %v1033 = vld [vmem:[%s7] sm:$0x1]
    %1034 = vadd.xlane.f32.xlu0 %v1030
    %v1035 = vpop.xlane.xlu0 %1034
    %1036 = vadd.xlane.f32.xlu0 %v1031
    %v1037 = vpop.xlane.xlu0 %1036
    %v1038 = vrcp.pop 128.0
    %v1039 = vmul.f32 %v1035, %v1038
    %v1040 = vmul.f32 %v1037, %v1038
    %v1041 = vsub.f32 %v1030, %v1039
    %v1042 = vsub.f32 %v1031, %v1040
    %v1043 = vmul.f32 %v1041, %v1041
    %v1044 = vmul.f32 %v1042, %v1042
    %1045 = vadd.xlane.f32.xlu0 %v1043
    %v1046 = vpop.xlane.xlu0 %1045
    %1047 = vadd.xlane.f32.xlu0 %v1044
    %v1048 = vpop.xlane.xlu0 %1047
    %v1049 = vmul.f32 %v1046, %v1038
    %v1050 = vmul.f32 %v1048, %v1038
    %v1051 = vadd.f32 %v1049, 1e-05
    %v1052 = vadd.f32 %v1050, 1e-05
    %v1053 = vrsqrt.pop %v1051
    %v1054 = vrsqrt.pop %v1052
    %v1055 = vmul.f32 %v1041, %v1053
    %v1056 = vmul.f32 %v1042, %v1054
    %v1058 = vlaneseq
    %v1059 = vshrl.u32 %v1058, 7
    %v1060 = vsub.s32 0, %v1059
    %v1061 = vrot.slane %v1032, %v1060
    %v1063 = vmul.f32 %v1055, %v1061
    %v1064 = vmul.f32 %v1056, %v1061
    %v1066 = vlaneseq
    %v1067 = vshrl.u32 %v1066, 7
    %v1068 = vsub.s32 0, %v1067
    %v1069 = vrot.slane %v1033, %v1068
    %v1071 = vadd.f32 %v1063, %v1069
    %v1072 = vadd.f32 %v1064, %v1069
    %v1073 = vpack.c.bf16 %v1072, %v1071
    %v1074 = vld [vmem:[#allocation11] sm:$0xff]
    %v1075 = vld [vmem:[#allocation11 + $0x8] sm:$0xff]
    %v1076 = vld [vmem:[#allocation11 + $0x10] sm:$0xff]
    %v1077 = vld [vmem:[#allocation11 + $0x18] sm:$0xff]
    %v1078 = vld [vmem:[#allocation11 + $0x20] sm:$0xff]
    %v1079 = vld [vmem:[#allocation11 + $0x28] sm:$0xff]
    %v1080 = vld [vmem:[#allocation11 + $0x30] sm:$0xff]
    %v1081 = vld [vmem:[#allocation11 + $0x38] sm:$0xff]
    %v1082 = vld [vmem:[#allocation11 + $0x40] sm:$0xff]
    %v1083 = vld [vmem:[#allocation11 + $0x48] sm:$0xff]
    %v1084 = vld [vmem:[#allocation11 + $0x50] sm:$0xff]
    %v1085 = vld [vmem:[#allocation11 + $0x58] sm:$0xff]
    %v1086 = vld [vmem:[#allocation11 + $0x60] sm:$0xff]
    %v1087 = vld [vmem:[#allocation11 + $0x68] sm:$0xff]
    %v1088 = vld [vmem:[#allocation11 + $0x70] sm:$0xff]
    %v1089 = vld [vmem:[#allocation11 + $0x78] sm:$0xff]
    %v1090 = vld [vmem:[%s9] sm:$0x3]
    %v1092 = vlaneseq
    %v1093 = vshrl.u32 %v1092, 7
    %v1094 = vsub.s32 0, %v1093
    %v1095 = vrot.slane %v1090, %v1094
    %v1096 = vlaneseq
    %v1097 = vshrl.u32 %v1096, 7
    %v1098 = vsub.s32 1, %v1097
    %v1099 = vrot.slane %v1090, %v1098
    %v1118 = vunpack.c.l.b16 %v1074
    %v1119 = vunpack.c.h.b16 %v1074
    %v1120 = vunpack.c.l.b16 %v1075
    %v1121 = vunpack.c.h.b16 %v1075
    %v1122 = vunpack.c.l.b16 %v1076
    %v1123 = vunpack.c.h.b16 %v1076
    %v1124 = vunpack.c.l.b16 %v1077
    %v1125 = vunpack.c.h.b16 %v1077
    %v1126 = vunpack.c.l.b16 %v1078
    %v1127 = vunpack.c.h.b16 %v1078
    %v1128 = vunpack.c.l.b16 %v1079
    %v1129 = vunpack.c.h.b16 %v1079
    %v1130 = vunpack.c.l.b16 %v1080
    %v1131 = vunpack.c.h.b16 %v1080
    %v1132 = vunpack.c.l.b16 %v1081
    %v1133 = vunpack.c.h.b16 %v1081
    %v1134 = vunpack.c.l.b16 %v1082
    %v1135 = vunpack.c.h.b16 %v1082
    %v1136 = vunpack.c.l.b16 %v1083
    %v1137 = vunpack.c.h.b16 %v1083
    %v1138 = vunpack.c.l.b16 %v1084
    %v1139 = vunpack.c.h.b16 %v1084
    %v1140 = vunpack.c.l.b16 %v1085
    %v1141 = vunpack.c.h.b16 %v1085
    %v1142 = vunpack.c.l.b16 %v1086
    %v1143 = vunpack.c.h.b16 %v1086
    %v1144 = vunpack.c.l.b16 %v1087
    %v1145 = vunpack.c.h.b16 %v1087
    %v1146 = vunpack.c.l.b16 %v1088
    %v1147 = vunpack.c.h.b16 %v1088
    %v1148 = vunpack.c.l.b16 %v1089
    %v1149 = vunpack.c.h.b16 %v1089
    %v1150 = vpack.c.b16 %v1120, %v1118
    %v1151 = vpack.c.b16 %v1121, %v1119
    %v1152 = vpack.c.b16 %v1124, %v1122
    %v1153 = vpack.c.b16 %v1125, %v1123
    %v1154 = vpack.c.b16 %v1128, %v1126
    %v1155 = vpack.c.b16 %v1129, %v1127
    %v1156 = vpack.c.b16 %v1132, %v1130
    %v1157 = vpack.c.b16 %v1133, %v1131
    %v1158 = vpack.c.b16 %v1136, %v1134
    %v1159 = vpack.c.b16 %v1137, %v1135
    %v1160 = vpack.c.b16 %v1140, %v1138
    %v1161 = vpack.c.b16 %v1141, %v1139
    %v1162 = vpack.c.b16 %v1144, %v1142
    %v1163 = vpack.c.b16 %v1145, %v1143
    %v1164 = vpack.c.b16 %v1148, %v1146
    %v1165 = vpack.c.b16 %v1149, %v1147
    %1182 = vmatprep.subr.bf16.mxu0 %v1151
    %1183 = vmatpush1.bf16.msra.mxu0 %v1150
    %1184 = vmatprep.subr.bf16.mxu0 %v1153
    %1185 = vmatpush1.bf16.msra.mxu0 %v1152
    %1186 = vmatprep.subr.bf16.mxu0 %v1155
    %1187 = vmatpush1.bf16.msra.mxu0 %v1154
    %1188 = vmatprep.subr.bf16.mxu0 %v1157
    %1189 = vmatpush1.bf16.msra.mxu0 %v1156
    %1190 = vmatprep.subr.bf16.mxu0 %v1159
    %1191 = vmatpush1.bf16.msra.mxu0 %v1158
    %1192 = vmatprep.subr.bf16.mxu0 %v1161
    %1193 = vmatpush1.bf16.msra.mxu0 %v1160
    %1194 = vmatprep.subr.bf16.mxu0 %v1163
    %1195 = vmatpush1.bf16.msra.mxu0 %v1162
    %1196 = vmatprep.subr.bf16.mxu0 %v1165
    %1197 = vmatpush1.bf16.msra.mxu0 %v1164
    %1198 = vmatprep.subr.bf16.mxu0 0
    %1199 = vmatpush1.bf16.msra.mxu0 0
    %1200 = vmatprep.subr.bf16.mxu0 0
    %1201 = vmatpush1.bf16.msra.mxu0 0
    %1202 = vmatprep.subr.bf16.mxu0 0
    %1203 = vmatpush1.bf16.msra.mxu0 0
    %1204 = vmatprep.subr.bf16.mxu0 0
    %1205 = vmatpush1.bf16.msra.mxu0 0
    %1206 = vmatprep.subr.bf16.mxu0 0
    %1207 = vmatpush1.bf16.msra.mxu0 0
    %1208 = vmatprep.subr.bf16.mxu0 0
    %1209 = vmatpush1.bf16.msra.mxu0 0
    %1210 = vmatprep.subr.bf16.mxu0 0
    %1211 = vmatpush1.bf16.msra.mxu0 0
    %1212 = vmatprep.subr.bf16.mxu0 0
    %1213 = vmatpush1.bf16.msra.mxu0 0
    %1214 = vmatprep.mubr.bf16.mxu0 0
    %1215 = vmatmul.mubr.bf16.gmra.mrb[0].mxu0 %v1073
    %v1216 = vpop.f32.mrb[0].mxu0
    %v1217 = vadd.f32 %v1095, %v1216
    %v1218 = vpop.f32.mrb[0].mxu0
    %v1219 = vadd.f32 %v1099, %v1218
    %v1220 = vpop.f32.mrb[0].mxu0
    %v1221 = vadd.f32 %v1095, %v1220
    %v1222 = vpop.f32.mrb[0].mxu0
    %v1223 = vadd.f32 %v1099, %v1222
    %1224 = vdwg.mxu0
    %v1225 = vmax.f32 %v1217, 0.0
    %v1226 = vmax.f32 %v1219, 0.0
    %v1227 = vmax.f32 %v1221, 0.0
    %v1228 = vmax.f32 %v1223, 0.0
    %v1229 = vpack.c.bf16 %v1227, %v1225
    %v1230 = vpack.c.bf16 %v1228, %v1226
    %v1231 = vld [vmem:[#allocation12] sm:$0xf]
    %v1232 = vld [vmem:[#allocation12 + $0x4] sm:$0xf]
    %v1233 = vld [vmem:[#allocation12 + $0x8] sm:$0xf]
    %v1234 = vld [vmem:[#allocation12 + $0xc] sm:$0xf]
    %v1235 = vld [vmem:[#allocation12 + $0x10] sm:$0xf]
    %v1236 = vld [vmem:[#allocation12 + $0x14] sm:$0xf]
    %v1237 = vld [vmem:[#allocation12 + $0x18] sm:$0xf]
    %v1238 = vld [vmem:[#allocation12 + $0x1c] sm:$0xf]
    %v1239 = vld [vmem:[#allocation12 + $0x20] sm:$0xf]
    %v1240 = vld [vmem:[#allocation12 + $0x24] sm:$0xf]
    %v1241 = vld [vmem:[#allocation12 + $0x28] sm:$0xf]
    %v1242 = vld [vmem:[#allocation12 + $0x2c] sm:$0xf]
    %v1243 = vld [vmem:[#allocation12 + $0x30] sm:$0xf]
    %v1244 = vld [vmem:[#allocation12 + $0x34] sm:$0xf]
    %v1245 = vld [vmem:[#allocation12 + $0x38] sm:$0xf]
    %v1246 = vld [vmem:[#allocation12 + $0x3c] sm:$0xf]
    %v1247 = vld [vmem:[#allocation12 + $0x40] sm:$0xf]
    %v1248 = vld [vmem:[#allocation12 + $0x44] sm:$0xf]
    %v1249 = vld [vmem:[#allocation12 + $0x48] sm:$0xf]
    %v1250 = vld [vmem:[#allocation12 + $0x4c] sm:$0xf]
    %v1251 = vld [vmem:[#allocation12 + $0x50] sm:$0xf]
    %v1252 = vld [vmem:[#allocation12 + $0x54] sm:$0xf]
    %v1253 = vld [vmem:[#allocation12 + $0x58] sm:$0xf]
    %v1254 = vld [vmem:[#allocation12 + $0x5c] sm:$0xf]
    %v1255 = vld [vmem:[#allocation12 + $0x60] sm:$0xf]
    %v1256 = vld [vmem:[#allocation12 + $0x64] sm:$0xf]
    %v1257 = vld [vmem:[#allocation12 + $0x68] sm:$0xf]
    %v1258 = vld [vmem:[#allocation12 + $0x6c] sm:$0xf]
    %v1259 = vld [vmem:[#allocation12 + $0x70] sm:$0xf]
    %v1260 = vld [vmem:[#allocation12 + $0x74] sm:$0xf]
    %v1261 = vld [vmem:[#allocation12 + $0x78] sm:$0xf]
    %v1262 = vld [vmem:[#allocation12 + $0x7c] sm:$0xf]
    %v1263 = vld [vmem:[%s11] sm:$0x1]
    %v1265 = vlaneseq
    %v1266 = vshrl.u32 %v1265, 7
    %v1267 = vsub.s32 0, %v1266
    %v1268 = vrot.slane %v1263, %v1267
    %v1302 = vunpack.c.l.b16 %v1231
    %v1303 = vunpack.c.l.b16 %v1232
    %v1304 = vunpack.c.l.b16 %v1233
    %v1305 = vunpack.c.l.b16 %v1234
    %v1306 = vunpack.c.l.b16 %v1235
    %v1307 = vunpack.c.l.b16 %v1236
    %v1308 = vunpack.c.l.b16 %v1237
    %v1309 = vunpack.c.l.b16 %v1238
    %v1310 = vunpack.c.l.b16 %v1239
    %v1311 = vunpack.c.l.b16 %v1240
    %v1312 = vunpack.c.l.b16 %v1241
    %v1313 = vunpack.c.l.b16 %v1242
    %v1314 = vunpack.c.l.b16 %v1243
    %v1315 = vunpack.c.l.b16 %v1244
    %v1316 = vunpack.c.l.b16 %v1245
    %v1317 = vunpack.c.l.b16 %v1246
    %v1318 = vunpack.c.l.b16 %v1247
    %v1319 = vunpack.c.l.b16 %v1248
    %v1320 = vunpack.c.l.b16 %v1249
    %v1321 = vunpack.c.l.b16 %v1250
    %v1322 = vunpack.c.l.b16 %v1251
    %v1323 = vunpack.c.l.b16 %v1252
    %v1324 = vunpack.c.l.b16 %v1253
    %v1325 = vunpack.c.l.b16 %v1254
    %v1326 = vunpack.c.l.b16 %v1255
    %v1327 = vunpack.c.l.b16 %v1256
    %v1328 = vunpack.c.l.b16 %v1257
    %v1329 = vunpack.c.l.b16 %v1258
    %v1330 = vunpack.c.l.b16 %v1259
    %v1331 = vunpack.c.l.b16 %v1260
    %v1332 = vunpack.c.l.b16 %v1261
    %v1333 = vunpack.c.l.b16 %v1262
    %v1334 = vpack.c.b16 %v1303, %v1302
    %v1335 = vpack.c.b16 %v1305, %v1304
    %v1336 = vpack.c.b16 %v1307, %v1306
    %v1337 = vpack.c.b16 %v1309, %v1308
    %v1338 = vpack.c.b16 %v1311, %v1310
    %v1339 = vpack.c.b16 %v1313, %v1312
    %v1340 = vpack.c.b16 %v1315, %v1314
    %v1341 = vpack.c.b16 %v1317, %v1316
    %v1342 = vpack.c.b16 %v1319, %v1318
    %v1343 = vpack.c.b16 %v1321, %v1320
    %v1344 = vpack.c.b16 %v1323, %v1322
    %v1345 = vpack.c.b16 %v1325, %v1324
    %v1346 = vpack.c.b16 %v1327, %v1326
    %v1347 = vpack.c.b16 %v1329, %v1328
    %v1348 = vpack.c.b16 %v1331, %v1330
    %v1349 = vpack.c.b16 %v1333, %v1332
    %1366 = vmatprep.subr.bf16.mxu0 0
    %1367 = vmatpush1.bf16.msra.mxu0 %v1334
    %1368 = vmatprep.subr.bf16.mxu0 0
    %1369 = vmatpush1.bf16.msra.mxu0 %v1335
    %1370 = vmatprep.subr.bf16.mxu0 0
    %1371 = vmatpush1.bf16.msra.mxu0 %v1336
    %1372 = vmatprep.subr.bf16.mxu0 0
    %1373 = vmatpush1.bf16.msra.mxu0 %v1337
    %1374 = vmatprep.subr.bf16.mxu0 0
    %1375 = vmatpush1.bf16.msra.mxu0 %v1338
    %1376 = vmatprep.subr.bf16.mxu0 0
    %1377 = vmatpush1.bf16.msra.mxu0 %v1339
    %1378 = vmatprep.subr.bf16.mxu0 0
    %1379 = vmatpush1.bf16.msra.mxu0 %v1340
    %1380 = vmatprep.subr.bf16.mxu0 0
    %1381 = vmatpush1.bf16.msra.mxu0 %v1341
    %1382 = vmatprep.subr.bf16.mxu0 0
    %1383 = vmatpush1.bf16.msra.mxu0 %v1342
    %1384 = vmatprep.subr.bf16.mxu0 0
    %1385 = vmatpush1.bf16.msra.mxu0 %v1343
    %1386 = vmatprep.subr.bf16.mxu0 0
    %1387 = vmatpush1.bf16.msra.mxu0 %v1344
    %1388 = vmatprep.subr.bf16.mxu0 0
    %1389 = vmatpush1.bf16.msra.mxu0 %v1345
    %1390 = vmatprep.subr.bf16.mxu0 0
    %1391 = vmatpush1.bf16.msra.mxu0 %v1346
    %1392 = vmatprep.subr.bf16.mxu0 0
    %1393 = vmatpush1.bf16.msra.mxu0 %v1347
    %1394 = vmatprep.subr.bf16.mxu0 0
    %1395 = vmatpush1.bf16.msra.mxu0 %v1348
    %1396 = vmatprep.subr.bf16.mxu0 0
    %1397 = vmatpush1.bf16.msra.mxu0 %v1349
    %1398 = vmatprep.mubr.bf16.mxu0 %v1230
    %1399 = vmatmul.mubr.bf16.gmra.mrb[0].mxu0 %v1229
    %v1400 = vpop.f32.mrb[0].mxu0
    %v1401 = vadd.f32 %v1268, %v1400
    %v1402 = vpop.f32.mrb[0].mxu0
    %v1403 = vpop.f32.mrb[0].mxu0
    %v1404 = vadd.f32 %v1268, %v1403
    %v1405 = vpop.f32.mrb[0].mxu0
    %1406 = vdwg.mxu0
    %v1407 = vadd.f32 %v1071, %v1401
    %v1408 = vadd.f32 %v1072, %v1404
    %v1409 = vld [vmem:[%s12] sm:$0x1]
    %v1410 = vld [vmem:[%s13] sm:$0x1]
    %1411 = vadd.xlane.f32.xlu0 %v1407
    %v1412 = vpop.xlane.xlu0 %1411
    %1413 = vadd.xlane.f32.xlu0 %v1408
    %v1414 = vpop.xlane.xlu0 %1413
    %v1415 = vmul.f32 %v1412, %v1038
    %v1416 = vmul.f32 %v1414, %v1038
    %v1417 = vsub.f32 %v1407, %v1415
    %v1418 = vsub.f32 %v1408, %v1416
    %v1419 = vmul.f32 %v1417, %v1417
    %v1420 = vmul.f32 %v1418, %v1418
    %1421 = vadd.xlane.f32.xlu0 %v1419
    %v1422 = vpop.xlane.xlu0 %1421
    %1423 = vadd.xlane.f32.xlu0 %v1420
    %v1424 = vpop.xlane.xlu0 %1423
    %v1425 = vmul.f32 %v1422, %v1038
    %v1426 = vmul.f32 %v1424, %v1038
    %v1427 = vadd.f32 %v1425, 1e-05
    %v1428 = vadd.f32 %v1426, 1e-05
    %v1429 = vrsqrt.pop %v1427
    %v1430 = vrsqrt.pop %v1428
    %v1431 = vmul.f32 %v1417, %v1429
    %v1432 = vmul.f32 %v1418, %v1430
    %v1434 = vlaneseq
    %v1435 = vshrl.u32 %v1434, 7
    %v1436 = vsub.s32 0, %v1435
    %v1437 = vrot.slane %v1409, %v1436
    %v1439 = vmul.f32 %v1431, %v1437
    %v1440 = vmul.f32 %v1432, %v1437
    %v1442 = vlaneseq
    %v1443 = vshrl.u32 %v1442, 7
    %v1444 = vsub.s32 0, %v1443
    %v1445 = vrot.slane %v1410, %v1444
    %v1447 = vadd.f32 %v1439, %v1445
    %v1448 = vadd.f32 %v1440, %v1445
    %s1449 = scalar_lea.vmem [#allocation8], 192
    %v1450 = vld [vmem:[%s1449] sm:$0xff]
    %v1451 = vld [vmem:[%s1449 + $0x8] sm:$0xf]
    %v1452 = vld [vmem:[%s1449 + $0xc] sm:$0xff]
    %v1453 = vld [vmem:[%s1449 + $0x14] sm:$0xf]
    %v1454 = vld [vmem:[%s1449 + $0x18] sm:$0xff]
    %v1455 = vld [vmem:[%s1449 + $0x20] sm:$0xf]
    %v1456 = vld [vmem:[%s1449 + $0x24] sm:$0xff]
    %v1457 = vld [vmem:[%s1449 + $0x2c] sm:$0xf]
    %v1458 = vld [vmem:[%s1449 + $0x30] sm:$0xff]
    %v1459 = vld [vmem:[%s1449 + $0x38] sm:$0xf]
    %v1460 = vld [vmem:[%s1449 + $0x3c] sm:$0xff]
    %v1461 = vld [vmem:[%s1449 + $0x44] sm:$0xf]
    %v1462 = vld [vmem:[%s1449 + $0x48] sm:$0xff]
    %v1463 = vld [vmem:[%s1449 + $0x50] sm:$0xf]
    %v1464 = vld [vmem:[%s1449 + $0x54] sm:$0xff]
    %v1465 = vld [vmem:[%s1449 + $0x5c] sm:$0xf]
    %v1466 = vld [vmem:[%s1449 + $0x60] sm:$0xff]
    %v1467 = vld [vmem:[%s1449 + $0x68] sm:$0xf]
    %v1468 = vld [vmem:[%s1449 + $0x6c] sm:$0xff]
    %v1469 = vld [vmem:[%s1449 + $0x74] sm:$0xf]
    %v1470 = vld [vmem:[%s1449 + $0x78] sm:$0xff]
    %v1471 = vld [vmem:[%s1449 + $0x80] sm:$0xf]
    %v1472 = vld [vmem:[%s1449 + $0x84] sm:$0xff]
    %v1473 = vld [vmem:[%s1449 + $0x8c] sm:$0xf]
    %v1474 = vld [vmem:[%s1449 + $0x90] sm:$0xff]
    %v1475 = vld [vmem:[%s1449 + $0x98] sm:$0xf]
    %v1476 = vld [vmem:[%s1449 + $0x9c] sm:$0xff]
    %v1477 = vld [vmem:[%s1449 + $0xa4] sm:$0xf]
    %v1478 = vld [vmem:[%s1449 + $0xa8] sm:$0xff]
    %v1479 = vld [vmem:[%s1449 + $0xb0] sm:$0xf]
    %v1480 = vld [vmem:[%s1449 + $0xb4] sm:$0xff]
    %v1481 = vld [vmem:[%s1449 + $0xbc] sm:$0xf]
    %v1482 = vpack.c.bf16 %v1448, %v1447
    %s1483 = scalar_lea.vmem %s3, 3
    %v1484 = vld [vmem:[%s1483] sm:$0x7]
    %v1486 = vlaneseq
    %v1487 = vshrl.u32 %v1486, 7
    %v1488 = vsub.s32 0, %v1487
    %v1489 = vrot.slane %v1484, %v1488
    %v1490 = vlaneseq
    %v1491 = vshrl.u32 %v1490, 7
    %v1492 = vsub.s32 1, %v1491
    %v1493 = vrot.slane %v1484, %v1492
    %v1494 = vlaneseq
    %v1495 = vshrl.u32 %v1494, 7
    %v1496 = vsub.s32 2, %v1495
    %v1497 = vrot.slane %v1484, %v1496
    %v1533 = vunpack.c.l.b16 %v1450
    %v1534 = vunpack.c.h.b16 %v1450
    %v1535 = vunpack.c.l.b16 %v1451
    %v1536 = vunpack.c.l.b16 %v1452
    %v1537 = vunpack.c.h.b16 %v1452
    %v1538 = vunpack.c.l.b16 %v1453
    %v1539 = vunpack.c.l.b16 %v1454
    %v1540 = vunpack.c.h.b16 %v1454
    %v1541 = vunpack.c.l.b16 %v1455
    %v1542 = vunpack.c.l.b16 %v1456
    %v1543 = vunpack.c.h.b16 %v1456
    %v1544 = vunpack.c.l.b16 %v1457
    %v1545 = vunpack.c.l.b16 %v1458
    %v1546 = vunpack.c.h.b16 %v1458
    %v1547 = vunpack.c.l.b16 %v1459
    %v1548 = vunpack.c.l.b16 %v1460
    %v1549 = vunpack.c.h.b16 %v1460
    %v1550 = vunpack.c.l.b16 %v1461
    %v1551 = vunpack.c.l.b16 %v1462
    %v1552 = vunpack.c.h.b16 %v1462
    %v1553 = vunpack.c.l.b16 %v1463
    %v1554 = vunpack.c.l.b16 %v1464
    %v1555 = vunpack.c.h.b16 %v1464
    %v1556 = vunpack.c.l.b16 %v1465
    %v1557 = vunpack.c.l.b16 %v1466
    %v1558 = vunpack.c.h.b16 %v1466
    %v1559 = vunpack.c.l.b16 %v1467
    %v1560 = vunpack.c.l.b16 %v1468
    %v1561 = vunpack.c.h.b16 %v1468
    %v1562 = vunpack.c.l.b16 %v1469
    %v1563 = vunpack.c.l.b16 %v1470
    %v1564 = vunpack.c.h.b16 %v1470
    %v1565 = vunpack.c.l.b16 %v1471
    %v1566 = vunpack.c.l.b16 %v1472
    %v1567 = vunpack.c.h.b16 %v1472
    %v1568 = vunpack.c.l.b16 %v1473
    %v1569 = vunpack.c.l.b16 %v1474
    %v1570 = vunpack.c.h.b16 %v1474
    %v1571 = vunpack.c.l.b16 %v1475
    %v1572 = vunpack.c.l.b16 %v1476
    %v1573 = vunpack.c.h.b16 %v1476
    %v1574 = vunpack.c.l.b16 %v1477
    %v1575 = vunpack.c.l.b16 %v1478
    %v1576 = vunpack.c.h.b16 %v1478
    %v1577 = vunpack.c.l.b16 %v1479
    %v1578 = vunpack.c.l.b16 %v1480
    %v1579 = vunpack.c.h.b16 %v1480
    %v1580 = vunpack.c.l.b16 %v1481
    %v1581 = vpack.c.b16 %v1536, %v1533
    %v1582 = vpack.c.b16 %v1537, %v1534
    %v1583 = vpack.c.b16 %v1538, %v1535
    %v1584 = vpack.c.b16 %v1542, %v1539
    %v1585 = vpack.c.b16 %v1543, %v1540
    %v1586 = vpack.c.b16 %v1544, %v1541
    %v1587 = vpack.c.b16 %v1548, %v1545
    %v1588 = vpack.c.b16 %v1549, %v1546
    %v1589 = vpack.c.b16 %v1550, %v1547
    %v1590 = vpack.c.b16 %v1554, %v1551
    %v1591 = vpack.c.b16 %v1555, %v1552
    %v1592 = vpack.c.b16 %v1556, %v1553
    %v1593 = vpack.c.b16 %v1560, %v1557
    %v1594 = vpack.c.b16 %v1561, %v1558
    %v1595 = vpack.c.b16 %v1562, %v1559
    %v1596 = vpack.c.b16 %v1566, %v1563
    %v1597 = vpack.c.b16 %v1567, %v1564
    %v1598 = vpack.c.b16 %v1568, %v1565
    %v1599 = vpack.c.b16 %v1572, %v1569
    %v1600 = vpack.c.b16 %v1573, %v1570
    %v1601 = vpack.c.b16 %v1574, %v1571
    %v1602 = vpack.c.b16 %v1578, %v1575
    %v1603 = vpack.c.b16 %v1579, %v1576
    %v1604 = vpack.c.b16 %v1580, %v1577
    %1629 = vmatprep.subr.bf16.mxu0 %v1582
    %1630 = vmatpush1.bf16.msra.mxu0 %v1581
    %1631 = vmatprep.subr.bf16.mxu0 %v1585
    %1632 = vmatpush1.bf16.msra.mxu0 %v1584
    %1633 = vmatprep.subr.bf16.mxu0 %v1588
    %1634 = vmatpush1.bf16.msra.mxu0 %v1587
    %1635 = vmatprep.subr.bf16.mxu0 %v1591
    %1636 = vmatpush1.bf16.msra.mxu0 %v1590
    %1637 = vmatprep.subr.bf16.mxu0 %v1594
    %1638 = vmatpush1.bf16.msra.mxu0 %v1593
    %1639 = vmatprep.subr.bf16.mxu0 %v1597
    %1640 = vmatpush1.bf16.msra.mxu0 %v1596
    %1641 = vmatprep.subr.bf16.mxu0 %v1600
    %1642 = vmatpush1.bf16.msra.mxu0 %v1599
    %1643 = vmatprep.subr.bf16.mxu0 %v1603
    %1644 = vmatpush1.bf16.msra.mxu0 %v1602
    %1645 = vmatprep.subr.bf16.mxu0 0
    %1646 = vmatpush1.bf16.msra.mxu0 0
    %1647 = vmatprep.subr.bf16.mxu0 0
    %1648 = vmatpush1.bf16.msra.mxu0 0
    %1649 = vmatprep.subr.bf16.mxu0 0
    %1650 = vmatpush1.bf16.msra.mxu0 0
    %1651 = vmatprep.subr.bf16.mxu0 0
    %1652 = vmatpush1.bf16.msra.mxu0 0
    %1653 = vmatprep.subr.bf16.mxu0 0
    %1654 = vmatpush1.bf16.msra.mxu0 0
    %1655 = vmatprep.subr.bf16.mxu0 0
    %1656 = vmatpush1.bf16.msra.mxu0 0
    %1657 = vmatprep.subr.bf16.mxu0 0
    %1658 = vmatpush1.bf16.msra.mxu0 0
    %1659 = vmatprep.subr.bf16.mxu0 0
    %1660 = vmatpush1.bf16.msra.mxu0 0
    %1661 = vmatprep.mubr.bf16.mxu0 0
    %1662 = vmatmul.mubr.bf16.gmra.mrb[0].mxu0 %v1482
    %v1663 = vpop.f32.mrb[0].mxu0
    %v1664 = vadd.f32 %v1489, %v1663
    %v1665 = vpop.f32.mrb[0].mxu0
    %v1666 = vadd.f32 %v1493, %v1665
    %v1667 = vpop.f32.mrb[0].mxu0
    %v1668 = vadd.f32 %v1489, %v1667
    %v1669 = vpop.f32.mrb[0].mxu0
    %v1670 = vadd.f32 %v1493, %v1669
    %1671 = vdwg.mxu0
    %1672 = vmatprep.subr.bf16.mxu0 0
    %1673 = vmatpush1.bf16.msra.mxu0 %v1583
    %1674 = vmatprep.subr.bf16.mxu0 0
    %1675 = vmatpush1.bf16.msra.mxu0 %v1586
    %1676 = vmatprep.subr.bf16.mxu0 0
    %1677 = vmatpush1.bf16.msra.mxu0 %v1589
    %1678 = vmatprep.subr.bf16.mxu0 0
    %1679 = vmatpush1.bf16.msra.mxu0 %v1592
    %1680 = vmatprep.subr.bf16.mxu0 0
    %1681 = vmatpush1.bf16.msra.mxu0 %v1595
    %1682 = vmatprep.subr.bf16.mxu0 0
    %1683 = vmatpush1.bf16.msra.mxu0 %v1598
    %1684 = vmatprep.subr.bf16.mxu0 0
    %1685 = vmatpush1.bf16.msra.mxu0 %v1601
    %1686 = vmatprep.subr.bf16.mxu0 0
    %1687 = vmatpush1.bf16.msra.mxu0 %v1604
    %1688 = vmatprep.subr.bf16.mxu0 0
    %1689 = vmatpush1.bf16.msra.mxu0 0
    %1690 = vmatprep.subr.bf16.mxu0 0
    %1691 = vmatpush1.bf16.msra.mxu0 0
    %1692 = vmatprep.subr.bf16.mxu0 0
    %1693 = vmatpush1.bf16.msra.mxu0 0
    %1694 = vmatprep.subr.bf16.mxu0 0
    %1695 = vmatpush1.bf16.msra.mxu0 0
    %1696 = vmatprep.subr.bf16.mxu0 0
    %1697 = vmatpush1.bf16.msra.mxu0 0
    %1698 = vmatprep.subr.bf16.mxu0 0
    %1699 = vmatpush1.bf16.msra.mxu0 0
    %1700 = vmatprep.subr.bf16.mxu0 0
    %1701 = vmatpush1.bf16.msra.mxu0 0
    %1702 = vmatprep.subr.bf16.mxu0 0
    %1703 = vmatpush1.bf16.msra.mxu0 0
    %1704 = vmatprep.mubr.bf16.mxu0 0
    %1705 = vmatmul.mubr.bf16.gmra.mrb[0].mxu0 %v1482
    %v1706 = vpop.f32.mrb[0].mxu0
    %v1707 = vadd.f32 %v1497, %v1706
    %v1708 = vpop.f32.mrb[0].mxu0
    %v1709 = vpop.f32.mrb[0].mxu0
    %v1710 = vadd.f32 %v1497, %v1709
    %v1711 = vpop.f32.mrb[0].mxu0
    %1712 = vdwg.mxu0
    %s1713 = scalar_lea.vmem [#allocation9], 64
    %v1714 = vld [vmem:[%s1713] sm:$0xf]
    %v1715 = vld [vmem:[%s1713 + $0x4] sm:$0xf]
    %v1716 = vld [vmem:[%s1713 + $0x8] sm:$0xf]
    %v1717 = vld [vmem:[%s1713 + $0xc] sm:$0xf]
    %v1718 = vld [vmem:[%s1713 + $0x10] sm:$0xf]
    %v1719 = vld [vmem:[%s1713 + $0x14] sm:$0xf]
    %v1720 = vld [vmem:[%s1713 + $0x18] sm:$0xf]
    %v1721 = vld [vmem:[%s1713 + $0x1c] sm:$0xf]
    %v1722 = vld [vmem:[%s1713 + $0x20] sm:$0xf]
    %v1723 = vld [vmem:[%s1713 + $0x24] sm:$0xf]
    %v1724 = vld [vmem:[%s1713 + $0x28] sm:$0xf]
    %v1725 = vld [vmem:[%s1713 + $0x2c] sm:$0xf]
    %v1726 = vld [vmem:[%s1713 + $0x30] sm:$0xf]
    %v1727 = vld [vmem:[%s1713 + $0x34] sm:$0xf]
    %v1728 = vld [vmem:[%s1713 + $0x38] sm:$0xf]
    %v1729 = vld [vmem:[%s1713 + $0x3c] sm:$0xf]
    %v1730 = vpack.c.bf16 %v1664, %v1664
    %v1731 = vpack.c.bf16 %v1668, %v1668
    %v1732 = vpack.c.bf16 %v1666, %v1666
    %v1733 = vpack.c.bf16 %v1670, %v1670
    %v1735 = vsel %vm444, %v1730, 0
    %v1738 = vsel %vm444, %v1732, 0
    %1740 = vmatprep.subr.bf16.mxu0 0
    %1741 = vmatpush1.bf16.xpose.msra.mxu0 %v1738
    %1742 = vmatprep.subr.bf16.mxu0 0
    %1743 = vmatpush1.bf16.xpose.msra.mxu0 0
    %1744 = vmatprep.subr.bf16.mxu0 0
    %1745 = vmatpush1.bf16.xpose.msra.mxu0 0
    %1746 = vmatprep.subr.bf16.mxu0 0
    %1747 = vmatpush1.bf16.xpose.msra.mxu0 0
    %1748 = vmatprep.subr.bf16.mxu0 0
    %1749 = vmatpush1.bf16.xpose.msra.mxu0 0
    %1750 = vmatprep.subr.bf16.mxu0 0
    %1751 = vmatpush1.bf16.xpose.msra.mxu0 0
    %1752 = vmatprep.subr.bf16.mxu0 0
    %1753 = vmatpush1.bf16.xpose.msra.mxu0 0
    %1754 = vmatprep.subr.bf16.mxu0 0
    %1755 = vmatpush1.bf16.xpose.msra.mxu0 0
    %1756 = vmatprep.subr.bf16.mxu0 0
    %1757 = vmatpush1.bf16.xpose.msra.mxu0 0
    %1758 = vmatprep.subr.bf16.mxu0 0
    %1759 = vmatpush1.bf16.xpose.msra.mxu0 0
    %1760 = vmatprep.subr.bf16.mxu0 0
    %1761 = vmatpush1.bf16.xpose.msra.mxu0 0
    %1762 = vmatprep.subr.bf16.mxu0 0
    %1763 = vmatpush1.bf16.xpose.msra.mxu0 0
    %1764 = vmatprep.subr.bf16.mxu0 0
    %1765 = vmatpush1.bf16.xpose.msra.mxu0 0
    %1766 = vmatprep.subr.bf16.mxu0 0
    %1767 = vmatpush1.bf16.xpose.msra.mxu0 0
    %1768 = vmatprep.subr.bf16.mxu0 0
    %1769 = vmatpush1.bf16.xpose.msra.mxu0 0
    %1770 = vmatprep.subr.bf16.mxu0 0
    %1771 = vmatpush1.bf16.xpose.msra.mxu0 0
    %1772 = vmatprep.mubr.bf16.mxu0 0
    %1773 = vmatmul.mubr.bf16.gmra.mrb[0].mxu0 %v1735
    %v1774 = vpop.f32.mrb[0].mxu0
    %v1775 = vadd.f32 0.0, %v1774
    %v1776 = vpop.f32.mrb[0].mxu0
    %v1777 = vpop.f32.mrb[0].mxu0
    %v1778 = vpop.f32.mrb[0].mxu0
    %1779 = vdwg.mxu0
    %v1781 = vsel %vm444, %v1731, 0
    %v1784 = vsel %vm444, %v1733, 0
    %1786 = vmatprep.subr.bf16.mxu0 0
    %1787 = vmatpush1.bf16.xpose.msra.mxu0 %v1784
    %1788 = vmatprep.subr.bf16.mxu0 0
    %1789 = vmatpush1.bf16.xpose.msra.mxu0 0
    %1790 = vmatprep.subr.bf16.mxu0 0
    %1791 = vmatpush1.bf16.xpose.msra.mxu0 0
    %1792 = vmatprep.subr.bf16.mxu0 0
    %1793 = vmatpush1.bf16.xpose.msra.mxu0 0
    %1794 = vmatprep.subr.bf16.mxu0 0
    %1795 = vmatpush1.bf16.xpose.msra.mxu0 0
    %1796 = vmatprep.subr.bf16.mxu0 0
    %1797 = vmatpush1.bf16.xpose.msra.mxu0 0
    %1798 = vmatprep.subr.bf16.mxu0 0
    %1799 = vmatpush1.bf16.xpose.msra.mxu0 0
    %1800 = vmatprep.subr.bf16.mxu0 0
    %1801 = vmatpush1.bf16.xpose.msra.mxu0 0
    %1802 = vmatprep.subr.bf16.mxu0 0
    %1803 = vmatpush1.bf16.xpose.msra.mxu0 0
    %1804 = vmatprep.subr.bf16.mxu0 0
    %1805 = vmatpush1.bf16.xpose.msra.mxu0 0
    %1806 = vmatprep.subr.bf16.mxu0 0
    %1807 = vmatpush1.bf16.xpose.msra.mxu0 0
    %1808 = vmatprep.subr.bf16.mxu0 0
    %1809 = vmatpush1.bf16.xpose.msra.mxu0 0
    %1810 = vmatprep.subr.bf16.mxu0 0
    %1811 = vmatpush1.bf16.xpose.msra.mxu0 0
    %1812 = vmatprep.subr.bf16.mxu0 0
    %1813 = vmatpush1.bf16.xpose.msra.mxu0 0
    %1814 = vmatprep.subr.bf16.mxu0 0
    %1815 = vmatpush1.bf16.xpose.msra.mxu0 0
    %1816 = vmatprep.subr.bf16.mxu0 0
    %1817 = vmatpush1.bf16.xpose.msra.mxu0 0
    %1818 = vmatprep.mubr.bf16.mxu0 0
    %1819 = vmatmul.mubr.bf16.gmra.mrb[0].mxu0 %v1781
    %v1820 = vpop.f32.mrb[0].mxu0
    %v1821 = vadd.f32 0.0, %v1820
    %v1822 = vpop.f32.mrb[0].mxu0
    %v1823 = vpop.f32.mrb[0].mxu0
    %v1824 = vpop.f32.mrb[0].mxu0
    %1825 = vdwg.mxu0
    %v1826 = vsel %vm537, %v1775, -inf
    %1827 = vmax.xlane.f32.xlu0 %v1826
    %v1828 = vpop.xlane.xlu0 %1827
    %v1829 = vsel %vm537, %v1821, -inf
    %1830 = vmax.xlane.f32.xlu0 %v1829
    %v1831 = vpop.xlane.xlu0 %1830
    %v1832 = vsub.f32 %v1775, %v1828
    %v1833 = vsub.f32 %v1821, %v1831
    %v1834 = vmul.f32 %v1832, 1.442695
    %v1835 = vpow.pop %v1834
    %v1836 = vmul.f32 %v1833, 1.442695
    %v1837 = vpow.pop %v1836
    %v1838 = vsel %vm537, %v1835, 0.0
    %1839 = vadd.xlane.f32.xlu0 %v1838
    %v1840 = vpop.xlane.xlu0 %1839
    %v1841 = vsel %vm537, %v1837, 0.0
    %1842 = vadd.xlane.f32.xlu0 %v1841
    %v1843 = vpop.xlane.xlu0 %1842
    %v1844 = vrcp.pop %v1840
    %v1845 = vrcp.pop %v1843
    %v1846 = vmul.f32 %v1835, %v1844
    %v1847 = vmul.f32 %v1837, %v1845
    %v1848 = vpack.c.bf16 %v1846, %v1846
    %v1849 = vpack.c.bf16 %v1847, %v1847
    %v1850 = vpack.c.bf16 %v1707, %v1707
    %v1851 = vpack.c.bf16 %v1710, %v1710
    %v1853 = vsel %vm537, %v1848, 0
    %v1856 = vsel %vm567, %v1850, 0
    %1858 = vmatprep.subr.bf16.mxu0 0
    %1859 = vmatpush1.bf16.msra.mxu0 %v1856
    %1860 = vmatprep.subr.bf16.mxu0 0
    %1861 = vmatpush1.bf16.msra.mxu0 0
    %1862 = vmatprep.subr.bf16.mxu0 0
    %1863 = vmatpush1.bf16.msra.mxu0 0
    %1864 = vmatprep.subr.bf16.mxu0 0
    %1865 = vmatpush1.bf16.msra.mxu0 0
    %1866 = vmatprep.subr.bf16.mxu0 0
    %1867 = vmatpush1.bf16.msra.mxu0 0
    %1868 = vmatprep.subr.bf16.mxu0 0
    %1869 = vmatpush1.bf16.msra.mxu0 0
    %1870 = vmatprep.subr.bf16.mxu0 0
    %1871 = vmatpush1.bf16.msra.mxu0 0
    %1872 = vmatprep.subr.bf16.mxu0 0
    %1873 = vmatpush1.bf16.msra.mxu0 0
    %1874 = vmatprep.subr.bf16.mxu0 0
    %1875 = vmatpush1.bf16.msra.mxu0 0
    %1876 = vmatprep.subr.bf16.mxu0 0
    %1877 = vmatpush1.bf16.msra.mxu0 0
    %1878 = vmatprep.subr.bf16.mxu0 0
    %1879 = vmatpush1.bf16.msra.mxu0 0
    %1880 = vmatprep.subr.bf16.mxu0 0
    %1881 = vmatpush1.bf16.msra.mxu0 0
    %1882 = vmatprep.subr.bf16.mxu0 0
    %1883 = vmatpush1.bf16.msra.mxu0 0
    %1884 = vmatprep.subr.bf16.mxu0 0
    %1885 = vmatpush1.bf16.msra.mxu0 0
    %1886 = vmatprep.subr.bf16.mxu0 0
    %1887 = vmatpush1.bf16.msra.mxu0 0
    %1888 = vmatprep.subr.bf16.mxu0 0
    %1889 = vmatpush1.bf16.msra.mxu0 0
    %1890 = vmatprep.mubr.bf16.mxu0 0
    %1891 = vmatmul.mubr.bf16.gmra.mrb[0].mxu0 %v1853
    %v1892 = vpop.f32.mrb[0].mxu0
    %v1893 = vadd.f32 0.0, %v1892
    %v1894 = vpop.f32.mrb[0].mxu0
    %v1895 = vpop.f32.mrb[0].mxu0
    %v1896 = vpop.f32.mrb[0].mxu0
    %1897 = vdwg.mxu0
    %v1899 = vsel %vm537, %v1849, 0
    %v1902 = vsel %vm567, %v1851, 0
    %1904 = vmatprep.subr.bf16.mxu0 0
    %1905 = vmatpush1.bf16.msra.mxu0 %v1902
    %1906 = vmatprep.subr.bf16.mxu0 0
    %1907 = vmatpush1.bf16.msra.mxu0 0
    %1908 = vmatprep.subr.bf16.mxu0 0
    %1909 = vmatpush1.bf16.msra.mxu0 0
    %1910 = vmatprep.subr.bf16.mxu0 0
    %1911 = vmatpush1.bf16.msra.mxu0 0
    %1912 = vmatprep.subr.bf16.mxu0 0
    %1913 = vmatpush1.bf16.msra.mxu0 0
    %1914 = vmatprep.subr.bf16.mxu0 0
    %1915 = vmatpush1.bf16.msra.mxu0 0
    %1916 = vmatprep.subr.bf16.mxu0 0
    %1917 = vmatpush1.bf16.msra.mxu0 0
    %1918 = vmatprep.subr.bf16.mxu0 0
    %1919 = vmatpush1.bf16.msra.mxu0 0
    %1920 = vmatprep.subr.bf16.mxu0 0
    %1921 = vmatpush1.bf16.msra.mxu0 0
    %1922 = vmatprep.subr.bf16.mxu0 0
    %1923 = vmatpush1.bf16.msra.mxu0 0
    %1924 = vmatprep.subr.bf16.mxu0 0
    %1925 = vmatpush1.bf16.msra.mxu0 0
    %1926 = vmatprep.subr.bf16.mxu0 0
    %1927 = vmatpush1.bf16.msra.mxu0 0
    %1928 = vmatprep.subr.bf16.mxu0 0
    %1929 = vmatpush1.bf16.msra.mxu0 0
    %1930 = vmatprep.subr.bf16.mxu0 0
    %1931 = vmatpush1.bf16.msra.mxu0 0
    %1932 = vmatprep.subr.bf16.mxu0 0
    %1933 = vmatpush1.bf16.msra.mxu0 0
    %1934 = vmatprep.subr.bf16.mxu0 0
    %1935 = vmatpush1.bf16.msra.mxu0 0
    %1936 = vmatprep.mubr.bf16.mxu0 0
    %1937 = vmatmul.mubr.bf16.gmra.mrb[0].mxu0 %v1899
    %v1938 = vpop.f32.mrb[0].mxu0
    %v1939 = vadd.f32 0.0, %v1938
    %v1940 = vpop.f32.mrb[0].mxu0
    %v1941 = vpop.f32.mrb[0].mxu0
    %v1942 = vpop.f32.mrb[0].mxu0
    %1943 = vdwg.mxu0
    %v1944 = vpack.c.bf16 %v1939, %v1893
    %s1945 = scalar_lea.vmem %s5, 1
    %v1946 = vld [vmem:[%s1945] sm:$0x1]
    %v1948 = vlaneseq
    %v1949 = vshrl.u32 %v1948, 7
    %v1950 = vsub.s32 0, %v1949
    %v1951 = vrot.slane %v1946, %v1950
    %v1961 = vunpack.c.l.b16 %v1714
    %v1962 = vunpack.c.l.b16 %v1715
    %v1963 = vunpack.c.l.b16 %v1716
    %v1964 = vunpack.c.l.b16 %v1717
    %v1965 = vunpack.c.l.b16 %v1718
    %v1966 = vunpack.c.l.b16 %v1719
    %v1967 = vunpack.c.l.b16 %v1720
    %v1968 = vunpack.c.l.b16 %v1721
    %v1969 = vpack.c.b16 %v1962, %v1961
    %v1970 = vpack.c.b16 %v1964, %v1963
    %v1971 = vpack.c.b16 %v1966, %v1965
    %v1972 = vpack.c.b16 %v1968, %v1967
    %v1978 = vsel %vm444, %v1944, 0
    %1980 = vmatprep.subr.bf16.mxu0 0
    %1981 = vmatpush1.bf16.msra.mxu0 %v1969
    %1982 = vmatprep.subr.bf16.mxu0 0
    %1983 = vmatpush1.bf16.msra.mxu0 %v1970
    %1984 = vmatprep.subr.bf16.mxu0 0
    %1985 = vmatpush1.bf16.msra.mxu0 %v1971
    %1986 = vmatprep.subr.bf16.mxu0 0
    %1987 = vmatpush1.bf16.msra.mxu0 %v1972
    %1988 = vmatprep.subr.bf16.mxu0 0
    %1989 = vmatpush1.bf16.msra.mxu0 0
    %1990 = vmatprep.subr.bf16.mxu0 0
    %1991 = vmatpush1.bf16.msra.mxu0 0
    %1992 = vmatprep.subr.bf16.mxu0 0
    %1993 = vmatpush1.bf16.msra.mxu0 0
    %1994 = vmatprep.subr.bf16.mxu0 0
    %1995 = vmatpush1.bf16.msra.mxu0 0
    %1996 = vmatprep.subr.bf16.mxu0 0
    %1997 = vmatpush1.bf16.msra.mxu0 0
    %1998 = vmatprep.subr.bf16.mxu0 0
    %1999 = vmatpush1.bf16.msra.mxu0 0
    %2000 = vmatprep.subr.bf16.mxu0 0
    %2001 = vmatpush1.bf16.msra.mxu0 0
    %2002 = vmatprep.subr.bf16.mxu0 0
    %2003 = vmatpush1.bf16.msra.mxu0 0
    %2004 = vmatprep.subr.bf16.mxu0 0
    %2005 = vmatpush1.bf16.msra.mxu0 0
    %2006 = vmatprep.subr.bf16.mxu0 0
    %2007 = vmatpush1.bf16.msra.mxu0 0
    %2008 = vmatprep.subr.bf16.mxu0 0
    %2009 = vmatpush1.bf16.msra.mxu0 0
    %2010 = vmatprep.subr.bf16.mxu0 0
    %2011 = vmatpush1.bf16.msra.mxu0 0
    %2012 = vmatprep.mubr.bf16.mxu0 0
    %2013 = vmatmul.mubr.bf16.gmra.mrb[0].mxu0 %v1978
    %v2014 = vpop.f32.mrb[0].mxu0
    %v2015 = vadd.f32 %v1951, %v2014
    %v2016 = vpop.f32.mrb[0].mxu0
    %v2017 = vpop.f32.mrb[0].mxu0
    %v2018 = vadd.f32 %v1951, %v2017
    %v2019 = vpop.f32.mrb[0].mxu0
    %2020 = vdwg.mxu0
    %2022 = vrot.lane.b32.xlu0 %v1730, 64
    %v2023 = vpop.permute.xlu0 %2022
    %2025 = vrot.lane.b32.xlu0 %v1732, 64
    %v2026 = vpop.permute.xlu0 %2025
    %v2028 = vsel %vm444, %v2023, 0
    %v2031 = vsel %vm444, %v2026, 0
    %2033 = vmatprep.subr.bf16.mxu0 0
    %2034 = vmatpush1.bf16.xpose.msra.mxu0 %v2031
    %2035 = vmatprep.subr.bf16.mxu0 0
    %2036 = vmatpush1.bf16.xpose.msra.mxu0 0
    %2037 = vmatprep.subr.bf16.mxu0 0
    %2038 = vmatpush1.bf16.xpose.msra.mxu0 0
    %2039 = vmatprep.subr.bf16.mxu0 0
    %2040 = vmatpush1.bf16.xpose.msra.mxu0 0
    %2041 = vmatprep.subr.bf16.mxu0 0
    %2042 = vmatpush1.bf16.xpose.msra.mxu0 0
    %2043 = vmatprep.subr.bf16.mxu0 0
    %2044 = vmatpush1.bf16.xpose.msra.mxu0 0
    %2045 = vmatprep.subr.bf16.mxu0 0
    %2046 = vmatpush1.bf16.xpose.msra.mxu0 0
    %2047 = vmatprep.subr.bf16.mxu0 0
    %2048 = vmatpush1.bf16.xpose.msra.mxu0 0
    %2049 = vmatprep.subr.bf16.mxu0 0
    %2050 = vmatpush1.bf16.xpose.msra.mxu0 0
    %2051 = vmatprep.subr.bf16.mxu0 0
    %2052 = vmatpush1.bf16.xpose.msra.mxu0 0
    %2053 = vmatprep.subr.bf16.mxu0 0
    %2054 = vmatpush1.bf16.xpose.msra.mxu0 0
    %2055 = vmatprep.subr.bf16.mxu0 0
    %2056 = vmatpush1.bf16.xpose.msra.mxu0 0
    %2057 = vmatprep.subr.bf16.mxu0 0
    %2058 = vmatpush1.bf16.xpose.msra.mxu0 0
    %2059 = vmatprep.subr.bf16.mxu0 0
    %2060 = vmatpush1.bf16.xpose.msra.mxu0 0
    %2061 = vmatprep.subr.bf16.mxu0 0
    %2062 = vmatpush1.bf16.xpose.msra.mxu0 0
    %2063 = vmatprep.subr.bf16.mxu0 0
    %2064 = vmatpush1.bf16.xpose.msra.mxu0 0
    %2065 = vmatprep.mubr.bf16.mxu0 0
    %2066 = vmatmul.mubr.bf16.gmra.mrb[0].mxu0 %v2028
    %v2067 = vpop.f32.mrb[0].mxu0
    %v2068 = vadd.f32 0.0, %v2067
    %v2069 = vpop.f32.mrb[0].mxu0
    %v2070 = vpop.f32.mrb[0].mxu0
    %v2071 = vpop.f32.mrb[0].mxu0
    %2072 = vdwg.mxu0
    %2074 = vrot.lane.b32.xlu0 %v1731, 64
    %v2075 = vpop.permute.xlu0 %2074
    %2077 = vrot.lane.b32.xlu0 %v1733, 64
    %v2078 = vpop.permute.xlu0 %2077
    %v2080 = vsel %vm444, %v2075, 0
    %v2083 = vsel %vm444, %v2078, 0
    %2085 = vmatprep.subr.bf16.mxu0 0
    %2086 = vmatpush1.bf16.xpose.msra.mxu0 %v2083
    %2087 = vmatprep.subr.bf16.mxu0 0
    %2088 = vmatpush1.bf16.xpose.msra.mxu0 0
    %2089 = vmatprep.subr.bf16.mxu0 0
    %2090 = vmatpush1.bf16.xpose.msra.mxu0 0
    %2091 = vmatprep.subr.bf16.mxu0 0
    %2092 = vmatpush1.bf16.xpose.msra.mxu0 0
    %2093 = vmatprep.subr.bf16.mxu0 0
    %2094 = vmatpush1.bf16.xpose.msra.mxu0 0
    %2095 = vmatprep.subr.bf16.mxu0 0
    %2096 = vmatpush1.bf16.xpose.msra.mxu0 0
    %2097 = vmatprep.subr.bf16.mxu0 0
    %2098 = vmatpush1.bf16.xpose.msra.mxu0 0
    %2099 = vmatprep.subr.bf16.mxu0 0
    %2100 = vmatpush1.bf16.xpose.msra.mxu0 0
    %2101 = vmatprep.subr.bf16.mxu0 0
    %2102 = vmatpush1.bf16.xpose.msra.mxu0 0
    %2103 = vmatprep.subr.bf16.mxu0 0
    %2104 = vmatpush1.bf16.xpose.msra.mxu0 0
    %2105 = vmatprep.subr.bf16.mxu0 0
    %2106 = vmatpush1.bf16.xpose.msra.mxu0 0
    %2107 = vmatprep.subr.bf16.mxu0 0
    %2108 = vmatpush1.bf16.xpose.msra.mxu0 0
    %2109 = vmatprep.subr.bf16.mxu0 0
    %2110 = vmatpush1.bf16.xpose.msra.mxu0 0
    %2111 = vmatprep.subr.bf16.mxu0 0
    %2112 = vmatpush1.bf16.xpose.msra.mxu0 0
    %2113 = vmatprep.subr.bf16.mxu0 0
    %2114 = vmatpush1.bf16.xpose.msra.mxu0 0
    %2115 = vmatprep.subr.bf16.mxu0 0
    %2116 = vmatpush1.bf16.xpose.msra.mxu0 0
    %2117 = vmatprep.mubr.bf16.mxu0 0
    %2118 = vmatmul.mubr.bf16.gmra.mrb[0].mxu0 %v2080
    %v2119 = vpop.f32.mrb[0].mxu0
    %v2120 = vadd.f32 0.0, %v2119
    %v2121 = vpop.f32.mrb[0].mxu0
    %v2122 = vpop.f32.mrb[0].mxu0
    %v2123 = vpop.f32.mrb[0].mxu0
    %2124 = vdwg.mxu0
    %v2125 = vsel %vm537, %v2068, -inf
    %2126 = vmax.xlane.f32.xlu0 %v2125
    %v2127 = vpop.xlane.xlu0 %2126
    %v2128 = vsel %vm537, %v2120, -inf
    %2129 = vmax.xlane.f32.xlu0 %v2128
    %v2130 = vpop.xlane.xlu0 %2129
    %v2131 = vsub.f32 %v2068, %v2127
    %v2132 = vsub.f32 %v2120, %v2130
    %v2133 = vmul.f32 %v2131, 1.442695
    %v2134 = vpow.pop %v2133
    %v2135 = vmul.f32 %v2132, 1.442695
    %v2136 = vpow.pop %v2135
    %v2137 = vsel %vm537, %v2134, 0.0
    %2138 = vadd.xlane.f32.xlu0 %v2137
    %v2139 = vpop.xlane.xlu0 %2138
    %v2140 = vsel %vm537, %v2136, 0.0
    %2141 = vadd.xlane.f32.xlu0 %v2140
    %v2142 = vpop.xlane.xlu0 %2141
    %v2143 = vrcp.pop %v2139
    %v2144 = vrcp.pop %v2142
    %v2145 = vmul.f32 %v2134, %v2143
    %v2146 = vmul.f32 %v2136, %v2144
    %v2147 = vpack.c.bf16 %v2145, %v2145
    %v2148 = vpack.c.bf16 %v2146, %v2146
    %2150 = vrot.lane.b32.xlu0 %v1850, 64
    %v2151 = vpop.permute.xlu0 %2150
    %v2153 = vsel %vm537, %v2147, 0
    %v2156 = vsel %vm567, %v2151, 0
    %2158 = vmatprep.subr.bf16.mxu0 0
    %2159 = vmatpush1.bf16.msra.mxu0 %v2156
    %2160 = vmatprep.subr.bf16.mxu0 0
    %2161 = vmatpush1.bf16.msra.mxu0 0
    %2162 = vmatprep.subr.bf16.mxu0 0
    %2163 = vmatpush1.bf16.msra.mxu0 0
    %2164 = vmatprep.subr.bf16.mxu0 0
    %2165 = vmatpush1.bf16.msra.mxu0 0
    %2166 = vmatprep.subr.bf16.mxu0 0
    %2167 = vmatpush1.bf16.msra.mxu0 0
    %2168 = vmatprep.subr.bf16.mxu0 0
    %2169 = vmatpush1.bf16.msra.mxu0 0
    %2170 = vmatprep.subr.bf16.mxu0 0
    %2171 = vmatpush1.bf16.msra.mxu0 0
    %2172 = vmatprep.subr.bf16.mxu0 0
    %2173 = vmatpush1.bf16.msra.mxu0 0
    %2174 = vmatprep.subr.bf16.mxu0 0
    %2175 = vmatpush1.bf16.msra.mxu0 0
    %2176 = vmatprep.subr.bf16.mxu0 0
    %2177 = vmatpush1.bf16.msra.mxu0 0
    %2178 = vmatprep.subr.bf16.mxu0 0
    %2179 = vmatpush1.bf16.msra.mxu0 0
    %2180 = vmatprep.subr.bf16.mxu0 0
    %2181 = vmatpush1.bf16.msra.mxu0 0
    %2182 = vmatprep.subr.bf16.mxu0 0
    %2183 = vmatpush1.bf16.msra.mxu0 0
    %2184 = vmatprep.subr.bf16.mxu0 0
    %2185 = vmatpush1.bf16.msra.mxu0 0
    %2186 = vmatprep.subr.bf16.mxu0 0
    %2187 = vmatpush1.bf16.msra.mxu0 0
    %2188 = vmatprep.subr.bf16.mxu0 0
    %2189 = vmatpush1.bf16.msra.mxu0 0
    %2190 = vmatprep.mubr.bf16.mxu0 0
    %2191 = vmatmul.mubr.bf16.gmra.mrb[0].mxu0 %v2153
    %v2192 = vpop.f32.mrb[0].mxu0
    %v2193 = vadd.f32 0.0, %v2192
    %v2194 = vpop.f32.mrb[0].mxu0
    %v2195 = vpop.f32.mrb[0].mxu0
    %v2196 = vpop.f32.mrb[0].mxu0
    %2197 = vdwg.mxu0
    %2199 = vrot.lane.b32.xlu0 %v1851, 64
    %v2200 = vpop.permute.xlu0 %2199
    %v2202 = vsel %vm537, %v2148, 0
    %v2205 = vsel %vm567, %v2200, 0
    %2207 = vmatprep.subr.bf16.mxu0 0
    %2208 = vmatpush1.bf16.msra.mxu0 %v2205
    %2209 = vmatprep.subr.bf16.mxu0 0
    %2210 = vmatpush1.bf16.msra.mxu0 0
    %2211 = vmatprep.subr.bf16.mxu0 0
    %2212 = vmatpush1.bf16.msra.mxu0 0
    %2213 = vmatprep.subr.bf16.mxu0 0
    %2214 = vmatpush1.bf16.msra.mxu0 0
    %2215 = vmatprep.subr.bf16.mxu0 0
    %2216 = vmatpush1.bf16.msra.mxu0 0
    %2217 = vmatprep.subr.bf16.mxu0 0
    %2218 = vmatpush1.bf16.msra.mxu0 0
    %2219 = vmatprep.subr.bf16.mxu0 0
    %2220 = vmatpush1.bf16.msra.mxu0 0
    %2221 = vmatprep.subr.bf16.mxu0 0
    %2222 = vmatpush1.bf16.msra.mxu0 0
    %2223 = vmatprep.subr.bf16.mxu0 0
    %2224 = vmatpush1.bf16.msra.mxu0 0
    %2225 = vmatprep.subr.bf16.mxu0 0
    %2226 = vmatpush1.bf16.msra.mxu0 0
    %2227 = vmatprep.subr.bf16.mxu0 0
    %2228 = vmatpush1.bf16.msra.mxu0 0
    %2229 = vmatprep.subr.bf16.mxu0 0
    %2230 = vmatpush1.bf16.msra.mxu0 0
    %2231 = vmatprep.subr.bf16.mxu0 0
    %2232 = vmatpush1.bf16.msra.mxu0 0
    %2233 = vmatprep.subr.bf16.mxu0 0
    %2234 = vmatpush1.bf16.msra.mxu0 0
    %2235 = vmatprep.subr.bf16.mxu0 0
    %2236 = vmatpush1.bf16.msra.mxu0 0
    %2237 = vmatprep.subr.bf16.mxu0 0
    %2238 = vmatpush1.bf16.msra.mxu0 0
    %2239 = vmatprep.mubr.bf16.mxu0 0
    %2240 = vmatmul.mubr.bf16.gmra.mrb[0].mxu0 %v2202
    %v2241 = vpop.f32.mrb[0].mxu0
    %v2242 = vadd.f32 0.0, %v2241
    %v2243 = vpop.f32.mrb[0].mxu0
    %v2244 = vpop.f32.mrb[0].mxu0
    %v2245 = vpop.f32.mrb[0].mxu0
    %2246 = vdwg.mxu0
    %v2247 = vpack.c.bf16 %v2242, %v2193
    %v2256 = vunpack.c.l.b16 %v1722
    %v2257 = vunpack.c.l.b16 %v1723
    %v2258 = vunpack.c.l.b16 %v1724
    %v2259 = vunpack.c.l.b16 %v1725
    %v2260 = vunpack.c.l.b16 %v1726
    %v2261 = vunpack.c.l.b16 %v1727
    %v2262 = vunpack.c.l.b16 %v1728
    %v2263 = vunpack.c.l.b16 %v1729
    %v2264 = vpack.c.b16 %v2257, %v2256
    %v2265 = vpack.c.b16 %v2259, %v2258
    %v2266 = vpack.c.b16 %v2261, %v2260
    %v2267 = vpack.c.b16 %v2263, %v2262
    %v2273 = vsel %vm444, %v2247, 0
    %2275 = vmatprep.subr.bf16.mxu0 0
    %2276 = vmatpush1.bf16.msra.mxu0 %v2264
    %2277 = vmatprep.subr.bf16.mxu0 0
    %2278 = vmatpush1.bf16.msra.mxu0 %v2265
    %2279 = vmatprep.subr.bf16.mxu0 0
    %2280 = vmatpush1.bf16.msra.mxu0 %v2266
    %2281 = vmatprep.subr.bf16.mxu0 0
    %2282 = vmatpush1.bf16.msra.mxu0 %v2267
    %2283 = vmatprep.subr.bf16.mxu0 0
    %2284 = vmatpush1.bf16.msra.mxu0 0
    %2285 = vmatprep.subr.bf16.mxu0 0
    %2286 = vmatpush1.bf16.msra.mxu0 0
    %2287 = vmatprep.subr.bf16.mxu0 0
    %2288 = vmatpush1.bf16.msra.mxu0 0
    %2289 = vmatprep.subr.bf16.mxu0 0
    %2290 = vmatpush1.bf16.msra.mxu0 0
    %2291 = vmatprep.subr.bf16.mxu0 0
    %2292 = vmatpush1.bf16.msra.mxu0 0
    %2293 = vmatprep.subr.bf16.mxu0 0
    %2294 = vmatpush1.bf16.msra.mxu0 0
    %2295 = vmatprep.subr.bf16.mxu0 0
    %2296 = vmatpush1.bf16.msra.mxu0 0
    %2297 = vmatprep.subr.bf16.mxu0 0
    %2298 = vmatpush1.bf16.msra.mxu0 0
    %2299 = vmatprep.subr.bf16.mxu0 0
    %2300 = vmatpush1.bf16.msra.mxu0 0
    %2301 = vmatprep.subr.bf16.mxu0 0
    %2302 = vmatpush1.bf16.msra.mxu0 0
    %2303 = vmatprep.subr.bf16.mxu0 0
    %2304 = vmatpush1.bf16.msra.mxu0 0
    %2305 = vmatprep.subr.bf16.mxu0 0
    %2306 = vmatpush1.bf16.msra.mxu0 0
    %2307 = vmatprep.mubr.bf16.mxu0 0
    %2308 = vmatmul.mubr.bf16.gmra.mrb[0].mxu0 %v2273
    %v2309 = vpop.f32.mrb[0].mxu0
    %v2310 = vadd.f32 0.0, %v2309
    %v2311 = vpop.f32.mrb[0].mxu0
    %v2312 = vpop.f32.mrb[0].mxu0
    %v2313 = vadd.f32 0.0, %v2312
    %v2314 = vpop.f32.mrb[0].mxu0
    %2315 = vdwg.mxu0
    %v2316 = vadd.f32 %v2015, %v2310
    %v2317 = vadd.f32 %v2018, %v2313
    %v2318 = vadd.f32 %v1447, %v2316
    %v2319 = vadd.f32 %v1448, %v2317
    %s2320 = scalar_lea.vmem %s6, 1
    %v2321 = vld [vmem:[%s2320] sm:$0x1]
    %s2322 = scalar_lea.vmem %s7, 1
    %v2323 = vld [vmem:[%s2322] sm:$0x1]
    %2324 = vadd.xlane.f32.xlu0 %v2318
    %v2325 = vpop.xlane.xlu0 %2324
    %2326 = vadd.xlane.f32.xlu0 %v2319
    %v2327 = vpop.xlane.xlu0 %2326
    %v2328 = vmul.f32 %v2325, %v1038
    %v2329 = vmul.f32 %v2327, %v1038
    %v2330 = vsub.f32 %v2318, %v2328
    %v2331 = vsub.f32 %v2319, %v2329
    %v2332 = vmul.f32 %v2330, %v2330
    %v2333 = vmul.f32 %v2331, %v2331
    %2334 = vadd.xlane.f32.xlu0 %v2332
    %v2335 = vpop.xlane.xlu0 %2334
    %2336 = vadd.xlane.f32.xlu0 %v2333
    %v2337 = vpop.xlane.xlu0 %2336
    %v2338 = vmul.f32 %v2335, %v1038
    %v2339 = vmul.f32 %v2337, %v1038
    %v2340 = vadd.f32 %v2338, 1e-05
    %v2341 = vadd.f32 %v2339, 1e-05
    %v2342 = vrsqrt.pop %v2340
    %v2343 = vrsqrt.pop %v2341
    %v2344 = vmul.f32 %v2330, %v2342
    %v2345 = vmul.f32 %v2331, %v2343
    %v2347 = vlaneseq
    %v2348 = vshrl.u32 %v2347, 7
    %v2349 = vsub.s32 0, %v2348
    %v2350 = vrot.slane %v2321, %v2349
    %v2352 = vmul.f32 %v2344, %v2350
    %v2353 = vmul.f32 %v2345, %v2350
    %v2355 = vlaneseq
    %v2356 = vshrl.u32 %v2355, 7
    %v2357 = vsub.s32 0, %v2356
    %v2358 = vrot.slane %v2323, %v2357
    %v2360 = vadd.f32 %v2352, %v2358
    %v2361 = vadd.f32 %v2353, %v2358
    %v2362 = vpack.c.bf16 %v2361, %v2360
    %s2363 = scalar_lea.vmem [#allocation11], 128
    %v2364 = vld [vmem:[%s2363] sm:$0xff]
    %v2365 = vld [vmem:[%s2363 + $0x8] sm:$0xff]
    %v2366 = vld [vmem:[%s2363 + $0x10] sm:$0xff]
    %v2367 = vld [vmem:[%s2363 + $0x18] sm:$0xff]
    %v2368 = vld [vmem:[%s2363 + $0x20] sm:$0xff]
    %v2369 = vld [vmem:[%s2363 + $0x28] sm:$0xff]
    %v2370 = vld [vmem:[%s2363 + $0x30] sm:$0xff]
    %v2371 = vld [vmem:[%s2363 + $0x38] sm:$0xff]
    %v2372 = vld [vmem:[%s2363 + $0x40] sm:$0xff]
    %v2373 = vld [vmem:[%s2363 + $0x48] sm:$0xff]
    %v2374 = vld [vmem:[%s2363 + $0x50] sm:$0xff]
    %v2375 = vld [vmem:[%s2363 + $0x58] sm:$0xff]
    %v2376 = vld [vmem:[%s2363 + $0x60] sm:$0xff]
    %v2377 = vld [vmem:[%s2363 + $0x68] sm:$0xff]
    %v2378 = vld [vmem:[%s2363 + $0x70] sm:$0xff]
    %v2379 = vld [vmem:[%s2363 + $0x78] sm:$0xff]
    %s2380 = scalar_lea.vmem %s9, 2
    %v2381 = vld [vmem:[%s2380] sm:$0x3]
    %v2383 = vlaneseq
    %v2384 = vshrl.u32 %v2383, 7
    %v2385 = vsub.s32 0, %v2384
    %v2386 = vrot.slane %v2381, %v2385
    %v2387 = vlaneseq
    %v2388 = vshrl.u32 %v2387, 7
    %v2389 = vsub.s32 1, %v2388
    %v2390 = vrot.slane %v2381, %v2389
    %v2409 = vunpack.c.l.b16 %v2364
    %v2410 = vunpack.c.h.b16 %v2364
    %v2411 = vunpack.c.l.b16 %v2365
    %v2412 = vunpack.c.h.b16 %v2365
    %v2413 = vunpack.c.l.b16 %v2366
    %v2414 = vunpack.c.h.b16 %v2366
    %v2415 = vunpack.c.l.b16 %v2367
    %v2416 = vunpack.c.h.b16 %v2367
    %v2417 = vunpack.c.l.b16 %v2368
    %v2418 = vunpack.c.h.b16 %v2368
    %v2419 = vunpack.c.l.b16 %v2369
    %v2420 = vunpack.c.h.b16 %v2369
    %v2421 = vunpack.c.l.b16 %v2370
    %v2422 = vunpack.c.h.b16 %v2370
    %v2423 = vunpack.c.l.b16 %v2371
    %v2424 = vunpack.c.h.b16 %v2371
    %v2425 = vunpack.c.l.b16 %v2372
    %v2426 = vunpack.c.h.b16 %v2372
    %v2427 = vunpack.c.l.b16 %v2373
    %v2428 = vunpack.c.h.b16 %v2373
    %v2429 = vunpack.c.l.b16 %v2374
    %v2430 = vunpack.c.h.b16 %v2374
    %v2431 = vunpack.c.l.b16 %v2375
    %v2432 = vunpack.c.h.b16 %v2375
    %v2433 = vunpack.c.l.b16 %v2376
    %v2434 = vunpack.c.h.b16 %v2376
    %v2435 = vunpack.c.l.b16 %v2377
    %v2436 = vunpack.c.h.b16 %v2377
    %v2437 = vunpack.c.l.b16 %v2378
    %v2438 = vunpack.c.h.b16 %v2378
    %v2439 = vunpack.c.l.b16 %v2379
    %v2440 = vunpack.c.h.b16 %v2379
    %v2441 = vpack.c.b16 %v2411, %v2409
    %v2442 = vpack.c.b16 %v2412, %v2410
    %v2443 = vpack.c.b16 %v2415, %v2413
    %v2444 = vpack.c.b16 %v2416, %v2414
    %v2445 = vpack.c.b16 %v2419, %v2417
    %v2446 = vpack.c.b16 %v2420, %v2418
    %v2447 = vpack.c.b16 %v2423, %v2421
    %v2448 = vpack.c.b16 %v2424, %v2422
    %v2449 = vpack.c.b16 %v2427, %v2425
    %v2450 = vpack.c.b16 %v2428, %v2426
    %v2451 = vpack.c.b16 %v2431, %v2429
    %v2452 = vpack.c.b16 %v2432, %v2430
    %v2453 = vpack.c.b16 %v2435, %v2433
    %v2454 = vpack.c.b16 %v2436, %v2434
    %v2455 = vpack.c.b16 %v2439, %v2437
    %v2456 = vpack.c.b16 %v2440, %v2438
    %2473 = vmatprep.subr.bf16.mxu0 %v2442
    %2474 = vmatpush1.bf16.msra.mxu0 %v2441
    %2475 = vmatprep.subr.bf16.mxu0 %v2444
    %2476 = vmatpush1.bf16.msra.mxu0 %v2443
    %2477 = vmatprep.subr.bf16.mxu0 %v2446
    %2478 = vmatpush1.bf16.msra.mxu0 %v2445
    %2479 = vmatprep.subr.bf16.mxu0 %v2448
    %2480 = vmatpush1.bf16.msra.mxu0 %v2447
    %2481 = vmatprep.subr.bf16.mxu0 %v2450
    %2482 = vmatpush1.bf16.msra.mxu0 %v2449
    %2483 = vmatprep.subr.bf16.mxu0 %v2452
    %2484 = vmatpush1.bf16.msra.mxu0 %v2451
    %2485 = vmatprep.subr.bf16.mxu0 %v2454
    %2486 = vmatpush1.bf16.msra.mxu0 %v2453
    %2487 = vmatprep.subr.bf16.mxu0 %v2456
    %2488 = vmatpush1.bf16.msra.mxu0 %v2455
    %2489 = vmatprep.subr.bf16.mxu0 0
    %2490 = vmatpush1.bf16.msra.mxu0 0
    %2491 = vmatprep.subr.bf16.mxu0 0
    %2492 = vmatpush1.bf16.msra.mxu0 0
    %2493 = vmatprep.subr.bf16.mxu0 0
    %2494 = vmatpush1.bf16.msra.mxu0 0
    %2495 = vmatprep.subr.bf16.mxu0 0
    %2496 = vmatpush1.bf16.msra.mxu0 0
    %2497 = vmatprep.subr.bf16.mxu0 0
    %2498 = vmatpush1.bf16.msra.mxu0 0
    %2499 = vmatprep.subr.bf16.mxu0 0
    %2500 = vmatpush1.bf16.msra.mxu0 0
    %2501 = vmatprep.subr.bf16.mxu0 0
    %2502 = vmatpush1.bf16.msra.mxu0 0
    %2503 = vmatprep.subr.bf16.mxu0 0
    %2504 = vmatpush1.bf16.msra.mxu0 0
    %2505 = vmatprep.mubr.bf16.mxu0 0
    %2506 = vmatmul.mubr.bf16.gmra.mrb[0].mxu0 %v2362
    %v2507 = vpop.f32.mrb[0].mxu0
    %v2508 = vadd.f32 %v2386, %v2507
    %v2509 = vpop.f32.mrb[0].mxu0
    %v2510 = vadd.f32 %v2390, %v2509
    %v2511 = vpop.f32.mrb[0].mxu0
    %v2512 = vadd.f32 %v2386, %v2511
    %v2513 = vpop.f32.mrb[0].mxu0
    %v2514 = vadd.f32 %v2390, %v2513
    %2515 = vdwg.mxu0
    %v2516 = vmax.f32 %v2508, 0.0
    %v2517 = vmax.f32 %v2510, 0.0
    %v2518 = vmax.f32 %v2512, 0.0
    %v2519 = vmax.f32 %v2514, 0.0
    %v2520 = vpack.c.bf16 %v2518, %v2516
    %v2521 = vpack.c.bf16 %v2519, %v2517
    %s2522 = scalar_lea.vmem [#allocation12], 128
    %v2523 = vld [vmem:[%s2522] sm:$0xf]
    %v2524 = vld [vmem:[%s2522 + $0x4] sm:$0xf]
    %v2525 = vld [vmem:[%s2522 + $0x8] sm:$0xf]
    %v2526 = vld [vmem:[%s2522 + $0xc] sm:$0xf]
    %v2527 = vld [vmem:[%s2522 + $0x10] sm:$0xf]
    %v2528 = vld [vmem:[%s2522 + $0x14] sm:$0xf]
    %v2529 = vld [vmem:[%s2522 + $0x18] sm:$0xf]
    %v2530 = vld [vmem:[%s2522 + $0x1c] sm:$0xf]
    %v2531 = vld [vmem:[%s2522 + $0x20] sm:$0xf]
    %v2532 = vld [vmem:[%s2522 + $0x24] sm:$0xf]
    %v2533 = vld [vmem:[%s2522 + $0x28] sm:$0xf]
    %v2534 = vld [vmem:[%s2522 + $0x2c] sm:$0xf]
    %v2535 = vld [vmem:[%s2522 + $0x30] sm:$0xf]
    %v2536 = vld [vmem:[%s2522 + $0x34] sm:$0xf]
    %v2537 = vld [vmem:[%s2522 + $0x38] sm:$0xf]
    %v2538 = vld [vmem:[%s2522 + $0x3c] sm:$0xf]
    %v2539 = vld [vmem:[%s2522 + $0x40] sm:$0xf]
    %v2540 = vld [vmem:[%s2522 + $0x44] sm:$0xf]
    %v2541 = vld [vmem:[%s2522 + $0x48] sm:$0xf]
    %v2542 = vld [vmem:[%s2522 + $0x4c] sm:$0xf]
    %v2543 = vld [vmem:[%s2522 + $0x50] sm:$0xf]
    %v2544 = vld [vmem:[%s2522 + $0x54] sm:$0xf]
    %v2545 = vld [vmem:[%s2522 + $0x58] sm:$0xf]
    %v2546 = vld [vmem:[%s2522 + $0x5c] sm:$0xf]
    %v2547 = vld [vmem:[%s2522 + $0x60] sm:$0xf]
    %v2548 = vld [vmem:[%s2522 + $0x64] sm:$0xf]
    %v2549 = vld [vmem:[%s2522 + $0x68] sm:$0xf]
    %v2550 = vld [vmem:[%s2522 + $0x6c] sm:$0xf]
    %v2551 = vld [vmem:[%s2522 + $0x70] sm:$0xf]
    %v2552 = vld [vmem:[%s2522 + $0x74] sm:$0xf]
    %v2553 = vld [vmem:[%s2522 + $0x78] sm:$0xf]
    %v2554 = vld [vmem:[%s2522 + $0x7c] sm:$0xf]
    %s2555 = scalar_lea.vmem %s11, 1
    %v2556 = vld [vmem:[%s2555] sm:$0x1]
    %v2558 = vlaneseq
    %v2559 = vshrl.u32 %v2558, 7
    %v2560 = vsub.s32 0, %v2559
    %v2561 = vrot.slane %v2556, %v2560
    %v2595 = vunpack.c.l.b16 %v2523
    %v2596 = vunpack.c.l.b16 %v2524
    %v2597 = vunpack.c.l.b16 %v2525
    %v2598 = vunpack.c.l.b16 %v2526
    %v2599 = vunpack.c.l.b16 %v2527
    %v2600 = vunpack.c.l.b16 %v2528
    %v2601 = vunpack.c.l.b16 %v2529
    %v2602 = vunpack.c.l.b16 %v2530
    %v2603 = vunpack.c.l.b16 %v2531
    %v2604 = vunpack.c.l.b16 %v2532
    %v2605 = vunpack.c.l.b16 %v2533
    %v2606 = vunpack.c.l.b16 %v2534
    %v2607 = vunpack.c.l.b16 %v2535
    %v2608 = vunpack.c.l.b16 %v2536
    %v2609 = vunpack.c.l.b16 %v2537
    %v2610 = vunpack.c.l.b16 %v2538
    %v2611 = vunpack.c.l.b16 %v2539
    %v2612 = vunpack.c.l.b16 %v2540
    %v2613 = vunpack.c.l.b16 %v2541
    %v2614 = vunpack.c.l.b16 %v2542
    %v2615 = vunpack.c.l.b16 %v2543
    %v2616 = vunpack.c.l.b16 %v2544
    %v2617 = vunpack.c.l.b16 %v2545
    %v2618 = vunpack.c.l.b16 %v2546
    %v2619 = vunpack.c.l.b16 %v2547
    %v2620 = vunpack.c.l.b16 %v2548
    %v2621 = vunpack.c.l.b16 %v2549
    %v2622 = vunpack.c.l.b16 %v2550
    %v2623 = vunpack.c.l.b16 %v2551
    %v2624 = vunpack.c.l.b16 %v2552
    %v2625 = vunpack.c.l.b16 %v2553
    %v2626 = vunpack.c.l.b16 %v2554
    %v2627 = vpack.c.b16 %v2596, %v2595
    %v2628 = vpack.c.b16 %v2598, %v2597
    %v2629 = vpack.c.b16 %v2600, %v2599
    %v2630 = vpack.c.b16 %v2602, %v2601
    %v2631 = vpack.c.b16 %v2604, %v2603
    %v2632 = vpack.c.b16 %v2606, %v2605
    %v2633 = vpack.c.b16 %v2608, %v2607
    %v2634 = vpack.c.b16 %v2610, %v2609
    %v2635 = vpack.c.b16 %v2612, %v2611
    %v2636 = vpack.c.b16 %v2614, %v2613
    %v2637 = vpack.c.b16 %v2616, %v2615
    %v2638 = vpack.c.b16 %v2618, %v2617
    %v2639 = vpack.c.b16 %v2620, %v2619
    %v2640 = vpack.c.b16 %v2622, %v2621
    %v2641 = vpack.c.b16 %v2624, %v2623
    %v2642 = vpack.c.b16 %v2626, %v2625
    %2659 = vmatprep.subr.bf16.mxu0 0
    %2660 = vmatpush1.bf16.msra.mxu0 %v2627
    %2661 = vmatprep.subr.bf16.mxu0 0
    %2662 = vmatpush1.bf16.msra.mxu0 %v2628
    %2663 = vmatprep.subr.bf16.mxu0 0
    %2664 = vmatpush1.bf16.msra.mxu0 %v2629
    %2665 = vmatprep.subr.bf16.mxu0 0
    %2666 = vmatpush1.bf16.msra.mxu0 %v2630
    %2667 = vmatprep.subr.bf16.mxu0 0
    %2668 = vmatpush1.bf16.msra.mxu0 %v2631
    %2669 = vmatprep.subr.bf16.mxu0 0
    %2670 = vmatpush1.bf16.msra.mxu0 %v2632
    %2671 = vmatprep.subr.bf16.mxu0 0
    %2672 = vmatpush1.bf16.msra.mxu0 %v2633
    %2673 = vmatprep.subr.bf16.mxu0 0
    %2674 = vmatpush1.bf16.msra.mxu0 %v2634
    %2675 = vmatprep.subr.bf16.mxu0 0
    %2676 = vmatpush1.bf16.msra.mxu0 %v2635
    %2677 = vmatprep.subr.bf16.mxu0 0
    %2678 = vmatpush1.bf16.msra.mxu0 %v2636
    %2679 = vmatprep.subr.bf16.mxu0 0
    %2680 = vmatpush1.bf16.msra.mxu0 %v2637
    %2681 = vmatprep.subr.bf16.mxu0 0
    %2682 = vmatpush1.bf16.msra.mxu0 %v2638
    %2683 = vmatprep.subr.bf16.mxu0 0
    %2684 = vmatpush1.bf16.msra.mxu0 %v2639
    %2685 = vmatprep.subr.bf16.mxu0 0
    %2686 = vmatpush1.bf16.msra.mxu0 %v2640
    %2687 = vmatprep.subr.bf16.mxu0 0
    %2688 = vmatpush1.bf16.msra.mxu0 %v2641
    %2689 = vmatprep.subr.bf16.mxu0 0
    %2690 = vmatpush1.bf16.msra.mxu0 %v2642
    %2691 = vmatprep.mubr.bf16.mxu0 %v2521
    %2692 = vmatmul.mubr.bf16.gmra.mrb[0].mxu0 %v2520
    %v2693 = vpop.f32.mrb[0].mxu0
    %v2694 = vadd.f32 %v2561, %v2693
    %v2695 = vpop.f32.mrb[0].mxu0
    %v2696 = vpop.f32.mrb[0].mxu0
    %v2697 = vadd.f32 %v2561, %v2696
    %v2698 = vpop.f32.mrb[0].mxu0
    %2699 = vdwg.mxu0
    %v2700 = vadd.f32 %v2360, %v2694
    %v2701 = vadd.f32 %v2361, %v2697
    %s2702 = scalar_lea.vmem %s12, 1
    %v2703 = vld [vmem:[%s2702] sm:$0x1]
    %s2704 = scalar_lea.vmem %s13, 1
    %v2705 = vld [vmem:[%s2704] sm:$0x1]
    %2706 = vadd.xlane.f32.xlu0 %v2700
    %v2707 = vpop.xlane.xlu0 %2706
    %2708 = vadd.xlane.f32.xlu0 %v2701
    %v2709 = vpop.xlane.xlu0 %2708
    %v2710 = vmul.f32 %v2707, %v1038
    %v2711 = vmul.f32 %v2709, %v1038
    %v2712 = vsub.f32 %v2700, %v2710
    %v2713 = vsub.f32 %v2701, %v2711
    %v2714 = vmul.f32 %v2712, %v2712
    %v2715 = vmul.f32 %v2713, %v2713
    %2716 = vadd.xlane.f32.xlu0 %v2714
    %v2717 = vpop.xlane.xlu0 %2716
    %2718 = vadd.xlane.f32.xlu0 %v2715
    %v2719 = vpop.xlane.xlu0 %2718
    %v2720 = vmul.f32 %v2717, %v1038
    %v2721 = vmul.f32 %v2719, %v1038
    %v2722 = vadd.f32 %v2720, 1e-05
    %v2723 = vadd.f32 %v2721, 1e-05
    %v2724 = vrsqrt.pop %v2722
    %v2725 = vrsqrt.pop %v2723
    %v2726 = vmul.f32 %v2712, %v2724
    %v2727 = vmul.f32 %v2713, %v2725
    %v2729 = vlaneseq
    %v2730 = vshrl.u32 %v2729, 7
    %v2731 = vsub.s32 0, %v2730
    %v2732 = vrot.slane %v2703, %v2731
    %v2734 = vmul.f32 %v2726, %v2732
    %v2735 = vmul.f32 %v2727, %v2732
    %v2737 = vlaneseq
    %v2738 = vshrl.u32 %v2737, 7
    %v2739 = vsub.s32 0, %v2738
    %v2740 = vrot.slane %v2705, %v2739
    %v2742 = vadd.f32 %v2734, %v2740
    %v2743 = vadd.f32 %v2735, %v2740
    %2744 = vst [vmem:[#allocation2] sm:$0xff] %v2742
    %2745 = vst [vmem:[#allocation2 + $0x8] sm:$0xff] %v2743
    %v2746 = vld [vmem:[#allocation2] ss:$8 sm:$0x3]
    %v2747 = vpack.c.bf16 %v2746, %v2746
    %v2748 = vld [vmem:[#allocation14] sm:$0xf]
    %v2749 = vld [vmem:[#allocation14 + $0x4] sm:$0xf]
    %v2750 = vld [vmem:[#allocation14 + $0x8] sm:$0xf]
    %v2751 = vld [vmem:[#allocation14 + $0xc] sm:$0xf]
    %v2752 = vld [vmem:[#allocation14 + $0x10] sm:$0xf]
    %v2753 = vld [vmem:[#allocation14 + $0x14] sm:$0xf]
    %v2754 = vld [vmem:[#allocation14 + $0x18] sm:$0xf]
    %v2755 = vld [vmem:[#allocation14 + $0x1c] sm:$0xf]
    %v2756 = vld [vmem:[#allocation14 + $0x20] sm:$0xf]
    %v2757 = vld [vmem:[#allocation14 + $0x24] sm:$0xf]
    %v2758 = vld [vmem:[#allocation14 + $0x28] sm:$0xf]
    %v2759 = vld [vmem:[#allocation14 + $0x2c] sm:$0xf]
    %v2760 = vld [vmem:[#allocation14 + $0x30] sm:$0xf]
    %v2761 = vld [vmem:[#allocation14 + $0x34] sm:$0xf]
    %v2762 = vld [vmem:[#allocation14 + $0x38] sm:$0xf]
    %v2763 = vld [vmem:[#allocation14 + $0x3c] sm:$0xf]
    %v2764 = vld [vmem:[%s15] sm:$0x1]
    %v2766 = vlaneseq
    %v2767 = vshrl.u32 %v2766, 7
    %v2768 = vsub.s32 0, %v2767
    %v2769 = vrot.slane %v2764, %v2768
    %v2787 = vunpack.c.l.b16 %v2748
    %v2788 = vunpack.c.l.b16 %v2749
    %v2789 = vunpack.c.l.b16 %v2750
    %v2790 = vunpack.c.l.b16 %v2751
    %v2791 = vunpack.c.l.b16 %v2752
    %v2792 = vunpack.c.l.b16 %v2753
    %v2793 = vunpack.c.l.b16 %v2754
    %v2794 = vunpack.c.l.b16 %v2755
    %v2795 = vunpack.c.l.b16 %v2756
    %v2796 = vunpack.c.l.b16 %v2757
    %v2797 = vunpack.c.l.b16 %v2758
    %v2798 = vunpack.c.l.b16 %v2759
    %v2799 = vunpack.c.l.b16 %v2760
    %v2800 = vunpack.c.l.b16 %v2761
    %v2801 = vunpack.c.l.b16 %v2762
    %v2802 = vunpack.c.l.b16 %v2763
    %v2803 = vpack.c.b16 %v2788, %v2787
    %v2804 = vpack.c.b16 %v2790, %v2789
    %v2805 = vpack.c.b16 %v2792, %v2791
    %v2806 = vpack.c.b16 %v2794, %v2793
    %v2807 = vpack.c.b16 %v2796, %v2795
    %v2808 = vpack.c.b16 %v2798, %v2797
    %v2809 = vpack.c.b16 %v2800, %v2799
    %v2810 = vpack.c.b16 %v2802, %v2801
    %2819 = vmatprep.subr.bf16.mxu0 0
    %2820 = vmatpush1.bf16.msra.mxu0 %v2803
    %2821 = vmatprep.subr.bf16.mxu0 0
    %2822 = vmatpush1.bf16.msra.mxu0 %v2804
    %2823 = vmatprep.subr.bf16.mxu0 0
    %2824 = vmatpush1.bf16.msra.mxu0 %v2805
    %2825 = vmatprep.subr.bf16.mxu0 0
    %2826 = vmatpush1.bf16.msra.mxu0 %v2806
    %2827 = vmatprep.subr.bf16.mxu0 0
    %2828 = vmatpush1.bf16.msra.mxu0 %v2807
    %2829 = vmatprep.subr.bf16.mxu0 0
    %2830 = vmatpush1.bf16.msra.mxu0 %v2808
    %2831 = vmatprep.subr.bf16.mxu0 0
    %2832 = vmatpush1.bf16.msra.mxu0 %v2809
    %2833 = vmatprep.subr.bf16.mxu0 0
    %2834 = vmatpush1.bf16.msra.mxu0 %v2810
    %2835 = vmatprep.subr.bf16.mxu0 0
    %2836 = vmatpush1.bf16.msra.mxu0 0
    %2837 = vmatprep.subr.bf16.mxu0 0
    %2838 = vmatpush1.bf16.msra.mxu0 0
    %2839 = vmatprep.subr.bf16.mxu0 0
    %2840 = vmatpush1.bf16.msra.mxu0 0
    %2841 = vmatprep.subr.bf16.mxu0 0
    %2842 = vmatpush1.bf16.msra.mxu0 0
    %2843 = vmatprep.subr.bf16.mxu0 0
    %2844 = vmatpush1.bf16.msra.mxu0 0
    %2845 = vmatprep.subr.bf16.mxu0 0
    %2846 = vmatpush1.bf16.msra.mxu0 0
    %2847 = vmatprep.subr.bf16.mxu0 0
    %2848 = vmatpush1.bf16.msra.mxu0 0
    %2849 = vmatprep.subr.bf16.mxu0 0
    %2850 = vmatpush1.bf16.msra.mxu0 0
    %2851 = vmatprep.mubr.bf16.mxu0 0
    %2852 = vmatmul.mubr.bf16.gmra.mrb[0].mxu0 %v2747
    %v2853 = vpop.f32.mrb[0].mxu0
    %v2854 = vadd.f32 %v2769, %v2853
    %v2855 = vpop.f32.mrb[0].mxu0
    %v2856 = vpop.f32.mrb[0].mxu0
    %v2857 = vpop.f32.mrb[0].mxu0
    %2858 = vdwg.mxu0
    %v2859 = vld [vmem:[%s16] sm:$0x1]
    %v2861 = vlaneseq
    %v2862 = vshrl.u32 %v2861, 7
    %v2863 = vsub.s32 0, %v2862
    %v2864 = vrot.slane %v2859, %v2863
    %v2866 = vmul.f32 %v2854, %v2864
    %vm2867 = vcmask 1041408
    %v2868 = vsel %vm2867, %v2866, 0.0
    %2869 = vadd.xlane.f32.xlu0 %v2868
    %v2870 = vpop.xlane.xlu0 %2869
    %v2871 = vld [vmem:[#allocation3] sm:$0x1]
    %v2873 = vlaneseq
    %v2874 = vshrl.u32 %v2873, 7
    %v2875 = vsub.s32 0, %v2874
    %v2876 = vrot.slane %v2871, %v2875
    %v2878 = vadd.f32 %v2870, %v2876
    %v2879 = vxor.u32 %v2878, 2147483648
    %v2880 = vmul.f32 %v2879, 1.442695
    %v2881 = vpow.pop %v2880
    %v2882 = vadd.f32 %v2881, 1.0
    %v2883 = vrcp.pop %v2882
    %v2884 = vmul.f32 1.0, %v2883
    %vm2885 = vcmask 1024
    %2886 = vst.msk [vmem:[%s18] sm:$0x3] %vm2885, %v2884
    // Predicated region
    $region102: #{tpu_custom_call.1} parent=1 // pred_check
      _
    $region103: #{tpu_custom_call.1} parent=1 // pred_check_branch
      %2888 = sbr.rel (0) target = $region105
    $region104: #{tpu_custom_call.1} parent=1 // pred_region
      _
    $region105: #{tpu_custom_call.1} parent=1 // pred_fallthru
      _
    // Predicated region
    $region106: #{tpu_custom_call.1} parent=1 // pred_check
      _
    $region107: #{tpu_custom_call.1} parent=1 // pred_check_branch
      %2890 = sbr.rel (0) target = $region109
    $region108: #{tpu_custom_call.1} parent=1 // pred_region
      _
    $region109: #{tpu_custom_call.1} parent=1 // pred_fallthru
      _
    %2891 = vsyncpa [#allocation5], 1
    %2892 = vsyncpa [#allocation7], 1
    %2893 = vsyncpa [#allocation10], 1
    %2894 = vsyncpa [#allocation13], 1

</llo_original>
